<compile_context>
chip_gen: v7x
topology: tpu7x:2x2x1
jax: 0.10.0
libtpu: 0.0.40
codegen_flags: <defaults>
</compile_context>

<pallas_src>
import jax
import jax.numpy as jnp
from jax.experimental import pallas as pl
from jax.experimental.pallas import tpu as pltpu

EPS = 1e-5          # GraphNorm eps (PyG default)
NEG_SLOPE = 0.2     # leaky_relu negative_slope
KMAX = 3            # max Chebyshev order across layers
OUT_PAD = 128       # lane-dense width for the final output store
VEC_ROWS = 8        # sublane-padded rows for per-layer vector params


def _vmem_spec():
    return pl.BlockSpec(memory_space=pltpu.MemorySpace.VMEM)


def layer_config(hidden_feats):
    """(cin, cout, K) for conv1..conv16 — 4 identical residual blocks."""
    h0, h1, h2 = hidden_feats
    return [(h0, h1, 2), (h1, h2, 3), (h2, h1, 3), (h1, h0, 2)] * 4


# ----------------------------- fused kernel ----------------------------------

def make_resgcn_kernel(layer_ks, layer_is_res):
    """One kernel for the whole forward pass; h stays resident in vregs."""

    def kernel(x_ref, w_ref, vec_ref, lw_ref, lb_ref, o_ref):
        n, c = x_ref.shape
        # Path-graph scaled Chebyshev Laplacian (sym norm, lambda_max = 2):
        #   (L_hat v)[i] = -v[i-1]  for 1 <= i <= n-2,  else 0
        # (last directed edge gets weight 0 because the sink has out-degree 0;
        #  the diagonal cancels).  Implemented as sublane roll + mask (XLU/VPU),
        # keeping the MXU free for the X @ W_k matmuls.
        row = jax.lax.broadcasted_iota(jnp.int32, (n, c), 0)
        interior = jnp.logical_and(row >= 1, row <= n - 2)

        def prop(v):
            return jnp.where(interior, -pltpu.roll(v, shift=1, axis=0), 0.0)

        x = x_ref[...]
        h = x
        for l, k_order in enumerate(layer_ks):
            # per-layer vector params: rows 0..3 = bias, gn_w, gn_b, gn_mean_scale
            vec = vec_ref[l]

            # ChebConv: sum_k T_k(L_hat) h @ W_k + b   (per-order matmuls kept
            # separate to avoid unaligned lane concatenation; MXU has slack).
            t_prev = h
            out = jnp.dot(t_prev, w_ref[KMAX * l + 0],
                          preferred_element_type=jnp.float32)
            if k_order >= 2:
                t_cur = prop(t_prev)
                out = out + jnp.dot(t_cur, w_ref[KMAX * l + 1],
                                    preferred_element_type=jnp.float32)
                for k in range(2, k_order):
                    t_next = 2.0 * prop(t_cur) - t_prev
                    out = out + jnp.dot(t_next, w_ref[KMAX * l + k],
                                        preferred_element_type=jnp.float32)
                    t_prev, t_cur = t_cur, t_next
            out = out + vec[0:1, :]

            if layer_is_res[l]:
                # residual add of the ORIGINAL input x, then relu
                h = jnp.maximum(out + x, 0.0)
            else:
                # GraphNorm (single graph over all n nodes) + leaky_relu(0.2)
                mean = jnp.mean(out, axis=0, keepdims=True)
                cen = out - mean * vec[3:4, :]
                var = jnp.mean(cen * cen, axis=0, keepdims=True)
                y = vec[1:2, :] * cen * jax.lax.rsqrt(var + EPS) + vec[2:3, :]
                h = jnp.where(y >= 0.0, y, NEG_SLOPE * y)

        # global_mean_pool (one graph) -> Linear -> tanh; output is lane-dense.
        pooled = jnp.mean(h, axis=0, keepdims=True)
        y = jnp.dot(pooled, lw_ref[...], preferred_element_type=jnp.float32) + lb_ref[...]
        o_ref[...] = jnp.tanh(y)

    return kernel


def make_forward(hidden_feats, out_feats, n_nodes):
    cfg = layer_config(hidden_feats)
    layer_ks = tuple(k for _, _, k in cfg)
    layer_is_res = tuple((i % 4) == 3 for i in range(len(cfg)))
    cmax = max(hidden_feats)
    kernel = make_resgcn_kernel(layer_ks, layer_is_res)

    @jax.jit
    def forward(x, packed):
        x_pad = jnp.zeros((n_nodes, cmax), jnp.float32).at[:, : x.shape[1]].set(x)
        out = pl.pallas_call(
            kernel,
            out_shape=jax.ShapeDtypeStruct((1, OUT_PAD), jnp.float32),
            in_specs=[_vmem_spec()] * 5,
            out_specs=_vmem_spec(),
        )(x_pad, packed["w"], packed["vec"], packed["lin_w"], packed["lin_b"])
        return out[:, :out_feats]

    return forward


# ----------------------------- params ----------------------------------------

def glorot(key, shape):
    fan_in, fan_out = shape[-2], shape[-1]
    limit = (6.0 / (fan_in + fan_out)) ** 0.5
    return jax.random.uniform(key, shape, jnp.float32, -limit, limit)


def init_params(key, hidden_feats, out_feats):
    """Logical (unpadded) parameters, matching the PyG module's initializers."""
    convs = []
    for (cin, cout, K) in layer_config(hidden_feats):
        key, kw = jax.random.split(key)
        convs.append(dict(
            w=glorot(kw, (K, cin, cout)),                 # ChebConv lins (glorot)
            b=jnp.zeros((1, cout), jnp.float32),          # ChebConv bias init zeros
            gn_w=jnp.ones((1, cout), jnp.float32),        # GraphNorm weight = 1
            gn_b=jnp.zeros((1, cout), jnp.float32),       # GraphNorm bias = 0
            gn_ms=jnp.ones((1, cout), jnp.float32),       # GraphNorm mean_scale = 1
        ))
    key, kw, kb = jax.random.split(key, 3)
    h0 = hidden_feats[0]
    lim = (1.0 / h0) ** 0.5
    lin_w = jax.random.uniform(kw, (h0, out_feats), jnp.float32, -lim, lim)
    lin_b = jax.random.uniform(kb, (1, out_feats), jnp.float32, -lim, lim)
    return dict(convs=convs, lin_w=lin_w, lin_b=lin_b)


def pack_params(params, hidden_feats):
    """Zero-pad & stack per-layer params into a few contiguous arrays for the kernel."""
    cmax = max(hidden_feats)
    convs = params["convs"]
    n_layers = len(convs)
    w_all = []
    vec = jnp.zeros((n_layers, VEC_ROWS, cmax), jnp.float32)
    for l, p in enumerate(convs):
        k, cin, cout = p["w"].shape
        w_all.append(jnp.zeros((KMAX, cmax, cmax), jnp.float32)
                     .at[:k, :cin, :cout].set(p["w"]))
        vec = vec.at[l, 0, :cout].set(p["b"][0])
        vec = vec.at[l, 1, :cout].set(p["gn_w"][0])
        vec = vec.at[l, 2, :cout].set(p["gn_b"][0])
        vec = vec.at[l, 3, :cout].set(p["gn_ms"][0])
    h0 = hidden_feats[0]
    out_feats = params["lin_w"].shape[1]
    return dict(
        w=jnp.concatenate(w_all, axis=0),          # (KMAX*16, 32, 32) ~192 KiB
        vec=vec,                                   # (16, 8, 32)       ~16 KiB
        lin_w=jnp.zeros((cmax, OUT_PAD), jnp.float32).at[:h0, :out_feats].set(params["lin_w"]),
        lin_b=jnp.zeros((1, OUT_PAD), jnp.float32).at[:, :out_feats].set(params["lin_b"]),
    )


# ----------------------------- pure-JAX reference ----------------------------

def build_m(n):
    """Dense scaled-Laplacian operator for the directed path graph 0->1->...->n-1."""
    m = jnp.zeros((n, n), jnp.float32)
    rows = jnp.arange(1, n - 1)
    m = m.at[rows, rows - 1].set(-1.0)
    return m


def _cheb_ref(m, x, w, b):
    K = w.shape[0]
    tx0, out = x, x @ w[0]
    if K >= 2:
        tx1 = m @ x
        out = out + tx1 @ w[1]
        for k in range(2, K):
            tx2 = 2.0 * (m @ tx1) - tx0
            out = out + tx2 @ w[k]
            tx0, tx1 = tx1, tx2
    return out + b


def resgcn_reference(x, params):
    n = x.shape[0]
    m = build_m(n)
    convs = params["convs"]

    def gn_lrelu(p, h):
        o = _cheb_ref(m, h, p["w"], p["b"])
        mean = jnp.mean(o, axis=0, keepdims=True)
        cen = o - mean * p["gn_ms"]
        var = jnp.mean(cen * cen, axis=0, keepdims=True)
        y = p["gn_w"] * cen / jnp.sqrt(var + EPS) + p["gn_b"]
        return jnp.where(y >= 0, y, NEG_SLOPE * y)

    h = x
    for blk in range(4):
        a, b_, c, d = convs[4 * blk: 4 * blk + 4]
        h = gn_lrelu(a, h)
        h = gn_lrelu(b_, h)
        h = gn_lrelu(c, h)
        h = jnp.maximum(_cheb_ref(m, h, d["w"], d["b"]) + x, 0.0)
    pooled = jnp.mean(h, axis=0, keepdims=True)
    return jnp.tanh(pooled @ params["lin_w"] + params["lin_b"])


# ----------------------------- main -------------------------------------------

if __name__ == "__main__":
    hidden_feats = (8, 16, 32)
    out_feats = 4
    n_nodes = hidden_feats[0]   # torch forward requires num_nodes == hidden_feats[0]

    key = jax.random.PRNGKey(0)
    key, kx = jax.random.split(key)
    x = jax.random.normal(kx, (n_nodes, hidden_feats[0]), jnp.float32)
    params = init_params(key, hidden_feats, out_feats)
    packed = pack_params(params, hidden_feats)

    forward = make_forward(hidden_feats, out_feats, n_nodes)
    out = jax.block_until_ready(forward(x, packed))
    ref = resgcn_reference(x, params)

    assert out.shape == (1, out_feats)
    assert jnp.allclose(out, ref, atol=1e-4, rtol=1e-4), (out, ref)
    print("KERNEL_OK")
</pallas_src>

<mosaic_0001>
module attributes {stable_mosaic.version = 11 : i64} {
  func.func @kernel(%arg0: memref<8x32xf32, #tpu.memory_space<vmem>>, %arg1: memref<48x32x32xf32, #tpu.memory_space<vmem>>, %arg2: memref<16x8x32xf32, #tpu.memory_space<vmem>>, %arg3: memref<32x128xf32, #tpu.memory_space<vmem>>, %arg4: memref<1x128xf32, #tpu.memory_space<vmem>>, %arg5: memref<1x128xf32, #tpu.memory_space<vmem>>) attributes {dimension_semantics = [], scalar_prefetch = 0 : i64, scratch_operands = 0 : i64, tpu.core_type = #tpu.core_type<tc>} {
    %0 = tpu.iota {dimensions = array<i32: 0>} : vector<8x32xi32>
    %c1_i32 = arith.constant 1 : i32
    %1 = vector.broadcast %c1_i32 : i32 to vector<8x32xi32>
    %2 = arith.cmpi sge, %0, %1 : vector<8x32xi32>
    %c6_i32 = arith.constant 6 : i32
    %3 = vector.broadcast %c6_i32 : i32 to vector<8x32xi32>
    %4 = arith.cmpi sle, %0, %3 : vector<8x32xi32>
    %5 = arith.andi %2, %4 : vector<8x32xi1>
    %c0 = arith.constant 0 : index
    %c0_0 = arith.constant 0 : index
    %6 = vector.load %arg0[%c0, %c0_0] : memref<8x32xf32, #tpu.memory_space<vmem>>, vector<8x32xf32>
    %c0_1 = arith.constant 0 : index
    %c0_2 = arith.constant 0 : index
    %c0_3 = arith.constant 0 : index
    %7 = vector.load %arg2[%c0_1, %c0_2, %c0_3] : memref<16x8x32xf32, #tpu.memory_space<vmem>>, vector<1x8x32xf32>
    %8 = vector.shape_cast %7 : vector<1x8x32xf32> to vector<8x32xf32>
    %c0_4 = arith.constant 0 : index
    %c0_5 = arith.constant 0 : index
    %c0_6 = arith.constant 0 : index
    %9 = vector.load %arg1[%c0_4, %c0_5, %c0_6] : memref<48x32x32xf32, #tpu.memory_space<vmem>>, vector<1x32x32xf32>
    %10 = vector.shape_cast %9 : vector<1x32x32xf32> to vector<32x32xf32>
    %cst = arith.constant dense<0.000000e+00> : vector<8x32xf32>
    %11 = tpu.matmul %6, %10, %cst {dimension_numbers = #tpu.dot_dimension_numbers<[1], [0], [0], [1], [0, 0, 1, 1], [], []>} : vector<8x32xf32>, vector<32x32xf32>, vector<8x32xf32> -> vector<8x32xf32>
    %c1_i32_7 = arith.constant 1 : i32
    %12 = tpu.dynamic_rotate %6 by %c1_i32_7 dim 0 : vector<8x32xf32>, i32 -> vector<8x32xf32>
    %cst_8 = arith.constant 0.000000e+00 : f32
    %13 = vector.broadcast %cst_8 : f32 to vector<8x32xf32>
    %14 = arith.subf %13, %12 : vector<8x32xf32>
    %cst_9 = arith.constant 0.000000e+00 : f32
    %15 = vector.broadcast %cst_9 : f32 to vector<8x32xf32>
    %16 = arith.select %5, %14, %15 : vector<8x32xi1>, vector<8x32xf32>
    %c1 = arith.constant 1 : index
    %c0_10 = arith.constant 0 : index
    %c0_11 = arith.constant 0 : index
    %17 = vector.load %arg1[%c1, %c0_10, %c0_11] : memref<48x32x32xf32, #tpu.memory_space<vmem>>, vector<1x32x32xf32>
    %18 = vector.shape_cast %17 : vector<1x32x32xf32> to vector<32x32xf32>
    %cst_12 = arith.constant dense<0.000000e+00> : vector<8x32xf32>
    %19 = tpu.matmul %16, %18, %cst_12 {dimension_numbers = #tpu.dot_dimension_numbers<[1], [0], [0], [1], [0, 0, 1, 1], [], []>} : vector<8x32xf32>, vector<32x32xf32>, vector<8x32xf32> -> vector<8x32xf32>
    %20 = arith.addf %11, %19 : vector<8x32xf32>
    %21 = vector.extract_strided_slice %8 {offsets = [0, 0], sizes = [1, 32], strides = [1, 1]} : vector<8x32xf32> to vector<1x32xf32>
    %22 = vector.broadcast %21 : vector<1x32xf32> to vector<8x32xf32>
    %23 = arith.addf %20, %22 : vector<8x32xf32>
    %cst_13 = arith.constant dense<0.000000e+00> : vector<32xf32>
    %24 = vector.multi_reduction <add>, %23, %cst_13 [0] : vector<8x32xf32> to vector<32xf32>
    %25 = vector.shape_cast %24 : vector<32xf32> to vector<1x32xf32>
    %cst_14 = arith.constant 8.000000e+00 : f32
    %26 = vector.broadcast %cst_14 : f32 to vector<1x32xf32>
    %27 = arith.divf %25, %26 : vector<1x32xf32>
    %28 = vector.extract_strided_slice %8 {offsets = [3, 0], sizes = [1, 32], strides = [1, 1]} : vector<8x32xf32> to vector<1x32xf32>
    %29 = arith.mulf %27, %28 : vector<1x32xf32>
    %30 = vector.broadcast %29 : vector<1x32xf32> to vector<8x32xf32>
    %31 = arith.subf %23, %30 : vector<8x32xf32>
    %32 = arith.mulf %31, %31 : vector<8x32xf32>
    %cst_15 = arith.constant dense<0.000000e+00> : vector<32xf32>
    %33 = vector.multi_reduction <add>, %32, %cst_15 [0] : vector<8x32xf32> to vector<32xf32>
    %34 = vector.shape_cast %33 : vector<32xf32> to vector<1x32xf32>
    %cst_16 = arith.constant 8.000000e+00 : f32
    %35 = vector.broadcast %cst_16 : f32 to vector<1x32xf32>
    %36 = arith.divf %34, %35 : vector<1x32xf32>
    %37 = vector.extract_strided_slice %8 {offsets = [1, 0], sizes = [1, 32], strides = [1, 1]} : vector<8x32xf32> to vector<1x32xf32>
    %38 = vector.broadcast %37 : vector<1x32xf32> to vector<8x32xf32>
    %39 = arith.mulf %38, %31 : vector<8x32xf32>
    %cst_17 = arith.constant 9.99999974E-6 : f32
    %40 = vector.broadcast %cst_17 : f32 to vector<1x32xf32>
    %41 = arith.addf %36, %40 : vector<1x32xf32>
    %42 = math.rsqrt %41 : vector<1x32xf32>
    %43 = vector.broadcast %42 : vector<1x32xf32> to vector<8x32xf32>
    %44 = arith.mulf %39, %43 : vector<8x32xf32>
    %45 = vector.extract_strided_slice %8 {offsets = [2, 0], sizes = [1, 32], strides = [1, 1]} : vector<8x32xf32> to vector<1x32xf32>
    %46 = vector.broadcast %45 : vector<1x32xf32> to vector<8x32xf32>
    %47 = arith.addf %44, %46 : vector<8x32xf32>
    %cst_18 = arith.constant 0.000000e+00 : f32
    %48 = vector.broadcast %cst_18 : f32 to vector<8x32xf32>
    %49 = arith.cmpf oge, %47, %48 : vector<8x32xf32>
    %cst_19 = arith.constant 2.000000e-01 : f32
    %50 = vector.broadcast %cst_19 : f32 to vector<8x32xf32>
    %51 = arith.mulf %50, %47 : vector<8x32xf32>
    %52 = arith.select %49, %47, %51 : vector<8x32xi1>, vector<8x32xf32>
    %c1_20 = arith.constant 1 : index
    %c0_21 = arith.constant 0 : index
    %c0_22 = arith.constant 0 : index
    %53 = vector.load %arg2[%c1_20, %c0_21, %c0_22] : memref<16x8x32xf32, #tpu.memory_space<vmem>>, vector<1x8x32xf32>
    %54 = vector.shape_cast %53 : vector<1x8x32xf32> to vector<8x32xf32>
    %c3 = arith.constant 3 : index
    %c0_23 = arith.constant 0 : index
    %c0_24 = arith.constant 0 : index
    %55 = vector.load %arg1[%c3, %c0_23, %c0_24] : memref<48x32x32xf32, #tpu.memory_space<vmem>>, vector<1x32x32xf32>
    %56 = vector.shape_cast %55 : vector<1x32x32xf32> to vector<32x32xf32>
    %cst_25 = arith.constant dense<0.000000e+00> : vector<8x32xf32>
    %57 = tpu.matmul %52, %56, %cst_25 {dimension_numbers = #tpu.dot_dimension_numbers<[1], [0], [0], [1], [0, 0, 1, 1], [], []>} : vector<8x32xf32>, vector<32x32xf32>, vector<8x32xf32> -> vector<8x32xf32>
    %c1_i32_26 = arith.constant 1 : i32
    %58 = tpu.dynamic_rotate %52 by %c1_i32_26 dim 0 : vector<8x32xf32>, i32 -> vector<8x32xf32>
    %cst_27 = arith.constant 0.000000e+00 : f32
    %59 = vector.broadcast %cst_27 : f32 to vector<8x32xf32>
    %60 = arith.subf %59, %58 : vector<8x32xf32>
    %cst_28 = arith.constant 0.000000e+00 : f32
    %61 = vector.broadcast %cst_28 : f32 to vector<8x32xf32>
    %62 = arith.select %5, %60, %61 : vector<8x32xi1>, vector<8x32xf32>
    %c4 = arith.constant 4 : index
    %c0_29 = arith.constant 0 : index
    %c0_30 = arith.constant 0 : index
    %63 = vector.load %arg1[%c4, %c0_29, %c0_30] : memref<48x32x32xf32, #tpu.memory_space<vmem>>, vector<1x32x32xf32>
    %64 = vector.shape_cast %63 : vector<1x32x32xf32> to vector<32x32xf32>
    %cst_31 = arith.constant dense<0.000000e+00> : vector<8x32xf32>
    %65 = tpu.matmul %62, %64, %cst_31 {dimension_numbers = #tpu.dot_dimension_numbers<[1], [0], [0], [1], [0, 0, 1, 1], [], []>} : vector<8x32xf32>, vector<32x32xf32>, vector<8x32xf32> -> vector<8x32xf32>
    %66 = arith.addf %57, %65 : vector<8x32xf32>
    %c1_i32_32 = arith.constant 1 : i32
    %67 = tpu.dynamic_rotate %62 by %c1_i32_32 dim 0 : vector<8x32xf32>, i32 -> vector<8x32xf32>
    %cst_33 = arith.constant 0.000000e+00 : f32
    %68 = vector.broadcast %cst_33 : f32 to vector<8x32xf32>
    %69 = arith.subf %68, %67 : vector<8x32xf32>
    %cst_34 = arith.constant 0.000000e+00 : f32
    %70 = vector.broadcast %cst_34 : f32 to vector<8x32xf32>
    %71 = arith.select %5, %69, %70 : vector<8x32xi1>, vector<8x32xf32>
    %cst_35 = arith.constant 2.000000e+00 : f32
    %72 = vector.broadcast %cst_35 : f32 to vector<8x32xf32>
    %73 = arith.mulf %72, %71 : vector<8x32xf32>
    %74 = arith.subf %73, %52 : vector<8x32xf32>
    %c5 = arith.constant 5 : index
    %c0_36 = arith.constant 0 : index
    %c0_37 = arith.constant 0 : index
    %75 = vector.load %arg1[%c5, %c0_36, %c0_37] : memref<48x32x32xf32, #tpu.memory_space<vmem>>, vector<1x32x32xf32>
    %76 = vector.shape_cast %75 : vector<1x32x32xf32> to vector<32x32xf32>
    %cst_38 = arith.constant dense<0.000000e+00> : vector<8x32xf32>
    %77 = tpu.matmul %74, %76, %cst_38 {dimension_numbers = #tpu.dot_dimension_numbers<[1], [0], [0], [1], [0, 0, 1, 1], [], []>} : vector<8x32xf32>, vector<32x32xf32>, vector<8x32xf32> -> vector<8x32xf32>
    %78 = arith.addf %66, %77 : vector<8x32xf32>
    %79 = vector.extract_strided_slice %54 {offsets = [0, 0], sizes = [1, 32], strides = [1, 1]} : vector<8x32xf32> to vector<1x32xf32>
    %80 = vector.broadcast %79 : vector<1x32xf32> to vector<8x32xf32>
    %81 = arith.addf %78, %80 : vector<8x32xf32>
    %cst_39 = arith.constant dense<0.000000e+00> : vector<32xf32>
    %82 = vector.multi_reduction <add>, %81, %cst_39 [0] : vector<8x32xf32> to vector<32xf32>
    %83 = vector.shape_cast %82 : vector<32xf32> to vector<1x32xf32>
    %cst_40 = arith.constant 8.000000e+00 : f32
    %84 = vector.broadcast %cst_40 : f32 to vector<1x32xf32>
    %85 = arith.divf %83, %84 : vector<1x32xf32>
    %86 = vector.extract_strided_slice %54 {offsets = [3, 0], sizes = [1, 32], strides = [1, 1]} : vector<8x32xf32> to vector<1x32xf32>
    %87 = arith.mulf %85, %86 : vector<1x32xf32>
    %88 = vector.broadcast %87 : vector<1x32xf32> to vector<8x32xf32>
    %89 = arith.subf %81, %88 : vector<8x32xf32>
    %90 = arith.mulf %89, %89 : vector<8x32xf32>
    %cst_41 = arith.constant dense<0.000000e+00> : vector<32xf32>
    %91 = vector.multi_reduction <add>, %90, %cst_41 [0] : vector<8x32xf32> to vector<32xf32>
    %92 = vector.shape_cast %91 : vector<32xf32> to vector<1x32xf32>
    %cst_42 = arith.constant 8.000000e+00 : f32
    %93 = vector.broadcast %cst_42 : f32 to vector<1x32xf32>
    %94 = arith.divf %92, %93 : vector<1x32xf32>
    %95 = vector.extract_strided_slice %54 {offsets = [1, 0], sizes = [1, 32], strides = [1, 1]} : vector<8x32xf32> to vector<1x32xf32>
    %96 = vector.broadcast %95 : vector<1x32xf32> to vector<8x32xf32>
    %97 = arith.mulf %96, %89 : vector<8x32xf32>
    %cst_43 = arith.constant 9.99999974E-6 : f32
    %98 = vector.broadcast %cst_43 : f32 to vector<1x32xf32>
    %99 = arith.addf %94, %98 : vector<1x32xf32>
    %100 = math.rsqrt %99 : vector<1x32xf32>
    %101 = vector.broadcast %100 : vector<1x32xf32> to vector<8x32xf32>
    %102 = arith.mulf %97, %101 : vector<8x32xf32>
    %103 = vector.extract_strided_slice %54 {offsets = [2, 0], sizes = [1, 32], strides = [1, 1]} : vector<8x32xf32> to vector<1x32xf32>
    %104 = vector.broadcast %103 : vector<1x32xf32> to vector<8x32xf32>
    %105 = arith.addf %102, %104 : vector<8x32xf32>
    %cst_44 = arith.constant 0.000000e+00 : f32
    %106 = vector.broadcast %cst_44 : f32 to vector<8x32xf32>
    %107 = arith.cmpf oge, %105, %106 : vector<8x32xf32>
    %cst_45 = arith.constant 2.000000e-01 : f32
    %108 = vector.broadcast %cst_45 : f32 to vector<8x32xf32>
    %109 = arith.mulf %108, %105 : vector<8x32xf32>
    %110 = arith.select %107, %105, %109 : vector<8x32xi1>, vector<8x32xf32>
    %c2 = arith.constant 2 : index
    %c0_46 = arith.constant 0 : index
    %c0_47 = arith.constant 0 : index
    %111 = vector.load %arg2[%c2, %c0_46, %c0_47] : memref<16x8x32xf32, #tpu.memory_space<vmem>>, vector<1x8x32xf32>
    %112 = vector.shape_cast %111 : vector<1x8x32xf32> to vector<8x32xf32>
    %c6 = arith.constant 6 : index
    %c0_48 = arith.constant 0 : index
    %c0_49 = arith.constant 0 : index
    %113 = vector.load %arg1[%c6, %c0_48, %c0_49] : memref<48x32x32xf32, #tpu.memory_space<vmem>>, vector<1x32x32xf32>
    %114 = vector.shape_cast %113 : vector<1x32x32xf32> to vector<32x32xf32>
    %cst_50 = arith.constant dense<0.000000e+00> : vector<8x32xf32>
    %115 = tpu.matmul %110, %114, %cst_50 {dimension_numbers = #tpu.dot_dimension_numbers<[1], [0], [0], [1], [0, 0, 1, 1], [], []>} : vector<8x32xf32>, vector<32x32xf32>, vector<8x32xf32> -> vector<8x32xf32>
    %c1_i32_51 = arith.constant 1 : i32
    %116 = tpu.dynamic_rotate %110 by %c1_i32_51 dim 0 : vector<8x32xf32>, i32 -> vector<8x32xf32>
    %cst_52 = arith.constant 0.000000e+00 : f32
    %117 = vector.broadcast %cst_52 : f32 to vector<8x32xf32>
    %118 = arith.subf %117, %116 : vector<8x32xf32>
    %cst_53 = arith.constant 0.000000e+00 : f32
    %119 = vector.broadcast %cst_53 : f32 to vector<8x32xf32>
    %120 = arith.select %5, %118, %119 : vector<8x32xi1>, vector<8x32xf32>
    %c7 = arith.constant 7 : index
    %c0_54 = arith.constant 0 : index
    %c0_55 = arith.constant 0 : index
    %121 = vector.load %arg1[%c7, %c0_54, %c0_55] : memref<48x32x32xf32, #tpu.memory_space<vmem>>, vector<1x32x32xf32>
    %122 = vector.shape_cast %121 : vector<1x32x32xf32> to vector<32x32xf32>
    %cst_56 = arith.constant dense<0.000000e+00> : vector<8x32xf32>
    %123 = tpu.matmul %120, %122, %cst_56 {dimension_numbers = #tpu.dot_dimension_numbers<[1], [0], [0], [1], [0, 0, 1, 1], [], []>} : vector<8x32xf32>, vector<32x32xf32>, vector<8x32xf32> -> vector<8x32xf32>
    %124 = arith.addf %115, %123 : vector<8x32xf32>
    %c1_i32_57 = arith.constant 1 : i32
    %125 = tpu.dynamic_rotate %120 by %c1_i32_57 dim 0 : vector<8x32xf32>, i32 -> vector<8x32xf32>
    %cst_58 = arith.constant 0.000000e+00 : f32
    %126 = vector.broadcast %cst_58 : f32 to vector<8x32xf32>
    %127 = arith.subf %126, %125 : vector<8x32xf32>
    %cst_59 = arith.constant 0.000000e+00 : f32
    %128 = vector.broadcast %cst_59 : f32 to vector<8x32xf32>
    %129 = arith.select %5, %127, %128 : vector<8x32xi1>, vector<8x32xf32>
    %cst_60 = arith.constant 2.000000e+00 : f32
    %130 = vector.broadcast %cst_60 : f32 to vector<8x32xf32>
    %131 = arith.mulf %130, %129 : vector<8x32xf32>
    %132 = arith.subf %131, %110 : vector<8x32xf32>
    %c8 = arith.constant 8 : index
    %c0_61 = arith.constant 0 : index
    %c0_62 = arith.constant 0 : index
    %133 = vector.load %arg1[%c8, %c0_61, %c0_62] : memref<48x32x32xf32, #tpu.memory_space<vmem>>, vector<1x32x32xf32>
    %134 = vector.shape_cast %133 : vector<1x32x32xf32> to vector<32x32xf32>
    %cst_63 = arith.constant dense<0.000000e+00> : vector<8x32xf32>
    %135 = tpu.matmul %132, %134, %cst_63 {dimension_numbers = #tpu.dot_dimension_numbers<[1], [0], [0], [1], [0, 0, 1, 1], [], []>} : vector<8x32xf32>, vector<32x32xf32>, vector<8x32xf32> -> vector<8x32xf32>
    %136 = arith.addf %124, %135 : vector<8x32xf32>
    %137 = vector.extract_strided_slice %112 {offsets = [0, 0], sizes = [1, 32], strides = [1, 1]} : vector<8x32xf32> to vector<1x32xf32>
    %138 = vector.broadcast %137 : vector<1x32xf32> to vector<8x32xf32>
    %139 = arith.addf %136, %138 : vector<8x32xf32>
    %cst_64 = arith.constant dense<0.000000e+00> : vector<32xf32>
    %140 = vector.multi_reduction <add>, %139, %cst_64 [0] : vector<8x32xf32> to vector<32xf32>
    %141 = vector.shape_cast %140 : vector<32xf32> to vector<1x32xf32>
    %cst_65 = arith.constant 8.000000e+00 : f32
    %142 = vector.broadcast %cst_65 : f32 to vector<1x32xf32>
    %143 = arith.divf %141, %142 : vector<1x32xf32>
    %144 = vector.extract_strided_slice %112 {offsets = [3, 0], sizes = [1, 32], strides = [1, 1]} : vector<8x32xf32> to vector<1x32xf32>
    %145 = arith.mulf %143, %144 : vector<1x32xf32>
    %146 = vector.broadcast %145 : vector<1x32xf32> to vector<8x32xf32>
    %147 = arith.subf %139, %146 : vector<8x32xf32>
    %148 = arith.mulf %147, %147 : vector<8x32xf32>
    %cst_66 = arith.constant dense<0.000000e+00> : vector<32xf32>
    %149 = vector.multi_reduction <add>, %148, %cst_66 [0] : vector<8x32xf32> to vector<32xf32>
    %150 = vector.shape_cast %149 : vector<32xf32> to vector<1x32xf32>
    %cst_67 = arith.constant 8.000000e+00 : f32
    %151 = vector.broadcast %cst_67 : f32 to vector<1x32xf32>
    %152 = arith.divf %150, %151 : vector<1x32xf32>
    %153 = vector.extract_strided_slice %112 {offsets = [1, 0], sizes = [1, 32], strides = [1, 1]} : vector<8x32xf32> to vector<1x32xf32>
    %154 = vector.broadcast %153 : vector<1x32xf32> to vector<8x32xf32>
    %155 = arith.mulf %154, %147 : vector<8x32xf32>
    %cst_68 = arith.constant 9.99999974E-6 : f32
    %156 = vector.broadcast %cst_68 : f32 to vector<1x32xf32>
    %157 = arith.addf %152, %156 : vector<1x32xf32>
    %158 = math.rsqrt %157 : vector<1x32xf32>
    %159 = vector.broadcast %158 : vector<1x32xf32> to vector<8x32xf32>
    %160 = arith.mulf %155, %159 : vector<8x32xf32>
    %161 = vector.extract_strided_slice %112 {offsets = [2, 0], sizes = [1, 32], strides = [1, 1]} : vector<8x32xf32> to vector<1x32xf32>
    %162 = vector.broadcast %161 : vector<1x32xf32> to vector<8x32xf32>
    %163 = arith.addf %160, %162 : vector<8x32xf32>
    %cst_69 = arith.constant 0.000000e+00 : f32
    %164 = vector.broadcast %cst_69 : f32 to vector<8x32xf32>
    %165 = arith.cmpf oge, %163, %164 : vector<8x32xf32>
    %cst_70 = arith.constant 2.000000e-01 : f32
    %166 = vector.broadcast %cst_70 : f32 to vector<8x32xf32>
    %167 = arith.mulf %166, %163 : vector<8x32xf32>
    %168 = arith.select %165, %163, %167 : vector<8x32xi1>, vector<8x32xf32>
    %c3_71 = arith.constant 3 : index
    %c0_72 = arith.constant 0 : index
    %c0_73 = arith.constant 0 : index
    %169 = vector.load %arg2[%c3_71, %c0_72, %c0_73] : memref<16x8x32xf32, #tpu.memory_space<vmem>>, vector<1x8x32xf32>
    %170 = vector.shape_cast %169 : vector<1x8x32xf32> to vector<8x32xf32>
    %c9 = arith.constant 9 : index
    %c0_74 = arith.constant 0 : index
    %c0_75 = arith.constant 0 : index
    %171 = vector.load %arg1[%c9, %c0_74, %c0_75] : memref<48x32x32xf32, #tpu.memory_space<vmem>>, vector<1x32x32xf32>
    %172 = vector.shape_cast %171 : vector<1x32x32xf32> to vector<32x32xf32>
    %cst_76 = arith.constant dense<0.000000e+00> : vector<8x32xf32>
    %173 = tpu.matmul %168, %172, %cst_76 {dimension_numbers = #tpu.dot_dimension_numbers<[1], [0], [0], [1], [0, 0, 1, 1], [], []>} : vector<8x32xf32>, vector<32x32xf32>, vector<8x32xf32> -> vector<8x32xf32>
    %c1_i32_77 = arith.constant 1 : i32
    %174 = tpu.dynamic_rotate %168 by %c1_i32_77 dim 0 : vector<8x32xf32>, i32 -> vector<8x32xf32>
    %cst_78 = arith.constant 0.000000e+00 : f32
    %175 = vector.broadcast %cst_78 : f32 to vector<8x32xf32>
    %176 = arith.subf %175, %174 : vector<8x32xf32>
    %cst_79 = arith.constant 0.000000e+00 : f32
    %177 = vector.broadcast %cst_79 : f32 to vector<8x32xf32>
    %178 = arith.select %5, %176, %177 : vector<8x32xi1>, vector<8x32xf32>
    %c10 = arith.constant 10 : index
    %c0_80 = arith.constant 0 : index
    %c0_81 = arith.constant 0 : index
    %179 = vector.load %arg1[%c10, %c0_80, %c0_81] : memref<48x32x32xf32, #tpu.memory_space<vmem>>, vector<1x32x32xf32>
    %180 = vector.shape_cast %179 : vector<1x32x32xf32> to vector<32x32xf32>
    %cst_82 = arith.constant dense<0.000000e+00> : vector<8x32xf32>
    %181 = tpu.matmul %178, %180, %cst_82 {dimension_numbers = #tpu.dot_dimension_numbers<[1], [0], [0], [1], [0, 0, 1, 1], [], []>} : vector<8x32xf32>, vector<32x32xf32>, vector<8x32xf32> -> vector<8x32xf32>
    %182 = arith.addf %173, %181 : vector<8x32xf32>
    %183 = vector.extract_strided_slice %170 {offsets = [0, 0], sizes = [1, 32], strides = [1, 1]} : vector<8x32xf32> to vector<1x32xf32>
    %184 = vector.broadcast %183 : vector<1x32xf32> to vector<8x32xf32>
    %185 = arith.addf %182, %184 : vector<8x32xf32>
    %186 = arith.addf %185, %6 : vector<8x32xf32>
    %cst_83 = arith.constant 0.000000e+00 : f32
    %187 = vector.broadcast %cst_83 : f32 to vector<8x32xf32>
    %188 = arith.maximumf %186, %187 : vector<8x32xf32>
    %c4_84 = arith.constant 4 : index
    %c0_85 = arith.constant 0 : index
    %c0_86 = arith.constant 0 : index
    %189 = vector.load %arg2[%c4_84, %c0_85, %c0_86] : memref<16x8x32xf32, #tpu.memory_space<vmem>>, vector<1x8x32xf32>
    %190 = vector.shape_cast %189 : vector<1x8x32xf32> to vector<8x32xf32>
    %c12 = arith.constant 12 : index
    %c0_87 = arith.constant 0 : index
    %c0_88 = arith.constant 0 : index
    %191 = vector.load %arg1[%c12, %c0_87, %c0_88] : memref<48x32x32xf32, #tpu.memory_space<vmem>>, vector<1x32x32xf32>
    %192 = vector.shape_cast %191 : vector<1x32x32xf32> to vector<32x32xf32>
    %cst_89 = arith.constant dense<0.000000e+00> : vector<8x32xf32>
    %193 = tpu.matmul %188, %192, %cst_89 {dimension_numbers = #tpu.dot_dimension_numbers<[1], [0], [0], [1], [0, 0, 1, 1], [], []>} : vector<8x32xf32>, vector<32x32xf32>, vector<8x32xf32> -> vector<8x32xf32>
    %c1_i32_90 = arith.constant 1 : i32
    %194 = tpu.dynamic_rotate %188 by %c1_i32_90 dim 0 : vector<8x32xf32>, i32 -> vector<8x32xf32>
    %cst_91 = arith.constant 0.000000e+00 : f32
    %195 = vector.broadcast %cst_91 : f32 to vector<8x32xf32>
    %196 = arith.subf %195, %194 : vector<8x32xf32>
    %cst_92 = arith.constant 0.000000e+00 : f32
    %197 = vector.broadcast %cst_92 : f32 to vector<8x32xf32>
    %198 = arith.select %5, %196, %197 : vector<8x32xi1>, vector<8x32xf32>
    %c13 = arith.constant 13 : index
    %c0_93 = arith.constant 0 : index
    %c0_94 = arith.constant 0 : index
    %199 = vector.load %arg1[%c13, %c0_93, %c0_94] : memref<48x32x32xf32, #tpu.memory_space<vmem>>, vector<1x32x32xf32>
    %200 = vector.shape_cast %199 : vector<1x32x32xf32> to vector<32x32xf32>
    %cst_95 = arith.constant dense<0.000000e+00> : vector<8x32xf32>
    %201 = tpu.matmul %198, %200, %cst_95 {dimension_numbers = #tpu.dot_dimension_numbers<[1], [0], [0], [1], [0, 0, 1, 1], [], []>} : vector<8x32xf32>, vector<32x32xf32>, vector<8x32xf32> -> vector<8x32xf32>
    %202 = arith.addf %193, %201 : vector<8x32xf32>
    %203 = vector.extract_strided_slice %190 {offsets = [0, 0], sizes = [1, 32], strides = [1, 1]} : vector<8x32xf32> to vector<1x32xf32>
    %204 = vector.broadcast %203 : vector<1x32xf32> to vector<8x32xf32>
    %205 = arith.addf %202, %204 : vector<8x32xf32>
    %cst_96 = arith.constant dense<0.000000e+00> : vector<32xf32>
    %206 = vector.multi_reduction <add>, %205, %cst_96 [0] : vector<8x32xf32> to vector<32xf32>
    %207 = vector.shape_cast %206 : vector<32xf32> to vector<1x32xf32>
    %cst_97 = arith.constant 8.000000e+00 : f32
    %208 = vector.broadcast %cst_97 : f32 to vector<1x32xf32>
    %209 = arith.divf %207, %208 : vector<1x32xf32>
    %210 = vector.extract_strided_slice %190 {offsets = [3, 0], sizes = [1, 32], strides = [1, 1]} : vector<8x32xf32> to vector<1x32xf32>
    %211 = arith.mulf %209, %210 : vector<1x32xf32>
    %212 = vector.broadcast %211 : vector<1x32xf32> to vector<8x32xf32>
    %213 = arith.subf %205, %212 : vector<8x32xf32>
    %214 = arith.mulf %213, %213 : vector<8x32xf32>
    %cst_98 = arith.constant dense<0.000000e+00> : vector<32xf32>
    %215 = vector.multi_reduction <add>, %214, %cst_98 [0] : vector<8x32xf32> to vector<32xf32>
    %216 = vector.shape_cast %215 : vector<32xf32> to vector<1x32xf32>
    %cst_99 = arith.constant 8.000000e+00 : f32
    %217 = vector.broadcast %cst_99 : f32 to vector<1x32xf32>
    %218 = arith.divf %216, %217 : vector<1x32xf32>
    %219 = vector.extract_strided_slice %190 {offsets = [1, 0], sizes = [1, 32], strides = [1, 1]} : vector<8x32xf32> to vector<1x32xf32>
    %220 = vector.broadcast %219 : vector<1x32xf32> to vector<8x32xf32>
    %221 = arith.mulf %220, %213 : vector<8x32xf32>
    %cst_100 = arith.constant 9.99999974E-6 : f32
    %222 = vector.broadcast %cst_100 : f32 to vector<1x32xf32>
    %223 = arith.addf %218, %222 : vector<1x32xf32>
    %224 = math.rsqrt %223 : vector<1x32xf32>
    %225 = vector.broadcast %224 : vector<1x32xf32> to vector<8x32xf32>
    %226 = arith.mulf %221, %225 : vector<8x32xf32>
    %227 = vector.extract_strided_slice %190 {offsets = [2, 0], sizes = [1, 32], strides = [1, 1]} : vector<8x32xf32> to vector<1x32xf32>
    %228 = vector.broadcast %227 : vector<1x32xf32> to vector<8x32xf32>
    %229 = arith.addf %226, %228 : vector<8x32xf32>
    %cst_101 = arith.constant 0.000000e+00 : f32
    %230 = vector.broadcast %cst_101 : f32 to vector<8x32xf32>
    %231 = arith.cmpf oge, %229, %230 : vector<8x32xf32>
    %cst_102 = arith.constant 2.000000e-01 : f32
    %232 = vector.broadcast %cst_102 : f32 to vector<8x32xf32>
    %233 = arith.mulf %232, %229 : vector<8x32xf32>
    %234 = arith.select %231, %229, %233 : vector<8x32xi1>, vector<8x32xf32>
    %c5_103 = arith.constant 5 : index
    %c0_104 = arith.constant 0 : index
    %c0_105 = arith.constant 0 : index
    %235 = vector.load %arg2[%c5_103, %c0_104, %c0_105] : memref<16x8x32xf32, #tpu.memory_space<vmem>>, vector<1x8x32xf32>
    %236 = vector.shape_cast %235 : vector<1x8x32xf32> to vector<8x32xf32>
    %c15 = arith.constant 15 : index
    %c0_106 = arith.constant 0 : index
    %c0_107 = arith.constant 0 : index
    %237 = vector.load %arg1[%c15, %c0_106, %c0_107] : memref<48x32x32xf32, #tpu.memory_space<vmem>>, vector<1x32x32xf32>
    %238 = vector.shape_cast %237 : vector<1x32x32xf32> to vector<32x32xf32>
    %cst_108 = arith.constant dense<0.000000e+00> : vector<8x32xf32>
    %239 = tpu.matmul %234, %238, %cst_108 {dimension_numbers = #tpu.dot_dimension_numbers<[1], [0], [0], [1], [0, 0, 1, 1], [], []>} : vector<8x32xf32>, vector<32x32xf32>, vector<8x32xf32> -> vector<8x32xf32>
    %c1_i32_109 = arith.constant 1 : i32
    %240 = tpu.dynamic_rotate %234 by %c1_i32_109 dim 0 : vector<8x32xf32>, i32 -> vector<8x32xf32>
    %cst_110 = arith.constant 0.000000e+00 : f32
    %241 = vector.broadcast %cst_110 : f32 to vector<8x32xf32>
    %242 = arith.subf %241, %240 : vector<8x32xf32>
    %cst_111 = arith.constant 0.000000e+00 : f32
    %243 = vector.broadcast %cst_111 : f32 to vector<8x32xf32>
    %244 = arith.select %5, %242, %243 : vector<8x32xi1>, vector<8x32xf32>
    %c16 = arith.constant 16 : index
    %c0_112 = arith.constant 0 : index
    %c0_113 = arith.constant 0 : index
    %245 = vector.load %arg1[%c16, %c0_112, %c0_113] : memref<48x32x32xf32, #tpu.memory_space<vmem>>, vector<1x32x32xf32>
    %246 = vector.shape_cast %245 : vector<1x32x32xf32> to vector<32x32xf32>
    %cst_114 = arith.constant dense<0.000000e+00> : vector<8x32xf32>
    %247 = tpu.matmul %244, %246, %cst_114 {dimension_numbers = #tpu.dot_dimension_numbers<[1], [0], [0], [1], [0, 0, 1, 1], [], []>} : vector<8x32xf32>, vector<32x32xf32>, vector<8x32xf32> -> vector<8x32xf32>
    %248 = arith.addf %239, %247 : vector<8x32xf32>
    %c1_i32_115 = arith.constant 1 : i32
    %249 = tpu.dynamic_rotate %244 by %c1_i32_115 dim 0 : vector<8x32xf32>, i32 -> vector<8x32xf32>
    %cst_116 = arith.constant 0.000000e+00 : f32
    %250 = vector.broadcast %cst_116 : f32 to vector<8x32xf32>
    %251 = arith.subf %250, %249 : vector<8x32xf32>
    %cst_117 = arith.constant 0.000000e+00 : f32
    %252 = vector.broadcast %cst_117 : f32 to vector<8x32xf32>
    %253 = arith.select %5, %251, %252 : vector<8x32xi1>, vector<8x32xf32>
    %cst_118 = arith.constant 2.000000e+00 : f32
    %254 = vector.broadcast %cst_118 : f32 to vector<8x32xf32>
    %255 = arith.mulf %254, %253 : vector<8x32xf32>
    %256 = arith.subf %255, %234 : vector<8x32xf32>
    %c17 = arith.constant 17 : index
    %c0_119 = arith.constant 0 : index
    %c0_120 = arith.constant 0 : index
    %257 = vector.load %arg1[%c17, %c0_119, %c0_120] : memref<48x32x32xf32, #tpu.memory_space<vmem>>, vector<1x32x32xf32>
    %258 = vector.shape_cast %257 : vector<1x32x32xf32> to vector<32x32xf32>
    %cst_121 = arith.constant dense<0.000000e+00> : vector<8x32xf32>
    %259 = tpu.matmul %256, %258, %cst_121 {dimension_numbers = #tpu.dot_dimension_numbers<[1], [0], [0], [1], [0, 0, 1, 1], [], []>} : vector<8x32xf32>, vector<32x32xf32>, vector<8x32xf32> -> vector<8x32xf32>
    %260 = arith.addf %248, %259 : vector<8x32xf32>
    %261 = vector.extract_strided_slice %236 {offsets = [0, 0], sizes = [1, 32], strides = [1, 1]} : vector<8x32xf32> to vector<1x32xf32>
    %262 = vector.broadcast %261 : vector<1x32xf32> to vector<8x32xf32>
    %263 = arith.addf %260, %262 : vector<8x32xf32>
    %cst_122 = arith.constant dense<0.000000e+00> : vector<32xf32>
    %264 = vector.multi_reduction <add>, %263, %cst_122 [0] : vector<8x32xf32> to vector<32xf32>
    %265 = vector.shape_cast %264 : vector<32xf32> to vector<1x32xf32>
    %cst_123 = arith.constant 8.000000e+00 : f32
    %266 = vector.broadcast %cst_123 : f32 to vector<1x32xf32>
    %267 = arith.divf %265, %266 : vector<1x32xf32>
    %268 = vector.extract_strided_slice %236 {offsets = [3, 0], sizes = [1, 32], strides = [1, 1]} : vector<8x32xf32> to vector<1x32xf32>
    %269 = arith.mulf %267, %268 : vector<1x32xf32>
    %270 = vector.broadcast %269 : vector<1x32xf32> to vector<8x32xf32>
    %271 = arith.subf %263, %270 : vector<8x32xf32>
    %272 = arith.mulf %271, %271 : vector<8x32xf32>
    %cst_124 = arith.constant dense<0.000000e+00> : vector<32xf32>
    %273 = vector.multi_reduction <add>, %272, %cst_124 [0] : vector<8x32xf32> to vector<32xf32>
    %274 = vector.shape_cast %273 : vector<32xf32> to vector<1x32xf32>
    %cst_125 = arith.constant 8.000000e+00 : f32
    %275 = vector.broadcast %cst_125 : f32 to vector<1x32xf32>
    %276 = arith.divf %274, %275 : vector<1x32xf32>
    %277 = vector.extract_strided_slice %236 {offsets = [1, 0], sizes = [1, 32], strides = [1, 1]} : vector<8x32xf32> to vector<1x32xf32>
    %278 = vector.broadcast %277 : vector<1x32xf32> to vector<8x32xf32>
    %279 = arith.mulf %278, %271 : vector<8x32xf32>
    %cst_126 = arith.constant 9.99999974E-6 : f32
    %280 = vector.broadcast %cst_126 : f32 to vector<1x32xf32>
    %281 = arith.addf %276, %280 : vector<1x32xf32>
    %282 = math.rsqrt %281 : vector<1x32xf32>
    %283 = vector.broadcast %282 : vector<1x32xf32> to vector<8x32xf32>
    %284 = arith.mulf %279, %283 : vector<8x32xf32>
    %285 = vector.extract_strided_slice %236 {offsets = [2, 0], sizes = [1, 32], strides = [1, 1]} : vector<8x32xf32> to vector<1x32xf32>
    %286 = vector.broadcast %285 : vector<1x32xf32> to vector<8x32xf32>
    %287 = arith.addf %284, %286 : vector<8x32xf32>
    %cst_127 = arith.constant 0.000000e+00 : f32
    %288 = vector.broadcast %cst_127 : f32 to vector<8x32xf32>
    %289 = arith.cmpf oge, %287, %288 : vector<8x32xf32>
    %cst_128 = arith.constant 2.000000e-01 : f32
    %290 = vector.broadcast %cst_128 : f32 to vector<8x32xf32>
    %291 = arith.mulf %290, %287 : vector<8x32xf32>
    %292 = arith.select %289, %287, %291 : vector<8x32xi1>, vector<8x32xf32>
    %c6_129 = arith.constant 6 : index
    %c0_130 = arith.constant 0 : index
    %c0_131 = arith.constant 0 : index
    %293 = vector.load %arg2[%c6_129, %c0_130, %c0_131] : memref<16x8x32xf32, #tpu.memory_space<vmem>>, vector<1x8x32xf32>
    %294 = vector.shape_cast %293 : vector<1x8x32xf32> to vector<8x32xf32>
    %c18 = arith.constant 18 : index
    %c0_132 = arith.constant 0 : index
    %c0_133 = arith.constant 0 : index
    %295 = vector.load %arg1[%c18, %c0_132, %c0_133] : memref<48x32x32xf32, #tpu.memory_space<vmem>>, vector<1x32x32xf32>
    %296 = vector.shape_cast %295 : vector<1x32x32xf32> to vector<32x32xf32>
    %cst_134 = arith.constant dense<0.000000e+00> : vector<8x32xf32>
    %297 = tpu.matmul %292, %296, %cst_134 {dimension_numbers = #tpu.dot_dimension_numbers<[1], [0], [0], [1], [0, 0, 1, 1], [], []>} : vector<8x32xf32>, vector<32x32xf32>, vector<8x32xf32> -> vector<8x32xf32>
    %c1_i32_135 = arith.constant 1 : i32
    %298 = tpu.dynamic_rotate %292 by %c1_i32_135 dim 0 : vector<8x32xf32>, i32 -> vector<8x32xf32>
    %cst_136 = arith.constant 0.000000e+00 : f32
    %299 = vector.broadcast %cst_136 : f32 to vector<8x32xf32>
    %300 = arith.subf %299, %298 : vector<8x32xf32>
    %cst_137 = arith.constant 0.000000e+00 : f32
    %301 = vector.broadcast %cst_137 : f32 to vector<8x32xf32>
    %302 = arith.select %5, %300, %301 : vector<8x32xi1>, vector<8x32xf32>
    %c19 = arith.constant 19 : index
    %c0_138 = arith.constant 0 : index
    %c0_139 = arith.constant 0 : index
    %303 = vector.load %arg1[%c19, %c0_138, %c0_139] : memref<48x32x32xf32, #tpu.memory_space<vmem>>, vector<1x32x32xf32>
    %304 = vector.shape_cast %303 : vector<1x32x32xf32> to vector<32x32xf32>
    %cst_140 = arith.constant dense<0.000000e+00> : vector<8x32xf32>
    %305 = tpu.matmul %302, %304, %cst_140 {dimension_numbers = #tpu.dot_dimension_numbers<[1], [0], [0], [1], [0, 0, 1, 1], [], []>} : vector<8x32xf32>, vector<32x32xf32>, vector<8x32xf32> -> vector<8x32xf32>
    %306 = arith.addf %297, %305 : vector<8x32xf32>
    %c1_i32_141 = arith.constant 1 : i32
    %307 = tpu.dynamic_rotate %302 by %c1_i32_141 dim 0 : vector<8x32xf32>, i32 -> vector<8x32xf32>
    %cst_142 = arith.constant 0.000000e+00 : f32
    %308 = vector.broadcast %cst_142 : f32 to vector<8x32xf32>
    %309 = arith.subf %308, %307 : vector<8x32xf32>
    %cst_143 = arith.constant 0.000000e+00 : f32
    %310 = vector.broadcast %cst_143 : f32 to vector<8x32xf32>
    %311 = arith.select %5, %309, %310 : vector<8x32xi1>, vector<8x32xf32>
    %cst_144 = arith.constant 2.000000e+00 : f32
    %312 = vector.broadcast %cst_144 : f32 to vector<8x32xf32>
    %313 = arith.mulf %312, %311 : vector<8x32xf32>
    %314 = arith.subf %313, %292 : vector<8x32xf32>
    %c20 = arith.constant 20 : index
    %c0_145 = arith.constant 0 : index
    %c0_146 = arith.constant 0 : index
    %315 = vector.load %arg1[%c20, %c0_145, %c0_146] : memref<48x32x32xf32, #tpu.memory_space<vmem>>, vector<1x32x32xf32>
    %316 = vector.shape_cast %315 : vector<1x32x32xf32> to vector<32x32xf32>
    %cst_147 = arith.constant dense<0.000000e+00> : vector<8x32xf32>
    %317 = tpu.matmul %314, %316, %cst_147 {dimension_numbers = #tpu.dot_dimension_numbers<[1], [0], [0], [1], [0, 0, 1, 1], [], []>} : vector<8x32xf32>, vector<32x32xf32>, vector<8x32xf32> -> vector<8x32xf32>
    %318 = arith.addf %306, %317 : vector<8x32xf32>
    %319 = vector.extract_strided_slice %294 {offsets = [0, 0], sizes = [1, 32], strides = [1, 1]} : vector<8x32xf32> to vector<1x32xf32>
    %320 = vector.broadcast %319 : vector<1x32xf32> to vector<8x32xf32>
    %321 = arith.addf %318, %320 : vector<8x32xf32>
    %cst_148 = arith.constant dense<0.000000e+00> : vector<32xf32>
    %322 = vector.multi_reduction <add>, %321, %cst_148 [0] : vector<8x32xf32> to vector<32xf32>
    %323 = vector.shape_cast %322 : vector<32xf32> to vector<1x32xf32>
    %cst_149 = arith.constant 8.000000e+00 : f32
    %324 = vector.broadcast %cst_149 : f32 to vector<1x32xf32>
    %325 = arith.divf %323, %324 : vector<1x32xf32>
    %326 = vector.extract_strided_slice %294 {offsets = [3, 0], sizes = [1, 32], strides = [1, 1]} : vector<8x32xf32> to vector<1x32xf32>
    %327 = arith.mulf %325, %326 : vector<1x32xf32>
    %328 = vector.broadcast %327 : vector<1x32xf32> to vector<8x32xf32>
    %329 = arith.subf %321, %328 : vector<8x32xf32>
    %330 = arith.mulf %329, %329 : vector<8x32xf32>
    %cst_150 = arith.constant dense<0.000000e+00> : vector<32xf32>
    %331 = vector.multi_reduction <add>, %330, %cst_150 [0] : vector<8x32xf32> to vector<32xf32>
    %332 = vector.shape_cast %331 : vector<32xf32> to vector<1x32xf32>
    %cst_151 = arith.constant 8.000000e+00 : f32
    %333 = vector.broadcast %cst_151 : f32 to vector<1x32xf32>
    %334 = arith.divf %332, %333 : vector<1x32xf32>
    %335 = vector.extract_strided_slice %294 {offsets = [1, 0], sizes = [1, 32], strides = [1, 1]} : vector<8x32xf32> to vector<1x32xf32>
    %336 = vector.broadcast %335 : vector<1x32xf32> to vector<8x32xf32>
    %337 = arith.mulf %336, %329 : vector<8x32xf32>
    %cst_152 = arith.constant 9.99999974E-6 : f32
    %338 = vector.broadcast %cst_152 : f32 to vector<1x32xf32>
    %339 = arith.addf %334, %338 : vector<1x32xf32>
    %340 = math.rsqrt %339 : vector<1x32xf32>
    %341 = vector.broadcast %340 : vector<1x32xf32> to vector<8x32xf32>
    %342 = arith.mulf %337, %341 : vector<8x32xf32>
    %343 = vector.extract_strided_slice %294 {offsets = [2, 0], sizes = [1, 32], strides = [1, 1]} : vector<8x32xf32> to vector<1x32xf32>
    %344 = vector.broadcast %343 : vector<1x32xf32> to vector<8x32xf32>
    %345 = arith.addf %342, %344 : vector<8x32xf32>
    %cst_153 = arith.constant 0.000000e+00 : f32
    %346 = vector.broadcast %cst_153 : f32 to vector<8x32xf32>
    %347 = arith.cmpf oge, %345, %346 : vector<8x32xf32>
    %cst_154 = arith.constant 2.000000e-01 : f32
    %348 = vector.broadcast %cst_154 : f32 to vector<8x32xf32>
    %349 = arith.mulf %348, %345 : vector<8x32xf32>
    %350 = arith.select %347, %345, %349 : vector<8x32xi1>, vector<8x32xf32>
    %c7_155 = arith.constant 7 : index
    %c0_156 = arith.constant 0 : index
    %c0_157 = arith.constant 0 : index
    %351 = vector.load %arg2[%c7_155, %c0_156, %c0_157] : memref<16x8x32xf32, #tpu.memory_space<vmem>>, vector<1x8x32xf32>
    %352 = vector.shape_cast %351 : vector<1x8x32xf32> to vector<8x32xf32>
    %c21 = arith.constant 21 : index
    %c0_158 = arith.constant 0 : index
    %c0_159 = arith.constant 0 : index
    %353 = vector.load %arg1[%c21, %c0_158, %c0_159] : memref<48x32x32xf32, #tpu.memory_space<vmem>>, vector<1x32x32xf32>
    %354 = vector.shape_cast %353 : vector<1x32x32xf32> to vector<32x32xf32>
    %cst_160 = arith.constant dense<0.000000e+00> : vector<8x32xf32>
    %355 = tpu.matmul %350, %354, %cst_160 {dimension_numbers = #tpu.dot_dimension_numbers<[1], [0], [0], [1], [0, 0, 1, 1], [], []>} : vector<8x32xf32>, vector<32x32xf32>, vector<8x32xf32> -> vector<8x32xf32>
    %c1_i32_161 = arith.constant 1 : i32
    %356 = tpu.dynamic_rotate %350 by %c1_i32_161 dim 0 : vector<8x32xf32>, i32 -> vector<8x32xf32>
    %cst_162 = arith.constant 0.000000e+00 : f32
    %357 = vector.broadcast %cst_162 : f32 to vector<8x32xf32>
    %358 = arith.subf %357, %356 : vector<8x32xf32>
    %cst_163 = arith.constant 0.000000e+00 : f32
    %359 = vector.broadcast %cst_163 : f32 to vector<8x32xf32>
    %360 = arith.select %5, %358, %359 : vector<8x32xi1>, vector<8x32xf32>
    %c22 = arith.constant 22 : index
    %c0_164 = arith.constant 0 : index
    %c0_165 = arith.constant 0 : index
    %361 = vector.load %arg1[%c22, %c0_164, %c0_165] : memref<48x32x32xf32, #tpu.memory_space<vmem>>, vector<1x32x32xf32>
    %362 = vector.shape_cast %361 : vector<1x32x32xf32> to vector<32x32xf32>
    %cst_166 = arith.constant dense<0.000000e+00> : vector<8x32xf32>
    %363 = tpu.matmul %360, %362, %cst_166 {dimension_numbers = #tpu.dot_dimension_numbers<[1], [0], [0], [1], [0, 0, 1, 1], [], []>} : vector<8x32xf32>, vector<32x32xf32>, vector<8x32xf32> -> vector<8x32xf32>
    %364 = arith.addf %355, %363 : vector<8x32xf32>
    %365 = vector.extract_strided_slice %352 {offsets = [0, 0], sizes = [1, 32], strides = [1, 1]} : vector<8x32xf32> to vector<1x32xf32>
    %366 = vector.broadcast %365 : vector<1x32xf32> to vector<8x32xf32>
    %367 = arith.addf %364, %366 : vector<8x32xf32>
    %368 = arith.addf %367, %6 : vector<8x32xf32>
    %cst_167 = arith.constant 0.000000e+00 : f32
    %369 = vector.broadcast %cst_167 : f32 to vector<8x32xf32>
    %370 = arith.maximumf %368, %369 : vector<8x32xf32>
    %c8_168 = arith.constant 8 : index
    %c0_169 = arith.constant 0 : index
    %c0_170 = arith.constant 0 : index
    %371 = vector.load %arg2[%c8_168, %c0_169, %c0_170] : memref<16x8x32xf32, #tpu.memory_space<vmem>>, vector<1x8x32xf32>
    %372 = vector.shape_cast %371 : vector<1x8x32xf32> to vector<8x32xf32>
    %c24 = arith.constant 24 : index
    %c0_171 = arith.constant 0 : index
    %c0_172 = arith.constant 0 : index
    %373 = vector.load %arg1[%c24, %c0_171, %c0_172] : memref<48x32x32xf32, #tpu.memory_space<vmem>>, vector<1x32x32xf32>
    %374 = vector.shape_cast %373 : vector<1x32x32xf32> to vector<32x32xf32>
    %cst_173 = arith.constant dense<0.000000e+00> : vector<8x32xf32>
    %375 = tpu.matmul %370, %374, %cst_173 {dimension_numbers = #tpu.dot_dimension_numbers<[1], [0], [0], [1], [0, 0, 1, 1], [], []>} : vector<8x32xf32>, vector<32x32xf32>, vector<8x32xf32> -> vector<8x32xf32>
    %c1_i32_174 = arith.constant 1 : i32
    %376 = tpu.dynamic_rotate %370 by %c1_i32_174 dim 0 : vector<8x32xf32>, i32 -> vector<8x32xf32>
    %cst_175 = arith.constant 0.000000e+00 : f32
    %377 = vector.broadcast %cst_175 : f32 to vector<8x32xf32>
    %378 = arith.subf %377, %376 : vector<8x32xf32>
    %cst_176 = arith.constant 0.000000e+00 : f32
    %379 = vector.broadcast %cst_176 : f32 to vector<8x32xf32>
    %380 = arith.select %5, %378, %379 : vector<8x32xi1>, vector<8x32xf32>
    %c25 = arith.constant 25 : index
    %c0_177 = arith.constant 0 : index
    %c0_178 = arith.constant 0 : index
    %381 = vector.load %arg1[%c25, %c0_177, %c0_178] : memref<48x32x32xf32, #tpu.memory_space<vmem>>, vector<1x32x32xf32>
    %382 = vector.shape_cast %381 : vector<1x32x32xf32> to vector<32x32xf32>
    %cst_179 = arith.constant dense<0.000000e+00> : vector<8x32xf32>
    %383 = tpu.matmul %380, %382, %cst_179 {dimension_numbers = #tpu.dot_dimension_numbers<[1], [0], [0], [1], [0, 0, 1, 1], [], []>} : vector<8x32xf32>, vector<32x32xf32>, vector<8x32xf32> -> vector<8x32xf32>
    %384 = arith.addf %375, %383 : vector<8x32xf32>
    %385 = vector.extract_strided_slice %372 {offsets = [0, 0], sizes = [1, 32], strides = [1, 1]} : vector<8x32xf32> to vector<1x32xf32>
    %386 = vector.broadcast %385 : vector<1x32xf32> to vector<8x32xf32>
    %387 = arith.addf %384, %386 : vector<8x32xf32>
    %cst_180 = arith.constant dense<0.000000e+00> : vector<32xf32>
    %388 = vector.multi_reduction <add>, %387, %cst_180 [0] : vector<8x32xf32> to vector<32xf32>
    %389 = vector.shape_cast %388 : vector<32xf32> to vector<1x32xf32>
    %cst_181 = arith.constant 8.000000e+00 : f32
    %390 = vector.broadcast %cst_181 : f32 to vector<1x32xf32>
    %391 = arith.divf %389, %390 : vector<1x32xf32>
    %392 = vector.extract_strided_slice %372 {offsets = [3, 0], sizes = [1, 32], strides = [1, 1]} : vector<8x32xf32> to vector<1x32xf32>
    %393 = arith.mulf %391, %392 : vector<1x32xf32>
    %394 = vector.broadcast %393 : vector<1x32xf32> to vector<8x32xf32>
    %395 = arith.subf %387, %394 : vector<8x32xf32>
    %396 = arith.mulf %395, %395 : vector<8x32xf32>
    %cst_182 = arith.constant dense<0.000000e+00> : vector<32xf32>
    %397 = vector.multi_reduction <add>, %396, %cst_182 [0] : vector<8x32xf32> to vector<32xf32>
    %398 = vector.shape_cast %397 : vector<32xf32> to vector<1x32xf32>
    %cst_183 = arith.constant 8.000000e+00 : f32
    %399 = vector.broadcast %cst_183 : f32 to vector<1x32xf32>
    %400 = arith.divf %398, %399 : vector<1x32xf32>
    %401 = vector.extract_strided_slice %372 {offsets = [1, 0], sizes = [1, 32], strides = [1, 1]} : vector<8x32xf32> to vector<1x32xf32>
    %402 = vector.broadcast %401 : vector<1x32xf32> to vector<8x32xf32>
    %403 = arith.mulf %402, %395 : vector<8x32xf32>
    %cst_184 = arith.constant 9.99999974E-6 : f32
    %404 = vector.broadcast %cst_184 : f32 to vector<1x32xf32>
    %405 = arith.addf %400, %404 : vector<1x32xf32>
    %406 = math.rsqrt %405 : vector<1x32xf32>
    %407 = vector.broadcast %406 : vector<1x32xf32> to vector<8x32xf32>
    %408 = arith.mulf %403, %407 : vector<8x32xf32>
    %409 = vector.extract_strided_slice %372 {offsets = [2, 0], sizes = [1, 32], strides = [1, 1]} : vector<8x32xf32> to vector<1x32xf32>
    %410 = vector.broadcast %409 : vector<1x32xf32> to vector<8x32xf32>
    %411 = arith.addf %408, %410 : vector<8x32xf32>
    %cst_185 = arith.constant 0.000000e+00 : f32
    %412 = vector.broadcast %cst_185 : f32 to vector<8x32xf32>
    %413 = arith.cmpf oge, %411, %412 : vector<8x32xf32>
    %cst_186 = arith.constant 2.000000e-01 : f32
    %414 = vector.broadcast %cst_186 : f32 to vector<8x32xf32>
    %415 = arith.mulf %414, %411 : vector<8x32xf32>
    %416 = arith.select %413, %411, %415 : vector<8x32xi1>, vector<8x32xf32>
    %c9_187 = arith.constant 9 : index
    %c0_188 = arith.constant 0 : index
    %c0_189 = arith.constant 0 : index
    %417 = vector.load %arg2[%c9_187, %c0_188, %c0_189] : memref<16x8x32xf32, #tpu.memory_space<vmem>>, vector<1x8x32xf32>
    %418 = vector.shape_cast %417 : vector<1x8x32xf32> to vector<8x32xf32>
    %c27 = arith.constant 27 : index
    %c0_190 = arith.constant 0 : index
    %c0_191 = arith.constant 0 : index
    %419 = vector.load %arg1[%c27, %c0_190, %c0_191] : memref<48x32x32xf32, #tpu.memory_space<vmem>>, vector<1x32x32xf32>
    %420 = vector.shape_cast %419 : vector<1x32x32xf32> to vector<32x32xf32>
    %cst_192 = arith.constant dense<0.000000e+00> : vector<8x32xf32>
    %421 = tpu.matmul %416, %420, %cst_192 {dimension_numbers = #tpu.dot_dimension_numbers<[1], [0], [0], [1], [0, 0, 1, 1], [], []>} : vector<8x32xf32>, vector<32x32xf32>, vector<8x32xf32> -> vector<8x32xf32>
    %c1_i32_193 = arith.constant 1 : i32
    %422 = tpu.dynamic_rotate %416 by %c1_i32_193 dim 0 : vector<8x32xf32>, i32 -> vector<8x32xf32>
    %cst_194 = arith.constant 0.000000e+00 : f32
    %423 = vector.broadcast %cst_194 : f32 to vector<8x32xf32>
    %424 = arith.subf %423, %422 : vector<8x32xf32>
    %cst_195 = arith.constant 0.000000e+00 : f32
    %425 = vector.broadcast %cst_195 : f32 to vector<8x32xf32>
    %426 = arith.select %5, %424, %425 : vector<8x32xi1>, vector<8x32xf32>
    %c28 = arith.constant 28 : index
    %c0_196 = arith.constant 0 : index
    %c0_197 = arith.constant 0 : index
    %427 = vector.load %arg1[%c28, %c0_196, %c0_197] : memref<48x32x32xf32, #tpu.memory_space<vmem>>, vector<1x32x32xf32>
    %428 = vector.shape_cast %427 : vector<1x32x32xf32> to vector<32x32xf32>
    %cst_198 = arith.constant dense<0.000000e+00> : vector<8x32xf32>
    %429 = tpu.matmul %426, %428, %cst_198 {dimension_numbers = #tpu.dot_dimension_numbers<[1], [0], [0], [1], [0, 0, 1, 1], [], []>} : vector<8x32xf32>, vector<32x32xf32>, vector<8x32xf32> -> vector<8x32xf32>
    %430 = arith.addf %421, %429 : vector<8x32xf32>
    %c1_i32_199 = arith.constant 1 : i32
    %431 = tpu.dynamic_rotate %426 by %c1_i32_199 dim 0 : vector<8x32xf32>, i32 -> vector<8x32xf32>
    %cst_200 = arith.constant 0.000000e+00 : f32
    %432 = vector.broadcast %cst_200 : f32 to vector<8x32xf32>
    %433 = arith.subf %432, %431 : vector<8x32xf32>
    %cst_201 = arith.constant 0.000000e+00 : f32
    %434 = vector.broadcast %cst_201 : f32 to vector<8x32xf32>
    %435 = arith.select %5, %433, %434 : vector<8x32xi1>, vector<8x32xf32>
    %cst_202 = arith.constant 2.000000e+00 : f32
    %436 = vector.broadcast %cst_202 : f32 to vector<8x32xf32>
    %437 = arith.mulf %436, %435 : vector<8x32xf32>
    %438 = arith.subf %437, %416 : vector<8x32xf32>
    %c29 = arith.constant 29 : index
    %c0_203 = arith.constant 0 : index
    %c0_204 = arith.constant 0 : index
    %439 = vector.load %arg1[%c29, %c0_203, %c0_204] : memref<48x32x32xf32, #tpu.memory_space<vmem>>, vector<1x32x32xf32>
    %440 = vector.shape_cast %439 : vector<1x32x32xf32> to vector<32x32xf32>
    %cst_205 = arith.constant dense<0.000000e+00> : vector<8x32xf32>
    %441 = tpu.matmul %438, %440, %cst_205 {dimension_numbers = #tpu.dot_dimension_numbers<[1], [0], [0], [1], [0, 0, 1, 1], [], []>} : vector<8x32xf32>, vector<32x32xf32>, vector<8x32xf32> -> vector<8x32xf32>
    %442 = arith.addf %430, %441 : vector<8x32xf32>
    %443 = vector.extract_strided_slice %418 {offsets = [0, 0], sizes = [1, 32], strides = [1, 1]} : vector<8x32xf32> to vector<1x32xf32>
    %444 = vector.broadcast %443 : vector<1x32xf32> to vector<8x32xf32>
    %445 = arith.addf %442, %444 : vector<8x32xf32>
    %cst_206 = arith.constant dense<0.000000e+00> : vector<32xf32>
    %446 = vector.multi_reduction <add>, %445, %cst_206 [0] : vector<8x32xf32> to vector<32xf32>
    %447 = vector.shape_cast %446 : vector<32xf32> to vector<1x32xf32>
    %cst_207 = arith.constant 8.000000e+00 : f32
    %448 = vector.broadcast %cst_207 : f32 to vector<1x32xf32>
    %449 = arith.divf %447, %448 : vector<1x32xf32>
    %450 = vector.extract_strided_slice %418 {offsets = [3, 0], sizes = [1, 32], strides = [1, 1]} : vector<8x32xf32> to vector<1x32xf32>
    %451 = arith.mulf %449, %450 : vector<1x32xf32>
    %452 = vector.broadcast %451 : vector<1x32xf32> to vector<8x32xf32>
    %453 = arith.subf %445, %452 : vector<8x32xf32>
    %454 = arith.mulf %453, %453 : vector<8x32xf32>
    %cst_208 = arith.constant dense<0.000000e+00> : vector<32xf32>
    %455 = vector.multi_reduction <add>, %454, %cst_208 [0] : vector<8x32xf32> to vector<32xf32>
    %456 = vector.shape_cast %455 : vector<32xf32> to vector<1x32xf32>
    %cst_209 = arith.constant 8.000000e+00 : f32
    %457 = vector.broadcast %cst_209 : f32 to vector<1x32xf32>
    %458 = arith.divf %456, %457 : vector<1x32xf32>
    %459 = vector.extract_strided_slice %418 {offsets = [1, 0], sizes = [1, 32], strides = [1, 1]} : vector<8x32xf32> to vector<1x32xf32>
    %460 = vector.broadcast %459 : vector<1x32xf32> to vector<8x32xf32>
    %461 = arith.mulf %460, %453 : vector<8x32xf32>
    %cst_210 = arith.constant 9.99999974E-6 : f32
    %462 = vector.broadcast %cst_210 : f32 to vector<1x32xf32>
    %463 = arith.addf %458, %462 : vector<1x32xf32>
    %464 = math.rsqrt %463 : vector<1x32xf32>
    %465 = vector.broadcast %464 : vector<1x32xf32> to vector<8x32xf32>
    %466 = arith.mulf %461, %465 : vector<8x32xf32>
    %467 = vector.extract_strided_slice %418 {offsets = [2, 0], sizes = [1, 32], strides = [1, 1]} : vector<8x32xf32> to vector<1x32xf32>
    %468 = vector.broadcast %467 : vector<1x32xf32> to vector<8x32xf32>
    %469 = arith.addf %466, %468 : vector<8x32xf32>
    %cst_211 = arith.constant 0.000000e+00 : f32
    %470 = vector.broadcast %cst_211 : f32 to vector<8x32xf32>
    %471 = arith.cmpf oge, %469, %470 : vector<8x32xf32>
    %cst_212 = arith.constant 2.000000e-01 : f32
    %472 = vector.broadcast %cst_212 : f32 to vector<8x32xf32>
    %473 = arith.mulf %472, %469 : vector<8x32xf32>
    %474 = arith.select %471, %469, %473 : vector<8x32xi1>, vector<8x32xf32>
    %c10_213 = arith.constant 10 : index
    %c0_214 = arith.constant 0 : index
    %c0_215 = arith.constant 0 : index
    %475 = vector.load %arg2[%c10_213, %c0_214, %c0_215] : memref<16x8x32xf32, #tpu.memory_space<vmem>>, vector<1x8x32xf32>
    %476 = vector.shape_cast %475 : vector<1x8x32xf32> to vector<8x32xf32>
    %c30 = arith.constant 30 : index
    %c0_216 = arith.constant 0 : index
    %c0_217 = arith.constant 0 : index
    %477 = vector.load %arg1[%c30, %c0_216, %c0_217] : memref<48x32x32xf32, #tpu.memory_space<vmem>>, vector<1x32x32xf32>
    %478 = vector.shape_cast %477 : vector<1x32x32xf32> to vector<32x32xf32>
    %cst_218 = arith.constant dense<0.000000e+00> : vector<8x32xf32>
    %479 = tpu.matmul %474, %478, %cst_218 {dimension_numbers = #tpu.dot_dimension_numbers<[1], [0], [0], [1], [0, 0, 1, 1], [], []>} : vector<8x32xf32>, vector<32x32xf32>, vector<8x32xf32> -> vector<8x32xf32>
    %c1_i32_219 = arith.constant 1 : i32
    %480 = tpu.dynamic_rotate %474 by %c1_i32_219 dim 0 : vector<8x32xf32>, i32 -> vector<8x32xf32>
    %cst_220 = arith.constant 0.000000e+00 : f32
    %481 = vector.broadcast %cst_220 : f32 to vector<8x32xf32>
    %482 = arith.subf %481, %480 : vector<8x32xf32>
    %cst_221 = arith.constant 0.000000e+00 : f32
    %483 = vector.broadcast %cst_221 : f32 to vector<8x32xf32>
    %484 = arith.select %5, %482, %483 : vector<8x32xi1>, vector<8x32xf32>
    %c31 = arith.constant 31 : index
    %c0_222 = arith.constant 0 : index
    %c0_223 = arith.constant 0 : index
    %485 = vector.load %arg1[%c31, %c0_222, %c0_223] : memref<48x32x32xf32, #tpu.memory_space<vmem>>, vector<1x32x32xf32>
    %486 = vector.shape_cast %485 : vector<1x32x32xf32> to vector<32x32xf32>
    %cst_224 = arith.constant dense<0.000000e+00> : vector<8x32xf32>
    %487 = tpu.matmul %484, %486, %cst_224 {dimension_numbers = #tpu.dot_dimension_numbers<[1], [0], [0], [1], [0, 0, 1, 1], [], []>} : vector<8x32xf32>, vector<32x32xf32>, vector<8x32xf32> -> vector<8x32xf32>
    %488 = arith.addf %479, %487 : vector<8x32xf32>
    %c1_i32_225 = arith.constant 1 : i32
    %489 = tpu.dynamic_rotate %484 by %c1_i32_225 dim 0 : vector<8x32xf32>, i32 -> vector<8x32xf32>
    %cst_226 = arith.constant 0.000000e+00 : f32
    %490 = vector.broadcast %cst_226 : f32 to vector<8x32xf32>
    %491 = arith.subf %490, %489 : vector<8x32xf32>
    %cst_227 = arith.constant 0.000000e+00 : f32
    %492 = vector.broadcast %cst_227 : f32 to vector<8x32xf32>
    %493 = arith.select %5, %491, %492 : vector<8x32xi1>, vector<8x32xf32>
    %cst_228 = arith.constant 2.000000e+00 : f32
    %494 = vector.broadcast %cst_228 : f32 to vector<8x32xf32>
    %495 = arith.mulf %494, %493 : vector<8x32xf32>
    %496 = arith.subf %495, %474 : vector<8x32xf32>
    %c32 = arith.constant 32 : index
    %c0_229 = arith.constant 0 : index
    %c0_230 = arith.constant 0 : index
    %497 = vector.load %arg1[%c32, %c0_229, %c0_230] : memref<48x32x32xf32, #tpu.memory_space<vmem>>, vector<1x32x32xf32>
    %498 = vector.shape_cast %497 : vector<1x32x32xf32> to vector<32x32xf32>
    %cst_231 = arith.constant dense<0.000000e+00> : vector<8x32xf32>
    %499 = tpu.matmul %496, %498, %cst_231 {dimension_numbers = #tpu.dot_dimension_numbers<[1], [0], [0], [1], [0, 0, 1, 1], [], []>} : vector<8x32xf32>, vector<32x32xf32>, vector<8x32xf32> -> vector<8x32xf32>
    %500 = arith.addf %488, %499 : vector<8x32xf32>
    %501 = vector.extract_strided_slice %476 {offsets = [0, 0], sizes = [1, 32], strides = [1, 1]} : vector<8x32xf32> to vector<1x32xf32>
    %502 = vector.broadcast %501 : vector<1x32xf32> to vector<8x32xf32>
    %503 = arith.addf %500, %502 : vector<8x32xf32>
    %cst_232 = arith.constant dense<0.000000e+00> : vector<32xf32>
    %504 = vector.multi_reduction <add>, %503, %cst_232 [0] : vector<8x32xf32> to vector<32xf32>
    %505 = vector.shape_cast %504 : vector<32xf32> to vector<1x32xf32>
    %cst_233 = arith.constant 8.000000e+00 : f32
    %506 = vector.broadcast %cst_233 : f32 to vector<1x32xf32>
    %507 = arith.divf %505, %506 : vector<1x32xf32>
    %508 = vector.extract_strided_slice %476 {offsets = [3, 0], sizes = [1, 32], strides = [1, 1]} : vector<8x32xf32> to vector<1x32xf32>
    %509 = arith.mulf %507, %508 : vector<1x32xf32>
    %510 = vector.broadcast %509 : vector<1x32xf32> to vector<8x32xf32>
    %511 = arith.subf %503, %510 : vector<8x32xf32>
    %512 = arith.mulf %511, %511 : vector<8x32xf32>
    %cst_234 = arith.constant dense<0.000000e+00> : vector<32xf32>
    %513 = vector.multi_reduction <add>, %512, %cst_234 [0] : vector<8x32xf32> to vector<32xf32>
    %514 = vector.shape_cast %513 : vector<32xf32> to vector<1x32xf32>
    %cst_235 = arith.constant 8.000000e+00 : f32
    %515 = vector.broadcast %cst_235 : f32 to vector<1x32xf32>
    %516 = arith.divf %514, %515 : vector<1x32xf32>
    %517 = vector.extract_strided_slice %476 {offsets = [1, 0], sizes = [1, 32], strides = [1, 1]} : vector<8x32xf32> to vector<1x32xf32>
    %518 = vector.broadcast %517 : vector<1x32xf32> to vector<8x32xf32>
    %519 = arith.mulf %518, %511 : vector<8x32xf32>
    %cst_236 = arith.constant 9.99999974E-6 : f32
    %520 = vector.broadcast %cst_236 : f32 to vector<1x32xf32>
    %521 = arith.addf %516, %520 : vector<1x32xf32>
    %522 = math.rsqrt %521 : vector<1x32xf32>
    %523 = vector.broadcast %522 : vector<1x32xf32> to vector<8x32xf32>
    %524 = arith.mulf %519, %523 : vector<8x32xf32>
    %525 = vector.extract_strided_slice %476 {offsets = [2, 0], sizes = [1, 32], strides = [1, 1]} : vector<8x32xf32> to vector<1x32xf32>
    %526 = vector.broadcast %525 : vector<1x32xf32> to vector<8x32xf32>
    %527 = arith.addf %524, %526 : vector<8x32xf32>
    %cst_237 = arith.constant 0.000000e+00 : f32
    %528 = vector.broadcast %cst_237 : f32 to vector<8x32xf32>
    %529 = arith.cmpf oge, %527, %528 : vector<8x32xf32>
    %cst_238 = arith.constant 2.000000e-01 : f32
    %530 = vector.broadcast %cst_238 : f32 to vector<8x32xf32>
    %531 = arith.mulf %530, %527 : vector<8x32xf32>
    %532 = arith.select %529, %527, %531 : vector<8x32xi1>, vector<8x32xf32>
    %c11 = arith.constant 11 : index
    %c0_239 = arith.constant 0 : index
    %c0_240 = arith.constant 0 : index
    %533 = vector.load %arg2[%c11, %c0_239, %c0_240] : memref<16x8x32xf32, #tpu.memory_space<vmem>>, vector<1x8x32xf32>
    %534 = vector.shape_cast %533 : vector<1x8x32xf32> to vector<8x32xf32>
    %c33 = arith.constant 33 : index
    %c0_241 = arith.constant 0 : index
    %c0_242 = arith.constant 0 : index
    %535 = vector.load %arg1[%c33, %c0_241, %c0_242] : memref<48x32x32xf32, #tpu.memory_space<vmem>>, vector<1x32x32xf32>
    %536 = vector.shape_cast %535 : vector<1x32x32xf32> to vector<32x32xf32>
    %cst_243 = arith.constant dense<0.000000e+00> : vector<8x32xf32>
    %537 = tpu.matmul %532, %536, %cst_243 {dimension_numbers = #tpu.dot_dimension_numbers<[1], [0], [0], [1], [0, 0, 1, 1], [], []>} : vector<8x32xf32>, vector<32x32xf32>, vector<8x32xf32> -> vector<8x32xf32>
    %c1_i32_244 = arith.constant 1 : i32
    %538 = tpu.dynamic_rotate %532 by %c1_i32_244 dim 0 : vector<8x32xf32>, i32 -> vector<8x32xf32>
    %cst_245 = arith.constant 0.000000e+00 : f32
    %539 = vector.broadcast %cst_245 : f32 to vector<8x32xf32>
    %540 = arith.subf %539, %538 : vector<8x32xf32>
    %cst_246 = arith.constant 0.000000e+00 : f32
    %541 = vector.broadcast %cst_246 : f32 to vector<8x32xf32>
    %542 = arith.select %5, %540, %541 : vector<8x32xi1>, vector<8x32xf32>
    %c34 = arith.constant 34 : index
    %c0_247 = arith.constant 0 : index
    %c0_248 = arith.constant 0 : index
    %543 = vector.load %arg1[%c34, %c0_247, %c0_248] : memref<48x32x32xf32, #tpu.memory_space<vmem>>, vector<1x32x32xf32>
    %544 = vector.shape_cast %543 : vector<1x32x32xf32> to vector<32x32xf32>
    %cst_249 = arith.constant dense<0.000000e+00> : vector<8x32xf32>
    %545 = tpu.matmul %542, %544, %cst_249 {dimension_numbers = #tpu.dot_dimension_numbers<[1], [0], [0], [1], [0, 0, 1, 1], [], []>} : vector<8x32xf32>, vector<32x32xf32>, vector<8x32xf32> -> vector<8x32xf32>
    %546 = arith.addf %537, %545 : vector<8x32xf32>
    %547 = vector.extract_strided_slice %534 {offsets = [0, 0], sizes = [1, 32], strides = [1, 1]} : vector<8x32xf32> to vector<1x32xf32>
    %548 = vector.broadcast %547 : vector<1x32xf32> to vector<8x32xf32>
    %549 = arith.addf %546, %548 : vector<8x32xf32>
    %550 = arith.addf %549, %6 : vector<8x32xf32>
    %cst_250 = arith.constant 0.000000e+00 : f32
    %551 = vector.broadcast %cst_250 : f32 to vector<8x32xf32>
    %552 = arith.maximumf %550, %551 : vector<8x32xf32>
    %c12_251 = arith.constant 12 : index
    %c0_252 = arith.constant 0 : index
    %c0_253 = arith.constant 0 : index
    %553 = vector.load %arg2[%c12_251, %c0_252, %c0_253] : memref<16x8x32xf32, #tpu.memory_space<vmem>>, vector<1x8x32xf32>
    %554 = vector.shape_cast %553 : vector<1x8x32xf32> to vector<8x32xf32>
    %c36 = arith.constant 36 : index
    %c0_254 = arith.constant 0 : index
    %c0_255 = arith.constant 0 : index
    %555 = vector.load %arg1[%c36, %c0_254, %c0_255] : memref<48x32x32xf32, #tpu.memory_space<vmem>>, vector<1x32x32xf32>
    %556 = vector.shape_cast %555 : vector<1x32x32xf32> to vector<32x32xf32>
    %cst_256 = arith.constant dense<0.000000e+00> : vector<8x32xf32>
    %557 = tpu.matmul %552, %556, %cst_256 {dimension_numbers = #tpu.dot_dimension_numbers<[1], [0], [0], [1], [0, 0, 1, 1], [], []>} : vector<8x32xf32>, vector<32x32xf32>, vector<8x32xf32> -> vector<8x32xf32>
    %c1_i32_257 = arith.constant 1 : i32
    %558 = tpu.dynamic_rotate %552 by %c1_i32_257 dim 0 : vector<8x32xf32>, i32 -> vector<8x32xf32>
    %cst_258 = arith.constant 0.000000e+00 : f32
    %559 = vector.broadcast %cst_258 : f32 to vector<8x32xf32>
    %560 = arith.subf %559, %558 : vector<8x32xf32>
    %cst_259 = arith.constant 0.000000e+00 : f32
    %561 = vector.broadcast %cst_259 : f32 to vector<8x32xf32>
    %562 = arith.select %5, %560, %561 : vector<8x32xi1>, vector<8x32xf32>
    %c37 = arith.constant 37 : index
    %c0_260 = arith.constant 0 : index
    %c0_261 = arith.constant 0 : index
    %563 = vector.load %arg1[%c37, %c0_260, %c0_261] : memref<48x32x32xf32, #tpu.memory_space<vmem>>, vector<1x32x32xf32>
    %564 = vector.shape_cast %563 : vector<1x32x32xf32> to vector<32x32xf32>
    %cst_262 = arith.constant dense<0.000000e+00> : vector<8x32xf32>
    %565 = tpu.matmul %562, %564, %cst_262 {dimension_numbers = #tpu.dot_dimension_numbers<[1], [0], [0], [1], [0, 0, 1, 1], [], []>} : vector<8x32xf32>, vector<32x32xf32>, vector<8x32xf32> -> vector<8x32xf32>
    %566 = arith.addf %557, %565 : vector<8x32xf32>
    %567 = vector.extract_strided_slice %554 {offsets = [0, 0], sizes = [1, 32], strides = [1, 1]} : vector<8x32xf32> to vector<1x32xf32>
    %568 = vector.broadcast %567 : vector<1x32xf32> to vector<8x32xf32>
    %569 = arith.addf %566, %568 : vector<8x32xf32>
    %cst_263 = arith.constant dense<0.000000e+00> : vector<32xf32>
    %570 = vector.multi_reduction <add>, %569, %cst_263 [0] : vector<8x32xf32> to vector<32xf32>
    %571 = vector.shape_cast %570 : vector<32xf32> to vector<1x32xf32>
    %cst_264 = arith.constant 8.000000e+00 : f32
    %572 = vector.broadcast %cst_264 : f32 to vector<1x32xf32>
    %573 = arith.divf %571, %572 : vector<1x32xf32>
    %574 = vector.extract_strided_slice %554 {offsets = [3, 0], sizes = [1, 32], strides = [1, 1]} : vector<8x32xf32> to vector<1x32xf32>
    %575 = arith.mulf %573, %574 : vector<1x32xf32>
    %576 = vector.broadcast %575 : vector<1x32xf32> to vector<8x32xf32>
    %577 = arith.subf %569, %576 : vector<8x32xf32>
    %578 = arith.mulf %577, %577 : vector<8x32xf32>
    %cst_265 = arith.constant dense<0.000000e+00> : vector<32xf32>
    %579 = vector.multi_reduction <add>, %578, %cst_265 [0] : vector<8x32xf32> to vector<32xf32>
    %580 = vector.shape_cast %579 : vector<32xf32> to vector<1x32xf32>
    %cst_266 = arith.constant 8.000000e+00 : f32
    %581 = vector.broadcast %cst_266 : f32 to vector<1x32xf32>
    %582 = arith.divf %580, %581 : vector<1x32xf32>
    %583 = vector.extract_strided_slice %554 {offsets = [1, 0], sizes = [1, 32], strides = [1, 1]} : vector<8x32xf32> to vector<1x32xf32>
    %584 = vector.broadcast %583 : vector<1x32xf32> to vector<8x32xf32>
    %585 = arith.mulf %584, %577 : vector<8x32xf32>
    %cst_267 = arith.constant 9.99999974E-6 : f32
    %586 = vector.broadcast %cst_267 : f32 to vector<1x32xf32>
    %587 = arith.addf %582, %586 : vector<1x32xf32>
    %588 = math.rsqrt %587 : vector<1x32xf32>
    %589 = vector.broadcast %588 : vector<1x32xf32> to vector<8x32xf32>
    %590 = arith.mulf %585, %589 : vector<8x32xf32>
    %591 = vector.extract_strided_slice %554 {offsets = [2, 0], sizes = [1, 32], strides = [1, 1]} : vector<8x32xf32> to vector<1x32xf32>
    %592 = vector.broadcast %591 : vector<1x32xf32> to vector<8x32xf32>
    %593 = arith.addf %590, %592 : vector<8x32xf32>
    %cst_268 = arith.constant 0.000000e+00 : f32
    %594 = vector.broadcast %cst_268 : f32 to vector<8x32xf32>
    %595 = arith.cmpf oge, %593, %594 : vector<8x32xf32>
    %cst_269 = arith.constant 2.000000e-01 : f32
    %596 = vector.broadcast %cst_269 : f32 to vector<8x32xf32>
    %597 = arith.mulf %596, %593 : vector<8x32xf32>
    %598 = arith.select %595, %593, %597 : vector<8x32xi1>, vector<8x32xf32>
    %c13_270 = arith.constant 13 : index
    %c0_271 = arith.constant 0 : index
    %c0_272 = arith.constant 0 : index
    %599 = vector.load %arg2[%c13_270, %c0_271, %c0_272] : memref<16x8x32xf32, #tpu.memory_space<vmem>>, vector<1x8x32xf32>
    %600 = vector.shape_cast %599 : vector<1x8x32xf32> to vector<8x32xf32>
    %c39 = arith.constant 39 : index
    %c0_273 = arith.constant 0 : index
    %c0_274 = arith.constant 0 : index
    %601 = vector.load %arg1[%c39, %c0_273, %c0_274] : memref<48x32x32xf32, #tpu.memory_space<vmem>>, vector<1x32x32xf32>
    %602 = vector.shape_cast %601 : vector<1x32x32xf32> to vector<32x32xf32>
    %cst_275 = arith.constant dense<0.000000e+00> : vector<8x32xf32>
    %603 = tpu.matmul %598, %602, %cst_275 {dimension_numbers = #tpu.dot_dimension_numbers<[1], [0], [0], [1], [0, 0, 1, 1], [], []>} : vector<8x32xf32>, vector<32x32xf32>, vector<8x32xf32> -> vector<8x32xf32>
    %c1_i32_276 = arith.constant 1 : i32
    %604 = tpu.dynamic_rotate %598 by %c1_i32_276 dim 0 : vector<8x32xf32>, i32 -> vector<8x32xf32>
    %cst_277 = arith.constant 0.000000e+00 : f32
    %605 = vector.broadcast %cst_277 : f32 to vector<8x32xf32>
    %606 = arith.subf %605, %604 : vector<8x32xf32>
    %cst_278 = arith.constant 0.000000e+00 : f32
    %607 = vector.broadcast %cst_278 : f32 to vector<8x32xf32>
    %608 = arith.select %5, %606, %607 : vector<8x32xi1>, vector<8x32xf32>
    %c40 = arith.constant 40 : index
    %c0_279 = arith.constant 0 : index
    %c0_280 = arith.constant 0 : index
    %609 = vector.load %arg1[%c40, %c0_279, %c0_280] : memref<48x32x32xf32, #tpu.memory_space<vmem>>, vector<1x32x32xf32>
    %610 = vector.shape_cast %609 : vector<1x32x32xf32> to vector<32x32xf32>
    %cst_281 = arith.constant dense<0.000000e+00> : vector<8x32xf32>
    %611 = tpu.matmul %608, %610, %cst_281 {dimension_numbers = #tpu.dot_dimension_numbers<[1], [0], [0], [1], [0, 0, 1, 1], [], []>} : vector<8x32xf32>, vector<32x32xf32>, vector<8x32xf32> -> vector<8x32xf32>
    %612 = arith.addf %603, %611 : vector<8x32xf32>
    %c1_i32_282 = arith.constant 1 : i32
    %613 = tpu.dynamic_rotate %608 by %c1_i32_282 dim 0 : vector<8x32xf32>, i32 -> vector<8x32xf32>
    %cst_283 = arith.constant 0.000000e+00 : f32
    %614 = vector.broadcast %cst_283 : f32 to vector<8x32xf32>
    %615 = arith.subf %614, %613 : vector<8x32xf32>
    %cst_284 = arith.constant 0.000000e+00 : f32
    %616 = vector.broadcast %cst_284 : f32 to vector<8x32xf32>
    %617 = arith.select %5, %615, %616 : vector<8x32xi1>, vector<8x32xf32>
    %cst_285 = arith.constant 2.000000e+00 : f32
    %618 = vector.broadcast %cst_285 : f32 to vector<8x32xf32>
    %619 = arith.mulf %618, %617 : vector<8x32xf32>
    %620 = arith.subf %619, %598 : vector<8x32xf32>
    %c41 = arith.constant 41 : index
    %c0_286 = arith.constant 0 : index
    %c0_287 = arith.constant 0 : index
    %621 = vector.load %arg1[%c41, %c0_286, %c0_287] : memref<48x32x32xf32, #tpu.memory_space<vmem>>, vector<1x32x32xf32>
    %622 = vector.shape_cast %621 : vector<1x32x32xf32> to vector<32x32xf32>
    %cst_288 = arith.constant dense<0.000000e+00> : vector<8x32xf32>
    %623 = tpu.matmul %620, %622, %cst_288 {dimension_numbers = #tpu.dot_dimension_numbers<[1], [0], [0], [1], [0, 0, 1, 1], [], []>} : vector<8x32xf32>, vector<32x32xf32>, vector<8x32xf32> -> vector<8x32xf32>
    %624 = arith.addf %612, %623 : vector<8x32xf32>
    %625 = vector.extract_strided_slice %600 {offsets = [0, 0], sizes = [1, 32], strides = [1, 1]} : vector<8x32xf32> to vector<1x32xf32>
    %626 = vector.broadcast %625 : vector<1x32xf32> to vector<8x32xf32>
    %627 = arith.addf %624, %626 : vector<8x32xf32>
    %cst_289 = arith.constant dense<0.000000e+00> : vector<32xf32>
    %628 = vector.multi_reduction <add>, %627, %cst_289 [0] : vector<8x32xf32> to vector<32xf32>
    %629 = vector.shape_cast %628 : vector<32xf32> to vector<1x32xf32>
    %cst_290 = arith.constant 8.000000e+00 : f32
    %630 = vector.broadcast %cst_290 : f32 to vector<1x32xf32>
    %631 = arith.divf %629, %630 : vector<1x32xf32>
    %632 = vector.extract_strided_slice %600 {offsets = [3, 0], sizes = [1, 32], strides = [1, 1]} : vector<8x32xf32> to vector<1x32xf32>
    %633 = arith.mulf %631, %632 : vector<1x32xf32>
    %634 = vector.broadcast %633 : vector<1x32xf32> to vector<8x32xf32>
    %635 = arith.subf %627, %634 : vector<8x32xf32>
    %636 = arith.mulf %635, %635 : vector<8x32xf32>
    %cst_291 = arith.constant dense<0.000000e+00> : vector<32xf32>
    %637 = vector.multi_reduction <add>, %636, %cst_291 [0] : vector<8x32xf32> to vector<32xf32>
    %638 = vector.shape_cast %637 : vector<32xf32> to vector<1x32xf32>
    %cst_292 = arith.constant 8.000000e+00 : f32
    %639 = vector.broadcast %cst_292 : f32 to vector<1x32xf32>
    %640 = arith.divf %638, %639 : vector<1x32xf32>
    %641 = vector.extract_strided_slice %600 {offsets = [1, 0], sizes = [1, 32], strides = [1, 1]} : vector<8x32xf32> to vector<1x32xf32>
    %642 = vector.broadcast %641 : vector<1x32xf32> to vector<8x32xf32>
    %643 = arith.mulf %642, %635 : vector<8x32xf32>
    %cst_293 = arith.constant 9.99999974E-6 : f32
    %644 = vector.broadcast %cst_293 : f32 to vector<1x32xf32>
    %645 = arith.addf %640, %644 : vector<1x32xf32>
    %646 = math.rsqrt %645 : vector<1x32xf32>
    %647 = vector.broadcast %646 : vector<1x32xf32> to vector<8x32xf32>
    %648 = arith.mulf %643, %647 : vector<8x32xf32>
    %649 = vector.extract_strided_slice %600 {offsets = [2, 0], sizes = [1, 32], strides = [1, 1]} : vector<8x32xf32> to vector<1x32xf32>
    %650 = vector.broadcast %649 : vector<1x32xf32> to vector<8x32xf32>
    %651 = arith.addf %648, %650 : vector<8x32xf32>
    %cst_294 = arith.constant 0.000000e+00 : f32
    %652 = vector.broadcast %cst_294 : f32 to vector<8x32xf32>
    %653 = arith.cmpf oge, %651, %652 : vector<8x32xf32>
    %cst_295 = arith.constant 2.000000e-01 : f32
    %654 = vector.broadcast %cst_295 : f32 to vector<8x32xf32>
    %655 = arith.mulf %654, %651 : vector<8x32xf32>
    %656 = arith.select %653, %651, %655 : vector<8x32xi1>, vector<8x32xf32>
    %c14 = arith.constant 14 : index
    %c0_296 = arith.constant 0 : index
    %c0_297 = arith.constant 0 : index
    %657 = vector.load %arg2[%c14, %c0_296, %c0_297] : memref<16x8x32xf32, #tpu.memory_space<vmem>>, vector<1x8x32xf32>
    %658 = vector.shape_cast %657 : vector<1x8x32xf32> to vector<8x32xf32>
    %c42 = arith.constant 42 : index
    %c0_298 = arith.constant 0 : index
    %c0_299 = arith.constant 0 : index
    %659 = vector.load %arg1[%c42, %c0_298, %c0_299] : memref<48x32x32xf32, #tpu.memory_space<vmem>>, vector<1x32x32xf32>
    %660 = vector.shape_cast %659 : vector<1x32x32xf32> to vector<32x32xf32>
    %cst_300 = arith.constant dense<0.000000e+00> : vector<8x32xf32>
    %661 = tpu.matmul %656, %660, %cst_300 {dimension_numbers = #tpu.dot_dimension_numbers<[1], [0], [0], [1], [0, 0, 1, 1], [], []>} : vector<8x32xf32>, vector<32x32xf32>, vector<8x32xf32> -> vector<8x32xf32>
    %c1_i32_301 = arith.constant 1 : i32
    %662 = tpu.dynamic_rotate %656 by %c1_i32_301 dim 0 : vector<8x32xf32>, i32 -> vector<8x32xf32>
    %cst_302 = arith.constant 0.000000e+00 : f32
    %663 = vector.broadcast %cst_302 : f32 to vector<8x32xf32>
    %664 = arith.subf %663, %662 : vector<8x32xf32>
    %cst_303 = arith.constant 0.000000e+00 : f32
    %665 = vector.broadcast %cst_303 : f32 to vector<8x32xf32>
    %666 = arith.select %5, %664, %665 : vector<8x32xi1>, vector<8x32xf32>
    %c43 = arith.constant 43 : index
    %c0_304 = arith.constant 0 : index
    %c0_305 = arith.constant 0 : index
    %667 = vector.load %arg1[%c43, %c0_304, %c0_305] : memref<48x32x32xf32, #tpu.memory_space<vmem>>, vector<1x32x32xf32>
    %668 = vector.shape_cast %667 : vector<1x32x32xf32> to vector<32x32xf32>
    %cst_306 = arith.constant dense<0.000000e+00> : vector<8x32xf32>
    %669 = tpu.matmul %666, %668, %cst_306 {dimension_numbers = #tpu.dot_dimension_numbers<[1], [0], [0], [1], [0, 0, 1, 1], [], []>} : vector<8x32xf32>, vector<32x32xf32>, vector<8x32xf32> -> vector<8x32xf32>
    %670 = arith.addf %661, %669 : vector<8x32xf32>
    %c1_i32_307 = arith.constant 1 : i32
    %671 = tpu.dynamic_rotate %666 by %c1_i32_307 dim 0 : vector<8x32xf32>, i32 -> vector<8x32xf32>
    %cst_308 = arith.constant 0.000000e+00 : f32
    %672 = vector.broadcast %cst_308 : f32 to vector<8x32xf32>
    %673 = arith.subf %672, %671 : vector<8x32xf32>
    %cst_309 = arith.constant 0.000000e+00 : f32
    %674 = vector.broadcast %cst_309 : f32 to vector<8x32xf32>
    %675 = arith.select %5, %673, %674 : vector<8x32xi1>, vector<8x32xf32>
    %cst_310 = arith.constant 2.000000e+00 : f32
    %676 = vector.broadcast %cst_310 : f32 to vector<8x32xf32>
    %677 = arith.mulf %676, %675 : vector<8x32xf32>
    %678 = arith.subf %677, %656 : vector<8x32xf32>
    %c44 = arith.constant 44 : index
    %c0_311 = arith.constant 0 : index
    %c0_312 = arith.constant 0 : index
    %679 = vector.load %arg1[%c44, %c0_311, %c0_312] : memref<48x32x32xf32, #tpu.memory_space<vmem>>, vector<1x32x32xf32>
    %680 = vector.shape_cast %679 : vector<1x32x32xf32> to vector<32x32xf32>
    %cst_313 = arith.constant dense<0.000000e+00> : vector<8x32xf32>
    %681 = tpu.matmul %678, %680, %cst_313 {dimension_numbers = #tpu.dot_dimension_numbers<[1], [0], [0], [1], [0, 0, 1, 1], [], []>} : vector<8x32xf32>, vector<32x32xf32>, vector<8x32xf32> -> vector<8x32xf32>
    %682 = arith.addf %670, %681 : vector<8x32xf32>
    %683 = vector.extract_strided_slice %658 {offsets = [0, 0], sizes = [1, 32], strides = [1, 1]} : vector<8x32xf32> to vector<1x32xf32>
    %684 = vector.broadcast %683 : vector<1x32xf32> to vector<8x32xf32>
    %685 = arith.addf %682, %684 : vector<8x32xf32>
    %cst_314 = arith.constant dense<0.000000e+00> : vector<32xf32>
    %686 = vector.multi_reduction <add>, %685, %cst_314 [0] : vector<8x32xf32> to vector<32xf32>
    %687 = vector.shape_cast %686 : vector<32xf32> to vector<1x32xf32>
    %cst_315 = arith.constant 8.000000e+00 : f32
    %688 = vector.broadcast %cst_315 : f32 to vector<1x32xf32>
    %689 = arith.divf %687, %688 : vector<1x32xf32>
    %690 = vector.extract_strided_slice %658 {offsets = [3, 0], sizes = [1, 32], strides = [1, 1]} : vector<8x32xf32> to vector<1x32xf32>
    %691 = arith.mulf %689, %690 : vector<1x32xf32>
    %692 = vector.broadcast %691 : vector<1x32xf32> to vector<8x32xf32>
    %693 = arith.subf %685, %692 : vector<8x32xf32>
    %694 = arith.mulf %693, %693 : vector<8x32xf32>
    %cst_316 = arith.constant dense<0.000000e+00> : vector<32xf32>
    %695 = vector.multi_reduction <add>, %694, %cst_316 [0] : vector<8x32xf32> to vector<32xf32>
    %696 = vector.shape_cast %695 : vector<32xf32> to vector<1x32xf32>
    %cst_317 = arith.constant 8.000000e+00 : f32
    %697 = vector.broadcast %cst_317 : f32 to vector<1x32xf32>
    %698 = arith.divf %696, %697 : vector<1x32xf32>
    %699 = vector.extract_strided_slice %658 {offsets = [1, 0], sizes = [1, 32], strides = [1, 1]} : vector<8x32xf32> to vector<1x32xf32>
    %700 = vector.broadcast %699 : vector<1x32xf32> to vector<8x32xf32>
    %701 = arith.mulf %700, %693 : vector<8x32xf32>
    %cst_318 = arith.constant 9.99999974E-6 : f32
    %702 = vector.broadcast %cst_318 : f32 to vector<1x32xf32>
    %703 = arith.addf %698, %702 : vector<1x32xf32>
    %704 = math.rsqrt %703 : vector<1x32xf32>
    %705 = vector.broadcast %704 : vector<1x32xf32> to vector<8x32xf32>
    %706 = arith.mulf %701, %705 : vector<8x32xf32>
    %707 = vector.extract_strided_slice %658 {offsets = [2, 0], sizes = [1, 32], strides = [1, 1]} : vector<8x32xf32> to vector<1x32xf32>
    %708 = vector.broadcast %707 : vector<1x32xf32> to vector<8x32xf32>
    %709 = arith.addf %706, %708 : vector<8x32xf32>
    %cst_319 = arith.constant 0.000000e+00 : f32
    %710 = vector.broadcast %cst_319 : f32 to vector<8x32xf32>
    %711 = arith.cmpf oge, %709, %710 : vector<8x32xf32>
    %cst_320 = arith.constant 2.000000e-01 : f32
    %712 = vector.broadcast %cst_320 : f32 to vector<8x32xf32>
    %713 = arith.mulf %712, %709 : vector<8x32xf32>
    %714 = arith.select %711, %709, %713 : vector<8x32xi1>, vector<8x32xf32>
    %c15_321 = arith.constant 15 : index
    %c0_322 = arith.constant 0 : index
    %c0_323 = arith.constant 0 : index
    %715 = vector.load %arg2[%c15_321, %c0_322, %c0_323] : memref<16x8x32xf32, #tpu.memory_space<vmem>>, vector<1x8x32xf32>
    %716 = vector.shape_cast %715 : vector<1x8x32xf32> to vector<8x32xf32>
    %c45 = arith.constant 45 : index
    %c0_324 = arith.constant 0 : index
    %c0_325 = arith.constant 0 : index
    %717 = vector.load %arg1[%c45, %c0_324, %c0_325] : memref<48x32x32xf32, #tpu.memory_space<vmem>>, vector<1x32x32xf32>
    %718 = vector.shape_cast %717 : vector<1x32x32xf32> to vector<32x32xf32>
    %cst_326 = arith.constant dense<0.000000e+00> : vector<8x32xf32>
    %719 = tpu.matmul %714, %718, %cst_326 {dimension_numbers = #tpu.dot_dimension_numbers<[1], [0], [0], [1], [0, 0, 1, 1], [], []>} : vector<8x32xf32>, vector<32x32xf32>, vector<8x32xf32> -> vector<8x32xf32>
    %c1_i32_327 = arith.constant 1 : i32
    %720 = tpu.dynamic_rotate %714 by %c1_i32_327 dim 0 : vector<8x32xf32>, i32 -> vector<8x32xf32>
    %cst_328 = arith.constant 0.000000e+00 : f32
    %721 = vector.broadcast %cst_328 : f32 to vector<8x32xf32>
    %722 = arith.subf %721, %720 : vector<8x32xf32>
    %cst_329 = arith.constant 0.000000e+00 : f32
    %723 = vector.broadcast %cst_329 : f32 to vector<8x32xf32>
    %724 = arith.select %5, %722, %723 : vector<8x32xi1>, vector<8x32xf32>
    %c46 = arith.constant 46 : index
    %c0_330 = arith.constant 0 : index
    %c0_331 = arith.constant 0 : index
    %725 = vector.load %arg1[%c46, %c0_330, %c0_331] : memref<48x32x32xf32, #tpu.memory_space<vmem>>, vector<1x32x32xf32>
    %726 = vector.shape_cast %725 : vector<1x32x32xf32> to vector<32x32xf32>
    %cst_332 = arith.constant dense<0.000000e+00> : vector<8x32xf32>
    %727 = tpu.matmul %724, %726, %cst_332 {dimension_numbers = #tpu.dot_dimension_numbers<[1], [0], [0], [1], [0, 0, 1, 1], [], []>} : vector<8x32xf32>, vector<32x32xf32>, vector<8x32xf32> -> vector<8x32xf32>
    %728 = arith.addf %719, %727 : vector<8x32xf32>
    %729 = vector.extract_strided_slice %716 {offsets = [0, 0], sizes = [1, 32], strides = [1, 1]} : vector<8x32xf32> to vector<1x32xf32>
    %730 = vector.broadcast %729 : vector<1x32xf32> to vector<8x32xf32>
    %731 = arith.addf %728, %730 : vector<8x32xf32>
    %732 = arith.addf %731, %6 : vector<8x32xf32>
    %cst_333 = arith.constant 0.000000e+00 : f32
    %733 = vector.broadcast %cst_333 : f32 to vector<8x32xf32>
    %734 = arith.maximumf %732, %733 : vector<8x32xf32>
    %cst_334 = arith.constant dense<0.000000e+00> : vector<32xf32>
    %735 = vector.multi_reduction <add>, %734, %cst_334 [0] : vector<8x32xf32> to vector<32xf32>
    %736 = vector.shape_cast %735 : vector<32xf32> to vector<1x32xf32>
    %cst_335 = arith.constant 8.000000e+00 : f32
    %737 = vector.broadcast %cst_335 : f32 to vector<1x32xf32>
    %738 = arith.divf %736, %737 : vector<1x32xf32>
    %c0_336 = arith.constant 0 : index
    %c0_337 = arith.constant 0 : index
    %739 = vector.load %arg3[%c0_336, %c0_337] : memref<32x128xf32, #tpu.memory_space<vmem>>, vector<32x128xf32>
    %cst_338 = arith.constant dense<0.000000e+00> : vector<1x128xf32>
    %740 = tpu.matmul %738, %739, %cst_338 {dimension_numbers = #tpu.dot_dimension_numbers<[1], [0], [0], [1], [0, 0, 1, 1], [], []>} : vector<1x32xf32>, vector<32x128xf32>, vector<1x128xf32> -> vector<1x128xf32>
    %c0_339 = arith.constant 0 : index
    %c0_340 = arith.constant 0 : index
    %741 = vector.load %arg4[%c0_339, %c0_340] : memref<1x128xf32, #tpu.memory_space<vmem>>, vector<1x128xf32>
    %742 = arith.addf %740, %741 : vector<1x128xf32>
    %743 = math.tanh %742 : vector<1x128xf32>
    %c0_341 = arith.constant 0 : index
    %c0_342 = arith.constant 0 : index
    %744 = vector.load %arg5[%c0_341, %c0_342] : memref<1x128xf32, #tpu.memory_space<vmem>>, vector<1x128xf32>
    tpu.vector_store %arg5[%c0_341, %c0_342], %743 {strides = array<i32>} : memref<1x128xf32, #tpu.memory_space<vmem>>, vector<1x128xf32>,
    return
  }
}

</mosaic_0001>

<llo_original>
// kernel: forward.1
$region0: #{forward.1}
  #allocation0 [shape = 'u32[]', space=smem, size = 0x4, offset = 0x4, fixed_abs, tag = 'smem constant byte address 0x4 - core index']
  #allocation1 [shape = 'u32[144,128]{1,0:T(1,128)}', space=vmem, size = 0x12000, scoped, tag = 'internal scratch']
  %s0 = inlined_call_operand.vmem [shape: f32[8,32], index: 0, kind: input, shape index: {}]
  %s1 = inlined_call_operand.vmem [shape: f32[48,32,32], index: 1, kind: input, shape index: {}]
  %s2 = inlined_call_operand.vmem [shape: f32[16,8,32], index: 2, kind: input, shape index: {}]
  %s3 = inlined_call_operand.vmem [shape: f32[32,128], index: 3, kind: input, shape index: {}]
  %s4 = inlined_call_operand.vmem [shape: f32[1,128], index: 4, kind: input, shape index: {}]
  %s5 = inlined_call_operand.hbm [shape: f32[1,128], index: 5, kind: output, shape index: {}]
  %s6 = sld [smem:[#allocation0]]
  $region30: #{forward.1} parent=0
    _
  %s8 = ssub.s32 1, %s6
  %s9 = scalar_select 0, %s8, %s6
  $region1: #{forward.1} parent=0
    #allocation2 [shape = 'u8[512]{0}', space=vmem, size = 0x400, scoped, tag = 'output window, operand 0, single buffered']
    #allocation3 [shape = 's32[1]{0}', space=sflag, size = 0x4, scoped, tag = 'scoped memory for forward.1']
    %10 = vsyncpa [#allocation3], 0
    // Predicated region
    $region2: #{forward.1} parent=1 // pred_check
      _
    $region3: #{forward.1} parent=1 // pred_check_branch
      %12 = sbr.rel (0) target = $region5
    $region4: #{forward.1} parent=1 // pred_region
      _
    $region5: #{forward.1} parent=1 // pred_fallthru
      _
    // Predicated region
    $region6: #{forward.1} parent=1 // pred_check
      _
    $region7: #{forward.1} parent=1 // pred_check_branch
      %14 = sbr.rel (0) target = $region9
    $region8: #{forward.1} parent=1 // pred_region
      _
    $region9: #{forward.1} parent=1 // pred_fallthru
      _
    // Predicated region
    $region10: #{forward.1} parent=1 // pred_check
      _
    $region11: #{forward.1} parent=1 // pred_check_branch
      %16 = sbr.rel (0) target = $region13
    $region12: #{forward.1} parent=1 // pred_region
      _
    $region13: #{forward.1} parent=1 // pred_fallthru
      _
    // Predicated region
    $region14: #{forward.1} parent=1 // pred_check
      _
    $region15: #{forward.1} parent=1 // pred_check_branch
      %18 = sbr.rel (0) target = $region17
    $region16: #{forward.1} parent=1 // pred_region
      _
    $region17: #{forward.1} parent=1 // pred_fallthru
      _
    // Predicated region
    $region18: #{forward.1} parent=1 // pred_check
      _
    $region19: #{forward.1} parent=1 // pred_check_branch
      %20 = sbr.rel (0) target = $region21
    $region20: #{forward.1} parent=1 // pred_region
      _
    $region21: #{forward.1} parent=1 // pred_fallthru
      _
    %v21 = vlaneseq
    %v22 = vshrl.u32 %v21, 7
    %vm23 = vcmp.ge.s32.totalorder %v22, 1
    %vm24 = vcmp.le.s32.totalorder %v22, 6
    %vm25 = vmand %vm23, %vm24
    %v26 = vld [vmem:[%s0] sm:$0xff]
    %v27 = vld [vmem:[%s2] sm:$0xff]
    %v28 = vld [vmem:[%s1] sm:$0xff]
    %v29 = vld [vmem:[%s1 + $0x8] sm:$0xff]
    %v30 = vld [vmem:[%s1 + $0x10] sm:$0xff]
    %v31 = vld [vmem:[%s1 + $0x18] sm:$0xff]
    %v32 = vrot.slane %v26, 7
    %v33 = vsub.f32 0.0, %v32
    %v34 = vsel %vm25, %v33, 0.0
    %s35 = scalar_lea.vmem %s1, 32
    %v36 = vld [vmem:[%s35] sm:$0xff]
    %v37 = vld [vmem:[%s35 + $0x8] sm:$0xff]
    %v38 = vld [vmem:[%s35 + $0x10] sm:$0xff]
    %v39 = vld [vmem:[%s35 + $0x18] sm:$0xff]
    %vm40 = vcmask 261120
    %v42 = vsel %vm40, %v34, 0
    %44 = vmatprep.subr.mxu0 0.0
    %45 = vmatpush1.msra.mxu0 %v36
    %46 = vmatprep.subr.mxu0 0.0
    %47 = vmatpush1.msra.mxu0 %v37
    %48 = vmatprep.subr.mxu0 0.0
    %49 = vmatpush1.msra.mxu0 %v38
    %50 = vmatprep.subr.mxu0 0.0
    %51 = vmatpush1.msra.mxu0 %v39
    %52 = vmatprep.subr.mxu0 0.0
    %53 = vmatpush1.msra.mxu0 0.0
    %54 = vmatprep.subr.mxu0 0.0
    %55 = vmatpush1.msra.mxu0 0.0
    %56 = vmatprep.subr.mxu0 0.0
    %57 = vmatpush1.msra.mxu0 0.0
    %58 = vmatprep.subr.mxu0 0.0
    %59 = vmatpush1.msra.mxu0 0.0
    %60 = vmatprep.subr.mxu0 0.0
    %61 = vmatpush1.msra.mxu0 0.0
    %62 = vmatprep.subr.mxu0 0.0
    %63 = vmatpush1.msra.mxu0 0.0
    %64 = vmatprep.subr.mxu0 0.0
    %65 = vmatpush1.msra.mxu0 0.0
    %66 = vmatprep.subr.mxu0 0.0
    %67 = vmatpush1.msra.mxu0 0.0
    %68 = vmatprep.subr.mxu0 0.0
    %69 = vmatpush1.msra.mxu0 0.0
    %70 = vmatprep.subr.mxu0 0.0
    %71 = vmatpush1.msra.mxu0 0.0
    %72 = vmatprep.subr.mxu0 0.0
    %73 = vmatpush1.msra.mxu0 0.0
    %74 = vmatprep.subr.mxu0 0.0
    %75 = vmatpush1.msra.mxu0 0.0
    %76 = vmatprep.subr.mxu0 0.0
    %77 = vmatpush1.msra.mxu0 0.0
    %78 = vmatprep.subr.mxu0 0.0
    %79 = vmatpush1.msra.mxu0 0.0
    %80 = vmatprep.subr.mxu0 0.0
    %81 = vmatpush1.msra.mxu0 0.0
    %82 = vmatprep.subr.mxu0 0.0
    %83 = vmatpush1.msra.mxu0 0.0
    %84 = vmatprep.subr.mxu0 0.0
    %85 = vmatpush1.msra.mxu0 0.0
    %86 = vmatprep.subr.mxu0 0.0
    %87 = vmatpush1.msra.mxu0 0.0
    %88 = vmatprep.subr.mxu0 0.0
    %89 = vmatpush1.msra.mxu0 0.0
    %90 = vmatprep.subr.mxu0 0.0
    %91 = vmatpush1.msra.mxu0 0.0
    %92 = vmatprep.subr.mxu0 0.0
    %93 = vmatpush1.msra.mxu0 0.0
    %94 = vmatprep.subr.mxu0 0.0
    %95 = vmatpush1.msra.mxu0 0.0
    %96 = vmatprep.subr.mxu0 0.0
    %97 = vmatpush1.msra.mxu0 0.0
    %98 = vmatprep.subr.mxu0 0.0
    %99 = vmatpush1.msra.mxu0 0.0
    %100 = vmatprep.subr.mxu0 0.0
    %101 = vmatpush1.msra.mxu0 0.0
    %102 = vmatprep.subr.mxu0 0.0
    %103 = vmatpush1.msra.mxu0 0.0
    %104 = vmatprep.subr.mxu0 0.0
    %105 = vmatpush1.msra.mxu0 0.0
    %106 = vmatprep.subr.mxu0 0.0
    %107 = vmatpush1.msra.mxu0 0.0
    %108 = vmatprep.mubr.f32.mxu0 0.0
    %109 = vmatmul.mubr.f32.gmra.mrb[0].mxu0 %v42
    %v110 = vpop.f32.mrb[0].mxu0
    %v111 = vadd.f32 0.0, %v110
    %v112 = vpop.f32.mrb[0].mxu0
    %113 = vdwg.mxu0
    %v115 = vsel %vm40, %v26, 0
    %117 = vmatprep.subr.mxu0 0.0
    %118 = vmatpush1.msra.mxu0 %v28
    %119 = vmatprep.subr.mxu0 0.0
    %120 = vmatpush1.msra.mxu0 %v29
    %121 = vmatprep.subr.mxu0 0.0
    %122 = vmatpush1.msra.mxu0 %v30
    %123 = vmatprep.subr.mxu0 0.0
    %124 = vmatpush1.msra.mxu0 %v31
    %125 = vmatprep.subr.mxu0 0.0
    %126 = vmatpush1.msra.mxu0 0.0
    %127 = vmatprep.subr.mxu0 0.0
    %128 = vmatpush1.msra.mxu0 0.0
    %129 = vmatprep.subr.mxu0 0.0
    %130 = vmatpush1.msra.mxu0 0.0
    %131 = vmatprep.subr.mxu0 0.0
    %132 = vmatpush1.msra.mxu0 0.0
    %133 = vmatprep.subr.mxu0 0.0
    %134 = vmatpush1.msra.mxu0 0.0
    %135 = vmatprep.subr.mxu0 0.0
    %136 = vmatpush1.msra.mxu0 0.0
    %137 = vmatprep.subr.mxu0 0.0
    %138 = vmatpush1.msra.mxu0 0.0
    %139 = vmatprep.subr.mxu0 0.0
    %140 = vmatpush1.msra.mxu0 0.0
    %141 = vmatprep.subr.mxu0 0.0
    %142 = vmatpush1.msra.mxu0 0.0
    %143 = vmatprep.subr.mxu0 0.0
    %144 = vmatpush1.msra.mxu0 0.0
    %145 = vmatprep.subr.mxu0 0.0
    %146 = vmatpush1.msra.mxu0 0.0
    %147 = vmatprep.subr.mxu0 0.0
    %148 = vmatpush1.msra.mxu0 0.0
    %149 = vmatprep.subr.mxu0 0.0
    %150 = vmatpush1.msra.mxu0 0.0
    %151 = vmatprep.subr.mxu0 0.0
    %152 = vmatpush1.msra.mxu0 0.0
    %153 = vmatprep.subr.mxu0 0.0
    %154 = vmatpush1.msra.mxu0 0.0
    %155 = vmatprep.subr.mxu0 0.0
    %156 = vmatpush1.msra.mxu0 0.0
    %157 = vmatprep.subr.mxu0 0.0
    %158 = vmatpush1.msra.mxu0 0.0
    %159 = vmatprep.subr.mxu0 0.0
    %160 = vmatpush1.msra.mxu0 0.0
    %161 = vmatprep.subr.mxu0 0.0
    %162 = vmatpush1.msra.mxu0 0.0
    %163 = vmatprep.subr.mxu0 0.0
    %164 = vmatpush1.msra.mxu0 0.0
    %165 = vmatprep.subr.mxu0 0.0
    %166 = vmatpush1.msra.mxu0 0.0
    %167 = vmatprep.subr.mxu0 0.0
    %168 = vmatpush1.msra.mxu0 0.0
    %169 = vmatprep.subr.mxu0 0.0
    %170 = vmatpush1.msra.mxu0 0.0
    %171 = vmatprep.subr.mxu0 0.0
    %172 = vmatpush1.msra.mxu0 0.0
    %173 = vmatprep.subr.mxu0 0.0
    %174 = vmatpush1.msra.mxu0 0.0
    %175 = vmatprep.subr.mxu0 0.0
    %176 = vmatpush1.msra.mxu0 0.0
    %177 = vmatprep.subr.mxu0 0.0
    %178 = vmatpush1.msra.mxu0 0.0
    %179 = vmatprep.subr.mxu0 0.0
    %180 = vmatpush1.msra.mxu0 0.0
    %181 = vmatprep.mubr.f32.mxu0 0.0
    %182 = vmatmul.mubr.f32.gmra.mrb[0].mxu0 %v115
    %v183 = vpop.f32.mrb[0].mxu0
    %v184 = vadd.f32 %v111, %v183
    %v185 = vpop.f32.mrb[0].mxu0
    %186 = vdwg.mxu0
    %v187 = vlaneseq
    %v188 = vshrl.u32 %v187, 7
    %v189 = vsub.s32 0, %v188
    %v190 = vrot.slane %v27, %v189
    %v191 = vadd.f32 %v184, %v190
    %v192 = vsel %vm40, %v191, 0.0
    %v193 = vrot.slane %v192, 4
    %v194 = vadd.f32 %v192, %v193
    %v195 = vrot.slane %v194, 2
    %v196 = vadd.f32 %v194, %v195
    %v197 = vrot.slane %v196, 1
    %v198 = vadd.f32 %v196, %v197
    %v199 = vrcp.pop 8.0
    %v200 = vmul.f32 %v198, %v199
    %v201 = vmul.f32 %v200, %v27
    %v202 = vlaneseq
    %v203 = vshrl.u32 %v202, 7
    %v204 = vsub.s32 3, %v203
    %v205 = vrot.slane %v201, %v204
    %v206 = vsub.f32 %v191, %v205
    %v207 = vmul.f32 %v206, %v206
    %v208 = vsel %vm40, %v207, 0.0
    %v209 = vrot.slane %v208, 4
    %v210 = vadd.f32 %v208, %v209
    %v211 = vrot.slane %v210, 2
    %v212 = vadd.f32 %v210, %v211
    %v213 = vrot.slane %v212, 1
    %v214 = vadd.f32 %v212, %v213
    %v215 = vmul.f32 %v214, %v199
    %v216 = vlaneseq
    %v217 = vshrl.u32 %v216, 7
    %v218 = vsub.s32 1, %v217
    %v219 = vrot.slane %v27, %v218
    %v220 = vmul.f32 %v219, %v206
    %v221 = vadd.f32 %v215, 1e-05
    %v222 = vrsqrt.pop %v221
    %v223 = vmul.f32 %v220, %v222
    %v224 = vlaneseq
    %v225 = vshrl.u32 %v224, 7
    %v226 = vsub.s32 2, %v225
    %v227 = vrot.slane %v27, %v226
    %v228 = vadd.f32 %v223, %v227
    %vm229 = vcmp.ge.f32.partialorder %v228, 0.0
    %v230 = vmul.f32 %v228, 0.2
    %v231 = vsel %vm229, %v228, %v230
    %s232 = scalar_lea.vmem %s2, 8
    %v233 = vld [vmem:[%s232] sm:$0xff]
    %s234 = scalar_lea.vmem %s1, 96
    %v235 = vld [vmem:[%s234] sm:$0xff]
    %v236 = vld [vmem:[%s234 + $0x8] sm:$0xff]
    %v237 = vld [vmem:[%s234 + $0x10] sm:$0xff]
    %v238 = vld [vmem:[%s234 + $0x18] sm:$0xff]
    %v239 = vrot.slane %v231, 7
    %v240 = vsub.f32 0.0, %v239
    %v241 = vsel %vm25, %v240, 0.0
    %s242 = scalar_lea.vmem %s1, 128
    %v243 = vld [vmem:[%s242] sm:$0xff]
    %v244 = vld [vmem:[%s242 + $0x8] sm:$0xff]
    %v245 = vld [vmem:[%s242 + $0x10] sm:$0xff]
    %v246 = vld [vmem:[%s242 + $0x18] sm:$0xff]
    %v248 = vsel %vm40, %v241, 0
    %250 = vmatprep.subr.mxu0 0.0
    %251 = vmatpush1.msra.mxu0 %v243
    %252 = vmatprep.subr.mxu0 0.0
    %253 = vmatpush1.msra.mxu0 %v244
    %254 = vmatprep.subr.mxu0 0.0
    %255 = vmatpush1.msra.mxu0 %v245
    %256 = vmatprep.subr.mxu0 0.0
    %257 = vmatpush1.msra.mxu0 %v246
    %258 = vmatprep.subr.mxu0 0.0
    %259 = vmatpush1.msra.mxu0 0.0
    %260 = vmatprep.subr.mxu0 0.0
    %261 = vmatpush1.msra.mxu0 0.0
    %262 = vmatprep.subr.mxu0 0.0
    %263 = vmatpush1.msra.mxu0 0.0
    %264 = vmatprep.subr.mxu0 0.0
    %265 = vmatpush1.msra.mxu0 0.0
    %266 = vmatprep.subr.mxu0 0.0
    %267 = vmatpush1.msra.mxu0 0.0
    %268 = vmatprep.subr.mxu0 0.0
    %269 = vmatpush1.msra.mxu0 0.0
    %270 = vmatprep.subr.mxu0 0.0
    %271 = vmatpush1.msra.mxu0 0.0
    %272 = vmatprep.subr.mxu0 0.0
    %273 = vmatpush1.msra.mxu0 0.0
    %274 = vmatprep.subr.mxu0 0.0
    %275 = vmatpush1.msra.mxu0 0.0
    %276 = vmatprep.subr.mxu0 0.0
    %277 = vmatpush1.msra.mxu0 0.0
    %278 = vmatprep.subr.mxu0 0.0
    %279 = vmatpush1.msra.mxu0 0.0
    %280 = vmatprep.subr.mxu0 0.0
    %281 = vmatpush1.msra.mxu0 0.0
    %282 = vmatprep.subr.mxu0 0.0
    %283 = vmatpush1.msra.mxu0 0.0
    %284 = vmatprep.subr.mxu0 0.0
    %285 = vmatpush1.msra.mxu0 0.0
    %286 = vmatprep.subr.mxu0 0.0
    %287 = vmatpush1.msra.mxu0 0.0
    %288 = vmatprep.subr.mxu0 0.0
    %289 = vmatpush1.msra.mxu0 0.0
    %290 = vmatprep.subr.mxu0 0.0
    %291 = vmatpush1.msra.mxu0 0.0
    %292 = vmatprep.subr.mxu0 0.0
    %293 = vmatpush1.msra.mxu0 0.0
    %294 = vmatprep.subr.mxu0 0.0
    %295 = vmatpush1.msra.mxu0 0.0
    %296 = vmatprep.subr.mxu0 0.0
    %297 = vmatpush1.msra.mxu0 0.0
    %298 = vmatprep.subr.mxu0 0.0
    %299 = vmatpush1.msra.mxu0 0.0
    %300 = vmatprep.subr.mxu0 0.0
    %301 = vmatpush1.msra.mxu0 0.0
    %302 = vmatprep.subr.mxu0 0.0
    %303 = vmatpush1.msra.mxu0 0.0
    %304 = vmatprep.subr.mxu0 0.0
    %305 = vmatpush1.msra.mxu0 0.0
    %306 = vmatprep.subr.mxu0 0.0
    %307 = vmatpush1.msra.mxu0 0.0
    %308 = vmatprep.subr.mxu0 0.0
    %309 = vmatpush1.msra.mxu0 0.0
    %310 = vmatprep.subr.mxu0 0.0
    %311 = vmatpush1.msra.mxu0 0.0
    %312 = vmatprep.subr.mxu0 0.0
    %313 = vmatpush1.msra.mxu0 0.0
    %314 = vmatprep.mubr.f32.mxu0 0.0
    %315 = vmatmul.mubr.f32.gmra.mrb[0].mxu0 %v248
    %v316 = vpop.f32.mrb[0].mxu0
    %v317 = vadd.f32 0.0, %v316
    %v318 = vpop.f32.mrb[0].mxu0
    %319 = vdwg.mxu0
    %v321 = vsel %vm40, %v231, 0
    %323 = vmatprep.subr.mxu0 0.0
    %324 = vmatpush1.msra.mxu0 %v235
    %325 = vmatprep.subr.mxu0 0.0
    %326 = vmatpush1.msra.mxu0 %v236
    %327 = vmatprep.subr.mxu0 0.0
    %328 = vmatpush1.msra.mxu0 %v237
    %329 = vmatprep.subr.mxu0 0.0
    %330 = vmatpush1.msra.mxu0 %v238
    %331 = vmatprep.subr.mxu0 0.0
    %332 = vmatpush1.msra.mxu0 0.0
    %333 = vmatprep.subr.mxu0 0.0
    %334 = vmatpush1.msra.mxu0 0.0
    %335 = vmatprep.subr.mxu0 0.0
    %336 = vmatpush1.msra.mxu0 0.0
    %337 = vmatprep.subr.mxu0 0.0
    %338 = vmatpush1.msra.mxu0 0.0
    %339 = vmatprep.subr.mxu0 0.0
    %340 = vmatpush1.msra.mxu0 0.0
    %341 = vmatprep.subr.mxu0 0.0
    %342 = vmatpush1.msra.mxu0 0.0
    %343 = vmatprep.subr.mxu0 0.0
    %344 = vmatpush1.msra.mxu0 0.0
    %345 = vmatprep.subr.mxu0 0.0
    %346 = vmatpush1.msra.mxu0 0.0
    %347 = vmatprep.subr.mxu0 0.0
    %348 = vmatpush1.msra.mxu0 0.0
    %349 = vmatprep.subr.mxu0 0.0
    %350 = vmatpush1.msra.mxu0 0.0
    %351 = vmatprep.subr.mxu0 0.0
    %352 = vmatpush1.msra.mxu0 0.0
    %353 = vmatprep.subr.mxu0 0.0
    %354 = vmatpush1.msra.mxu0 0.0
    %355 = vmatprep.subr.mxu0 0.0
    %356 = vmatpush1.msra.mxu0 0.0
    %357 = vmatprep.subr.mxu0 0.0
    %358 = vmatpush1.msra.mxu0 0.0
    %359 = vmatprep.subr.mxu0 0.0
    %360 = vmatpush1.msra.mxu0 0.0
    %361 = vmatprep.subr.mxu0 0.0
    %362 = vmatpush1.msra.mxu0 0.0
    %363 = vmatprep.subr.mxu0 0.0
    %364 = vmatpush1.msra.mxu0 0.0
    %365 = vmatprep.subr.mxu0 0.0
    %366 = vmatpush1.msra.mxu0 0.0
    %367 = vmatprep.subr.mxu0 0.0
    %368 = vmatpush1.msra.mxu0 0.0
    %369 = vmatprep.subr.mxu0 0.0
    %370 = vmatpush1.msra.mxu0 0.0
    %371 = vmatprep.subr.mxu0 0.0
    %372 = vmatpush1.msra.mxu0 0.0
    %373 = vmatprep.subr.mxu0 0.0
    %374 = vmatpush1.msra.mxu0 0.0
    %375 = vmatprep.subr.mxu0 0.0
    %376 = vmatpush1.msra.mxu0 0.0
    %377 = vmatprep.subr.mxu0 0.0
    %378 = vmatpush1.msra.mxu0 0.0
    %379 = vmatprep.subr.mxu0 0.0
    %380 = vmatpush1.msra.mxu0 0.0
    %381 = vmatprep.subr.mxu0 0.0
    %382 = vmatpush1.msra.mxu0 0.0
    %383 = vmatprep.subr.mxu0 0.0
    %384 = vmatpush1.msra.mxu0 0.0
    %385 = vmatprep.subr.mxu0 0.0
    %386 = vmatpush1.msra.mxu0 0.0
    %387 = vmatprep.mubr.f32.mxu0 0.0
    %388 = vmatmul.mubr.f32.gmra.mrb[0].mxu0 %v321
    %v389 = vpop.f32.mrb[0].mxu0
    %v390 = vadd.f32 %v317, %v389
    %v391 = vpop.f32.mrb[0].mxu0
    %392 = vdwg.mxu0
    %v393 = vrot.slane %v241, 7
    %v394 = vsub.f32 0.0, %v393
    %v395 = vsel %vm25, %v394, 0.0
    %v396 = vmul.f32 %v395, 2.0
    %v397 = vsub.f32 %v396, %v231
    %s398 = scalar_lea.vmem %s1, 160
    %v399 = vld [vmem:[%s398] sm:$0xff]
    %v400 = vld [vmem:[%s398 + $0x8] sm:$0xff]
    %v401 = vld [vmem:[%s398 + $0x10] sm:$0xff]
    %v402 = vld [vmem:[%s398 + $0x18] sm:$0xff]
    %v404 = vsel %vm40, %v397, 0
    %406 = vmatprep.subr.mxu0 0.0
    %407 = vmatpush1.msra.mxu0 %v399
    %408 = vmatprep.subr.mxu0 0.0
    %409 = vmatpush1.msra.mxu0 %v400
    %410 = vmatprep.subr.mxu0 0.0
    %411 = vmatpush1.msra.mxu0 %v401
    %412 = vmatprep.subr.mxu0 0.0
    %413 = vmatpush1.msra.mxu0 %v402
    %414 = vmatprep.subr.mxu0 0.0
    %415 = vmatpush1.msra.mxu0 0.0
    %416 = vmatprep.subr.mxu0 0.0
    %417 = vmatpush1.msra.mxu0 0.0
    %418 = vmatprep.subr.mxu0 0.0
    %419 = vmatpush1.msra.mxu0 0.0
    %420 = vmatprep.subr.mxu0 0.0
    %421 = vmatpush1.msra.mxu0 0.0
    %422 = vmatprep.subr.mxu0 0.0
    %423 = vmatpush1.msra.mxu0 0.0
    %424 = vmatprep.subr.mxu0 0.0
    %425 = vmatpush1.msra.mxu0 0.0
    %426 = vmatprep.subr.mxu0 0.0
    %427 = vmatpush1.msra.mxu0 0.0
    %428 = vmatprep.subr.mxu0 0.0
    %429 = vmatpush1.msra.mxu0 0.0
    %430 = vmatprep.subr.mxu0 0.0
    %431 = vmatpush1.msra.mxu0 0.0
    %432 = vmatprep.subr.mxu0 0.0
    %433 = vmatpush1.msra.mxu0 0.0
    %434 = vmatprep.subr.mxu0 0.0
    %435 = vmatpush1.msra.mxu0 0.0
    %436 = vmatprep.subr.mxu0 0.0
    %437 = vmatpush1.msra.mxu0 0.0
    %438 = vmatprep.subr.mxu0 0.0
    %439 = vmatpush1.msra.mxu0 0.0
    %440 = vmatprep.subr.mxu0 0.0
    %441 = vmatpush1.msra.mxu0 0.0
    %442 = vmatprep.subr.mxu0 0.0
    %443 = vmatpush1.msra.mxu0 0.0
    %444 = vmatprep.subr.mxu0 0.0
    %445 = vmatpush1.msra.mxu0 0.0
    %446 = vmatprep.subr.mxu0 0.0
    %447 = vmatpush1.msra.mxu0 0.0
    %448 = vmatprep.subr.mxu0 0.0
    %449 = vmatpush1.msra.mxu0 0.0
    %450 = vmatprep.subr.mxu0 0.0
    %451 = vmatpush1.msra.mxu0 0.0
    %452 = vmatprep.subr.mxu0 0.0
    %453 = vmatpush1.msra.mxu0 0.0
    %454 = vmatprep.subr.mxu0 0.0
    %455 = vmatpush1.msra.mxu0 0.0
    %456 = vmatprep.subr.mxu0 0.0
    %457 = vmatpush1.msra.mxu0 0.0
    %458 = vmatprep.subr.mxu0 0.0
    %459 = vmatpush1.msra.mxu0 0.0
    %460 = vmatprep.subr.mxu0 0.0
    %461 = vmatpush1.msra.mxu0 0.0
    %462 = vmatprep.subr.mxu0 0.0
    %463 = vmatpush1.msra.mxu0 0.0
    %464 = vmatprep.subr.mxu0 0.0
    %465 = vmatpush1.msra.mxu0 0.0
    %466 = vmatprep.subr.mxu0 0.0
    %467 = vmatpush1.msra.mxu0 0.0
    %468 = vmatprep.subr.mxu0 0.0
    %469 = vmatpush1.msra.mxu0 0.0
    %470 = vmatprep.mubr.f32.mxu0 0.0
    %471 = vmatmul.mubr.f32.gmra.mrb[0].mxu0 %v404
    %v472 = vpop.f32.mrb[0].mxu0
    %v473 = vadd.f32 0.0, %v472
    %v474 = vpop.f32.mrb[0].mxu0
    %475 = vdwg.mxu0
    %v476 = vadd.f32 %v390, %v473
    %v477 = vlaneseq
    %v478 = vshrl.u32 %v477, 7
    %v479 = vsub.s32 0, %v478
    %v480 = vrot.slane %v233, %v479
    %v481 = vadd.f32 %v476, %v480
    %v482 = vsel %vm40, %v481, 0.0
    %v483 = vrot.slane %v482, 4
    %v484 = vadd.f32 %v482, %v483
    %v485 = vrot.slane %v484, 2
    %v486 = vadd.f32 %v484, %v485
    %v487 = vrot.slane %v486, 1
    %v488 = vadd.f32 %v486, %v487
    %v489 = vmul.f32 %v488, %v199
    %v490 = vmul.f32 %v489, %v233
    %v491 = vlaneseq
    %v492 = vshrl.u32 %v491, 7
    %v493 = vsub.s32 3, %v492
    %v494 = vrot.slane %v490, %v493
    %v495 = vsub.f32 %v481, %v494
    %v496 = vmul.f32 %v495, %v495
    %v497 = vsel %vm40, %v496, 0.0
    %v498 = vrot.slane %v497, 4
    %v499 = vadd.f32 %v497, %v498
    %v500 = vrot.slane %v499, 2
    %v501 = vadd.f32 %v499, %v500
    %v502 = vrot.slane %v501, 1
    %v503 = vadd.f32 %v501, %v502
    %v504 = vmul.f32 %v503, %v199
    %v505 = vlaneseq
    %v506 = vshrl.u32 %v505, 7
    %v507 = vsub.s32 1, %v506
    %v508 = vrot.slane %v233, %v507
    %v509 = vmul.f32 %v508, %v495
    %v510 = vadd.f32 %v504, 1e-05
    %v511 = vrsqrt.pop %v510
    %v512 = vmul.f32 %v509, %v511
    %v513 = vlaneseq
    %v514 = vshrl.u32 %v513, 7
    %v515 = vsub.s32 2, %v514
    %v516 = vrot.slane %v233, %v515
    %v517 = vadd.f32 %v512, %v516
    %vm518 = vcmp.ge.f32.partialorder %v517, 0.0
    %v519 = vmul.f32 %v517, 0.2
    %v520 = vsel %vm518, %v517, %v519
    %s521 = scalar_lea.vmem %s2, 16
    %v522 = vld [vmem:[%s521] sm:$0xff]
    %s523 = scalar_lea.vmem %s1, 192
    %v524 = vld [vmem:[%s523] sm:$0xff]
    %v525 = vld [vmem:[%s523 + $0x8] sm:$0xff]
    %v526 = vld [vmem:[%s523 + $0x10] sm:$0xff]
    %v527 = vld [vmem:[%s523 + $0x18] sm:$0xff]
    %v528 = vrot.slane %v520, 7
    %v529 = vsub.f32 0.0, %v528
    %v530 = vsel %vm25, %v529, 0.0
    %s531 = scalar_lea.vmem %s1, 224
    %v532 = vld [vmem:[%s531] sm:$0xff]
    %v533 = vld [vmem:[%s531 + $0x8] sm:$0xff]
    %v534 = vld [vmem:[%s531 + $0x10] sm:$0xff]
    %v535 = vld [vmem:[%s531 + $0x18] sm:$0xff]
    %v537 = vsel %vm40, %v530, 0
    %539 = vmatprep.subr.mxu0 0.0
    %540 = vmatpush1.msra.mxu0 %v532
    %541 = vmatprep.subr.mxu0 0.0
    %542 = vmatpush1.msra.mxu0 %v533
    %543 = vmatprep.subr.mxu0 0.0
    %544 = vmatpush1.msra.mxu0 %v534
    %545 = vmatprep.subr.mxu0 0.0
    %546 = vmatpush1.msra.mxu0 %v535
    %547 = vmatprep.subr.mxu0 0.0
    %548 = vmatpush1.msra.mxu0 0.0
    %549 = vmatprep.subr.mxu0 0.0
    %550 = vmatpush1.msra.mxu0 0.0
    %551 = vmatprep.subr.mxu0 0.0
    %552 = vmatpush1.msra.mxu0 0.0
    %553 = vmatprep.subr.mxu0 0.0
    %554 = vmatpush1.msra.mxu0 0.0
    %555 = vmatprep.subr.mxu0 0.0
    %556 = vmatpush1.msra.mxu0 0.0
    %557 = vmatprep.subr.mxu0 0.0
    %558 = vmatpush1.msra.mxu0 0.0
    %559 = vmatprep.subr.mxu0 0.0
    %560 = vmatpush1.msra.mxu0 0.0
    %561 = vmatprep.subr.mxu0 0.0
    %562 = vmatpush1.msra.mxu0 0.0
    %563 = vmatprep.subr.mxu0 0.0
    %564 = vmatpush1.msra.mxu0 0.0
    %565 = vmatprep.subr.mxu0 0.0
    %566 = vmatpush1.msra.mxu0 0.0
    %567 = vmatprep.subr.mxu0 0.0
    %568 = vmatpush1.msra.mxu0 0.0
    %569 = vmatprep.subr.mxu0 0.0
    %570 = vmatpush1.msra.mxu0 0.0
    %571 = vmatprep.subr.mxu0 0.0
    %572 = vmatpush1.msra.mxu0 0.0
    %573 = vmatprep.subr.mxu0 0.0
    %574 = vmatpush1.msra.mxu0 0.0
    %575 = vmatprep.subr.mxu0 0.0
    %576 = vmatpush1.msra.mxu0 0.0
    %577 = vmatprep.subr.mxu0 0.0
    %578 = vmatpush1.msra.mxu0 0.0
    %579 = vmatprep.subr.mxu0 0.0
    %580 = vmatpush1.msra.mxu0 0.0
    %581 = vmatprep.subr.mxu0 0.0
    %582 = vmatpush1.msra.mxu0 0.0
    %583 = vmatprep.subr.mxu0 0.0
    %584 = vmatpush1.msra.mxu0 0.0
    %585 = vmatprep.subr.mxu0 0.0
    %586 = vmatpush1.msra.mxu0 0.0
    %587 = vmatprep.subr.mxu0 0.0
    %588 = vmatpush1.msra.mxu0 0.0
    %589 = vmatprep.subr.mxu0 0.0
    %590 = vmatpush1.msra.mxu0 0.0
    %591 = vmatprep.subr.mxu0 0.0
    %592 = vmatpush1.msra.mxu0 0.0
    %593 = vmatprep.subr.mxu0 0.0
    %594 = vmatpush1.msra.mxu0 0.0
    %595 = vmatprep.subr.mxu0 0.0
    %596 = vmatpush1.msra.mxu0 0.0
    %597 = vmatprep.subr.mxu0 0.0
    %598 = vmatpush1.msra.mxu0 0.0
    %599 = vmatprep.subr.mxu0 0.0
    %600 = vmatpush1.msra.mxu0 0.0
    %601 = vmatprep.subr.mxu0 0.0
    %602 = vmatpush1.msra.mxu0 0.0
    %603 = vmatprep.mubr.f32.mxu0 0.0
    %604 = vmatmul.mubr.f32.gmra.mrb[0].mxu0 %v537
    %v605 = vpop.f32.mrb[0].mxu0
    %v606 = vadd.f32 0.0, %v605
    %v607 = vpop.f32.mrb[0].mxu0
    %608 = vdwg.mxu0
    %v610 = vsel %vm40, %v520, 0
    %612 = vmatprep.subr.mxu0 0.0
    %613 = vmatpush1.msra.mxu0 %v524
    %614 = vmatprep.subr.mxu0 0.0
    %615 = vmatpush1.msra.mxu0 %v525
    %616 = vmatprep.subr.mxu0 0.0
    %617 = vmatpush1.msra.mxu0 %v526
    %618 = vmatprep.subr.mxu0 0.0
    %619 = vmatpush1.msra.mxu0 %v527
    %620 = vmatprep.subr.mxu0 0.0
    %621 = vmatpush1.msra.mxu0 0.0
    %622 = vmatprep.subr.mxu0 0.0
    %623 = vmatpush1.msra.mxu0 0.0
    %624 = vmatprep.subr.mxu0 0.0
    %625 = vmatpush1.msra.mxu0 0.0
    %626 = vmatprep.subr.mxu0 0.0
    %627 = vmatpush1.msra.mxu0 0.0
    %628 = vmatprep.subr.mxu0 0.0
    %629 = vmatpush1.msra.mxu0 0.0
    %630 = vmatprep.subr.mxu0 0.0
    %631 = vmatpush1.msra.mxu0 0.0
    %632 = vmatprep.subr.mxu0 0.0
    %633 = vmatpush1.msra.mxu0 0.0
    %634 = vmatprep.subr.mxu0 0.0
    %635 = vmatpush1.msra.mxu0 0.0
    %636 = vmatprep.subr.mxu0 0.0
    %637 = vmatpush1.msra.mxu0 0.0
    %638 = vmatprep.subr.mxu0 0.0
    %639 = vmatpush1.msra.mxu0 0.0
    %640 = vmatprep.subr.mxu0 0.0
    %641 = vmatpush1.msra.mxu0 0.0
    %642 = vmatprep.subr.mxu0 0.0
    %643 = vmatpush1.msra.mxu0 0.0
    %644 = vmatprep.subr.mxu0 0.0
    %645 = vmatpush1.msra.mxu0 0.0
    %646 = vmatprep.subr.mxu0 0.0
    %647 = vmatpush1.msra.mxu0 0.0
    %648 = vmatprep.subr.mxu0 0.0
    %649 = vmatpush1.msra.mxu0 0.0
    %650 = vmatprep.subr.mxu0 0.0
    %651 = vmatpush1.msra.mxu0 0.0
    %652 = vmatprep.subr.mxu0 0.0
    %653 = vmatpush1.msra.mxu0 0.0
    %654 = vmatprep.subr.mxu0 0.0
    %655 = vmatpush1.msra.mxu0 0.0
    %656 = vmatprep.subr.mxu0 0.0
    %657 = vmatpush1.msra.mxu0 0.0
    %658 = vmatprep.subr.mxu0 0.0
    %659 = vmatpush1.msra.mxu0 0.0
    %660 = vmatprep.subr.mxu0 0.0
    %661 = vmatpush1.msra.mxu0 0.0
    %662 = vmatprep.subr.mxu0 0.0
    %663 = vmatpush1.msra.mxu0 0.0
    %664 = vmatprep.subr.mxu0 0.0
    %665 = vmatpush1.msra.mxu0 0.0
    %666 = vmatprep.subr.mxu0 0.0
    %667 = vmatpush1.msra.mxu0 0.0
    %668 = vmatprep.subr.mxu0 0.0
    %669 = vmatpush1.msra.mxu0 0.0
    %670 = vmatprep.subr.mxu0 0.0
    %671 = vmatpush1.msra.mxu0 0.0
    %672 = vmatprep.subr.mxu0 0.0
    %673 = vmatpush1.msra.mxu0 0.0
    %674 = vmatprep.subr.mxu0 0.0
    %675 = vmatpush1.msra.mxu0 0.0
    %676 = vmatprep.mubr.f32.mxu0 0.0
    %677 = vmatmul.mubr.f32.gmra.mrb[0].mxu0 %v610
    %v678 = vpop.f32.mrb[0].mxu0
    %v679 = vadd.f32 %v606, %v678
    %v680 = vpop.f32.mrb[0].mxu0
    %681 = vdwg.mxu0
    %v682 = vrot.slane %v530, 7
    %v683 = vsub.f32 0.0, %v682
    %v684 = vsel %vm25, %v683, 0.0
    %v685 = vmul.f32 %v684, 2.0
    %v686 = vsub.f32 %v685, %v520
    %s687 = scalar_lea.vmem %s1, 256
    %v688 = vld [vmem:[%s687] sm:$0xff]
    %v689 = vld [vmem:[%s687 + $0x8] sm:$0xff]
    %v690 = vld [vmem:[%s687 + $0x10] sm:$0xff]
    %v691 = vld [vmem:[%s687 + $0x18] sm:$0xff]
    %v693 = vsel %vm40, %v686, 0
    %695 = vmatprep.subr.mxu0 0.0
    %696 = vmatpush1.msra.mxu0 %v688
    %697 = vmatprep.subr.mxu0 0.0
    %698 = vmatpush1.msra.mxu0 %v689
    %699 = vmatprep.subr.mxu0 0.0
    %700 = vmatpush1.msra.mxu0 %v690
    %701 = vmatprep.subr.mxu0 0.0
    %702 = vmatpush1.msra.mxu0 %v691
    %703 = vmatprep.subr.mxu0 0.0
    %704 = vmatpush1.msra.mxu0 0.0
    %705 = vmatprep.subr.mxu0 0.0
    %706 = vmatpush1.msra.mxu0 0.0
    %707 = vmatprep.subr.mxu0 0.0
    %708 = vmatpush1.msra.mxu0 0.0
    %709 = vmatprep.subr.mxu0 0.0
    %710 = vmatpush1.msra.mxu0 0.0
    %711 = vmatprep.subr.mxu0 0.0
    %712 = vmatpush1.msra.mxu0 0.0
    %713 = vmatprep.subr.mxu0 0.0
    %714 = vmatpush1.msra.mxu0 0.0
    %715 = vmatprep.subr.mxu0 0.0
    %716 = vmatpush1.msra.mxu0 0.0
    %717 = vmatprep.subr.mxu0 0.0
    %718 = vmatpush1.msra.mxu0 0.0
    %719 = vmatprep.subr.mxu0 0.0
    %720 = vmatpush1.msra.mxu0 0.0
    %721 = vmatprep.subr.mxu0 0.0
    %722 = vmatpush1.msra.mxu0 0.0
    %723 = vmatprep.subr.mxu0 0.0
    %724 = vmatpush1.msra.mxu0 0.0
    %725 = vmatprep.subr.mxu0 0.0
    %726 = vmatpush1.msra.mxu0 0.0
    %727 = vmatprep.subr.mxu0 0.0
    %728 = vmatpush1.msra.mxu0 0.0
    %729 = vmatprep.subr.mxu0 0.0
    %730 = vmatpush1.msra.mxu0 0.0
    %731 = vmatprep.subr.mxu0 0.0
    %732 = vmatpush1.msra.mxu0 0.0
    %733 = vmatprep.subr.mxu0 0.0
    %734 = vmatpush1.msra.mxu0 0.0
    %735 = vmatprep.subr.mxu0 0.0
    %736 = vmatpush1.msra.mxu0 0.0
    %737 = vmatprep.subr.mxu0 0.0
    %738 = vmatpush1.msra.mxu0 0.0
    %739 = vmatprep.subr.mxu0 0.0
    %740 = vmatpush1.msra.mxu0 0.0
    %741 = vmatprep.subr.mxu0 0.0
    %742 = vmatpush1.msra.mxu0 0.0
    %743 = vmatprep.subr.mxu0 0.0
    %744 = vmatpush1.msra.mxu0 0.0
    %745 = vmatprep.subr.mxu0 0.0
    %746 = vmatpush1.msra.mxu0 0.0
    %747 = vmatprep.subr.mxu0 0.0
    %748 = vmatpush1.msra.mxu0 0.0
    %749 = vmatprep.subr.mxu0 0.0
    %750 = vmatpush1.msra.mxu0 0.0
    %751 = vmatprep.subr.mxu0 0.0
    %752 = vmatpush1.msra.mxu0 0.0
    %753 = vmatprep.subr.mxu0 0.0
    %754 = vmatpush1.msra.mxu0 0.0
    %755 = vmatprep.subr.mxu0 0.0
    %756 = vmatpush1.msra.mxu0 0.0
    %757 = vmatprep.subr.mxu0 0.0
    %758 = vmatpush1.msra.mxu0 0.0
    %759 = vmatprep.mubr.f32.mxu0 0.0
    %760 = vmatmul.mubr.f32.gmra.mrb[0].mxu0 %v693
    %v761 = vpop.f32.mrb[0].mxu0
    %v762 = vadd.f32 0.0, %v761
    %v763 = vpop.f32.mrb[0].mxu0
    %764 = vdwg.mxu0
    %v765 = vadd.f32 %v679, %v762
    %v766 = vlaneseq
    %v767 = vshrl.u32 %v766, 7
    %v768 = vsub.s32 0, %v767
    %v769 = vrot.slane %v522, %v768
    %v770 = vadd.f32 %v765, %v769
    %v771 = vsel %vm40, %v770, 0.0
    %v772 = vrot.slane %v771, 4
    %v773 = vadd.f32 %v771, %v772
    %v774 = vrot.slane %v773, 2
    %v775 = vadd.f32 %v773, %v774
    %v776 = vrot.slane %v775, 1
    %v777 = vadd.f32 %v775, %v776
    %v778 = vmul.f32 %v777, %v199
    %v779 = vmul.f32 %v778, %v522
    %v780 = vlaneseq
    %v781 = vshrl.u32 %v780, 7
    %v782 = vsub.s32 3, %v781
    %v783 = vrot.slane %v779, %v782
    %v784 = vsub.f32 %v770, %v783
    %v785 = vmul.f32 %v784, %v784
    %v786 = vsel %vm40, %v785, 0.0
    %v787 = vrot.slane %v786, 4
    %v788 = vadd.f32 %v786, %v787
    %v789 = vrot.slane %v788, 2
    %v790 = vadd.f32 %v788, %v789
    %v791 = vrot.slane %v790, 1
    %v792 = vadd.f32 %v790, %v791
    %v793 = vmul.f32 %v792, %v199
    %v794 = vlaneseq
    %v795 = vshrl.u32 %v794, 7
    %v796 = vsub.s32 1, %v795
    %v797 = vrot.slane %v522, %v796
    %v798 = vmul.f32 %v797, %v784
    %v799 = vadd.f32 %v793, 1e-05
    %v800 = vrsqrt.pop %v799
    %v801 = vmul.f32 %v798, %v800
    %v802 = vlaneseq
    %v803 = vshrl.u32 %v802, 7
    %v804 = vsub.s32 2, %v803
    %v805 = vrot.slane %v522, %v804
    %v806 = vadd.f32 %v801, %v805
    %vm807 = vcmp.ge.f32.partialorder %v806, 0.0
    %v808 = vmul.f32 %v806, 0.2
    %v809 = vsel %vm807, %v806, %v808
    %s810 = scalar_lea.vmem %s2, 24
    %v811 = vld [vmem:[%s810] sm:$0xff]
    %s812 = scalar_lea.vmem %s1, 288
    %v813 = vld [vmem:[%s812] sm:$0xff]
    %v814 = vld [vmem:[%s812 + $0x8] sm:$0xff]
    %v815 = vld [vmem:[%s812 + $0x10] sm:$0xff]
    %v816 = vld [vmem:[%s812 + $0x18] sm:$0xff]
    %v817 = vrot.slane %v809, 7
    %v818 = vsub.f32 0.0, %v817
    %v819 = vsel %vm25, %v818, 0.0
    %s820 = scalar_lea.vmem %s1, 320
    %v821 = vld [vmem:[%s820] sm:$0xff]
    %v822 = vld [vmem:[%s820 + $0x8] sm:$0xff]
    %v823 = vld [vmem:[%s820 + $0x10] sm:$0xff]
    %v824 = vld [vmem:[%s820 + $0x18] sm:$0xff]
    %v826 = vsel %vm40, %v819, 0
    %828 = vmatprep.subr.mxu0 0.0
    %829 = vmatpush1.msra.mxu0 %v821
    %830 = vmatprep.subr.mxu0 0.0
    %831 = vmatpush1.msra.mxu0 %v822
    %832 = vmatprep.subr.mxu0 0.0
    %833 = vmatpush1.msra.mxu0 %v823
    %834 = vmatprep.subr.mxu0 0.0
    %835 = vmatpush1.msra.mxu0 %v824
    %836 = vmatprep.subr.mxu0 0.0
    %837 = vmatpush1.msra.mxu0 0.0
    %838 = vmatprep.subr.mxu0 0.0
    %839 = vmatpush1.msra.mxu0 0.0
    %840 = vmatprep.subr.mxu0 0.0
    %841 = vmatpush1.msra.mxu0 0.0
    %842 = vmatprep.subr.mxu0 0.0
    %843 = vmatpush1.msra.mxu0 0.0
    %844 = vmatprep.subr.mxu0 0.0
    %845 = vmatpush1.msra.mxu0 0.0
    %846 = vmatprep.subr.mxu0 0.0
    %847 = vmatpush1.msra.mxu0 0.0
    %848 = vmatprep.subr.mxu0 0.0
    %849 = vmatpush1.msra.mxu0 0.0
    %850 = vmatprep.subr.mxu0 0.0
    %851 = vmatpush1.msra.mxu0 0.0
    %852 = vmatprep.subr.mxu0 0.0
    %853 = vmatpush1.msra.mxu0 0.0
    %854 = vmatprep.subr.mxu0 0.0
    %855 = vmatpush1.msra.mxu0 0.0
    %856 = vmatprep.subr.mxu0 0.0
    %857 = vmatpush1.msra.mxu0 0.0
    %858 = vmatprep.subr.mxu0 0.0
    %859 = vmatpush1.msra.mxu0 0.0
    %860 = vmatprep.subr.mxu0 0.0
    %861 = vmatpush1.msra.mxu0 0.0
    %862 = vmatprep.subr.mxu0 0.0
    %863 = vmatpush1.msra.mxu0 0.0
    %864 = vmatprep.subr.mxu0 0.0
    %865 = vmatpush1.msra.mxu0 0.0
    %866 = vmatprep.subr.mxu0 0.0
    %867 = vmatpush1.msra.mxu0 0.0
    %868 = vmatprep.subr.mxu0 0.0
    %869 = vmatpush1.msra.mxu0 0.0
    %870 = vmatprep.subr.mxu0 0.0
    %871 = vmatpush1.msra.mxu0 0.0
    %872 = vmatprep.subr.mxu0 0.0
    %873 = vmatpush1.msra.mxu0 0.0
    %874 = vmatprep.subr.mxu0 0.0
    %875 = vmatpush1.msra.mxu0 0.0
    %876 = vmatprep.subr.mxu0 0.0
    %877 = vmatpush1.msra.mxu0 0.0
    %878 = vmatprep.subr.mxu0 0.0
    %879 = vmatpush1.msra.mxu0 0.0
    %880 = vmatprep.subr.mxu0 0.0
    %881 = vmatpush1.msra.mxu0 0.0
    %882 = vmatprep.subr.mxu0 0.0
    %883 = vmatpush1.msra.mxu0 0.0
    %884 = vmatprep.subr.mxu0 0.0
    %885 = vmatpush1.msra.mxu0 0.0
    %886 = vmatprep.subr.mxu0 0.0
    %887 = vmatpush1.msra.mxu0 0.0
    %888 = vmatprep.subr.mxu0 0.0
    %889 = vmatpush1.msra.mxu0 0.0
    %890 = vmatprep.subr.mxu0 0.0
    %891 = vmatpush1.msra.mxu0 0.0
    %892 = vmatprep.mubr.f32.mxu0 0.0
    %893 = vmatmul.mubr.f32.gmra.mrb[0].mxu0 %v826
    %v894 = vpop.f32.mrb[0].mxu0
    %v895 = vadd.f32 0.0, %v894
    %v896 = vpop.f32.mrb[0].mxu0
    %897 = vdwg.mxu0
    %v899 = vsel %vm40, %v809, 0
    %901 = vmatprep.subr.mxu0 0.0
    %902 = vmatpush1.msra.mxu0 %v813
    %903 = vmatprep.subr.mxu0 0.0
    %904 = vmatpush1.msra.mxu0 %v814
    %905 = vmatprep.subr.mxu0 0.0
    %906 = vmatpush1.msra.mxu0 %v815
    %907 = vmatprep.subr.mxu0 0.0
    %908 = vmatpush1.msra.mxu0 %v816
    %909 = vmatprep.subr.mxu0 0.0
    %910 = vmatpush1.msra.mxu0 0.0
    %911 = vmatprep.subr.mxu0 0.0
    %912 = vmatpush1.msra.mxu0 0.0
    %913 = vmatprep.subr.mxu0 0.0
    %914 = vmatpush1.msra.mxu0 0.0
    %915 = vmatprep.subr.mxu0 0.0
    %916 = vmatpush1.msra.mxu0 0.0
    %917 = vmatprep.subr.mxu0 0.0
    %918 = vmatpush1.msra.mxu0 0.0
    %919 = vmatprep.subr.mxu0 0.0
    %920 = vmatpush1.msra.mxu0 0.0
    %921 = vmatprep.subr.mxu0 0.0
    %922 = vmatpush1.msra.mxu0 0.0
    %923 = vmatprep.subr.mxu0 0.0
    %924 = vmatpush1.msra.mxu0 0.0
    %925 = vmatprep.subr.mxu0 0.0
    %926 = vmatpush1.msra.mxu0 0.0
    %927 = vmatprep.subr.mxu0 0.0
    %928 = vmatpush1.msra.mxu0 0.0
    %929 = vmatprep.subr.mxu0 0.0
    %930 = vmatpush1.msra.mxu0 0.0
    %931 = vmatprep.subr.mxu0 0.0
    %932 = vmatpush1.msra.mxu0 0.0
    %933 = vmatprep.subr.mxu0 0.0
    %934 = vmatpush1.msra.mxu0 0.0
    %935 = vmatprep.subr.mxu0 0.0
    %936 = vmatpush1.msra.mxu0 0.0
    %937 = vmatprep.subr.mxu0 0.0
    %938 = vmatpush1.msra.mxu0 0.0
    %939 = vmatprep.subr.mxu0 0.0
    %940 = vmatpush1.msra.mxu0 0.0
    %941 = vmatprep.subr.mxu0 0.0
    %942 = vmatpush1.msra.mxu0 0.0
    %943 = vmatprep.subr.mxu0 0.0
    %944 = vmatpush1.msra.mxu0 0.0
    %945 = vmatprep.subr.mxu0 0.0
    %946 = vmatpush1.msra.mxu0 0.0
    %947 = vmatprep.subr.mxu0 0.0
    %948 = vmatpush1.msra.mxu0 0.0
    %949 = vmatprep.subr.mxu0 0.0
    %950 = vmatpush1.msra.mxu0 0.0
    %951 = vmatprep.subr.mxu0 0.0
    %952 = vmatpush1.msra.mxu0 0.0
    %953 = vmatprep.subr.mxu0 0.0
    %954 = vmatpush1.msra.mxu0 0.0
    %955 = vmatprep.subr.mxu0 0.0
    %956 = vmatpush1.msra.mxu0 0.0
    %957 = vmatprep.subr.mxu0 0.0
    %958 = vmatpush1.msra.mxu0 0.0
    %959 = vmatprep.subr.mxu0 0.0
    %960 = vmatpush1.msra.mxu0 0.0
    %961 = vmatprep.subr.mxu0 0.0
    %962 = vmatpush1.msra.mxu0 0.0
    %963 = vmatprep.subr.mxu0 0.0
    %964 = vmatpush1.msra.mxu0 0.0
    %965 = vmatprep.mubr.f32.mxu0 0.0
    %966 = vmatmul.mubr.f32.gmra.mrb[0].mxu0 %v899
    %v967 = vpop.f32.mrb[0].mxu0
    %v968 = vadd.f32 %v895, %v967
    %v969 = vpop.f32.mrb[0].mxu0
    %970 = vdwg.mxu0
    %v971 = vlaneseq
    %v972 = vshrl.u32 %v971, 7
    %v973 = vsub.s32 0, %v972
    %v974 = vrot.slane %v811, %v973
    %v975 = vadd.f32 %v968, %v974
    %v976 = vadd.f32 %v975, %v26
    %v977 = vmax.f32 %v976, 0.0
    %s978 = scalar_lea.vmem %s2, 32
    %v979 = vld [vmem:[%s978] sm:$0xff]
    %s980 = scalar_lea.vmem %s1, 384
    %v981 = vld [vmem:[%s980] sm:$0xff]
    %v982 = vld [vmem:[%s980 + $0x8] sm:$0xff]
    %v983 = vld [vmem:[%s980 + $0x10] sm:$0xff]
    %v984 = vld [vmem:[%s980 + $0x18] sm:$0xff]
    %v985 = vrot.slane %v977, 7
    %v986 = vsub.f32 0.0, %v985
    %v987 = vsel %vm25, %v986, 0.0
    %s988 = scalar_lea.vmem %s1, 416
    %v989 = vld [vmem:[%s988] sm:$0xff]
    %v990 = vld [vmem:[%s988 + $0x8] sm:$0xff]
    %v991 = vld [vmem:[%s988 + $0x10] sm:$0xff]
    %v992 = vld [vmem:[%s988 + $0x18] sm:$0xff]
    %v994 = vsel %vm40, %v987, 0
    %996 = vmatprep.subr.mxu0 0.0
    %997 = vmatpush1.msra.mxu0 %v989
    %998 = vmatprep.subr.mxu0 0.0
    %999 = vmatpush1.msra.mxu0 %v990
    %1000 = vmatprep.subr.mxu0 0.0
    %1001 = vmatpush1.msra.mxu0 %v991
    %1002 = vmatprep.subr.mxu0 0.0
    %1003 = vmatpush1.msra.mxu0 %v992
    %1004 = vmatprep.subr.mxu0 0.0
    %1005 = vmatpush1.msra.mxu0 0.0
    %1006 = vmatprep.subr.mxu0 0.0
    %1007 = vmatpush1.msra.mxu0 0.0
    %1008 = vmatprep.subr.mxu0 0.0
    %1009 = vmatpush1.msra.mxu0 0.0
    %1010 = vmatprep.subr.mxu0 0.0
    %1011 = vmatpush1.msra.mxu0 0.0
    %1012 = vmatprep.subr.mxu0 0.0
    %1013 = vmatpush1.msra.mxu0 0.0
    %1014 = vmatprep.subr.mxu0 0.0
    %1015 = vmatpush1.msra.mxu0 0.0
    %1016 = vmatprep.subr.mxu0 0.0
    %1017 = vmatpush1.msra.mxu0 0.0
    %1018 = vmatprep.subr.mxu0 0.0
    %1019 = vmatpush1.msra.mxu0 0.0
    %1020 = vmatprep.subr.mxu0 0.0
    %1021 = vmatpush1.msra.mxu0 0.0
    %1022 = vmatprep.subr.mxu0 0.0
    %1023 = vmatpush1.msra.mxu0 0.0
    %1024 = vmatprep.subr.mxu0 0.0
    %1025 = vmatpush1.msra.mxu0 0.0
    %1026 = vmatprep.subr.mxu0 0.0
    %1027 = vmatpush1.msra.mxu0 0.0
    %1028 = vmatprep.subr.mxu0 0.0
    %1029 = vmatpush1.msra.mxu0 0.0
    %1030 = vmatprep.subr.mxu0 0.0
    %1031 = vmatpush1.msra.mxu0 0.0
    %1032 = vmatprep.subr.mxu0 0.0
    %1033 = vmatpush1.msra.mxu0 0.0
    %1034 = vmatprep.subr.mxu0 0.0
    %1035 = vmatpush1.msra.mxu0 0.0
    %1036 = vmatprep.subr.mxu0 0.0
    %1037 = vmatpush1.msra.mxu0 0.0
    %1038 = vmatprep.subr.mxu0 0.0
    %1039 = vmatpush1.msra.mxu0 0.0
    %1040 = vmatprep.subr.mxu0 0.0
    %1041 = vmatpush1.msra.mxu0 0.0
    %1042 = vmatprep.subr.mxu0 0.0
    %1043 = vmatpush1.msra.mxu0 0.0
    %1044 = vmatprep.subr.mxu0 0.0
    %1045 = vmatpush1.msra.mxu0 0.0
    %1046 = vmatprep.subr.mxu0 0.0
    %1047 = vmatpush1.msra.mxu0 0.0
    %1048 = vmatprep.subr.mxu0 0.0
    %1049 = vmatpush1.msra.mxu0 0.0
    %1050 = vmatprep.subr.mxu0 0.0
    %1051 = vmatpush1.msra.mxu0 0.0
    %1052 = vmatprep.subr.mxu0 0.0
    %1053 = vmatpush1.msra.mxu0 0.0
    %1054 = vmatprep.subr.mxu0 0.0
    %1055 = vmatpush1.msra.mxu0 0.0
    %1056 = vmatprep.subr.mxu0 0.0
    %1057 = vmatpush1.msra.mxu0 0.0
    %1058 = vmatprep.subr.mxu0 0.0
    %1059 = vmatpush1.msra.mxu0 0.0
    %1060 = vmatprep.mubr.f32.mxu0 0.0
    %1061 = vmatmul.mubr.f32.gmra.mrb[0].mxu0 %v994
    %v1062 = vpop.f32.mrb[0].mxu0
    %v1063 = vadd.f32 0.0, %v1062
    %v1064 = vpop.f32.mrb[0].mxu0
    %1065 = vdwg.mxu0
    %v1067 = vsel %vm40, %v977, 0
    %1069 = vmatprep.subr.mxu0 0.0
    %1070 = vmatpush1.msra.mxu0 %v981
    %1071 = vmatprep.subr.mxu0 0.0
    %1072 = vmatpush1.msra.mxu0 %v982
    %1073 = vmatprep.subr.mxu0 0.0
    %1074 = vmatpush1.msra.mxu0 %v983
    %1075 = vmatprep.subr.mxu0 0.0
    %1076 = vmatpush1.msra.mxu0 %v984
    %1077 = vmatprep.subr.mxu0 0.0
    %1078 = vmatpush1.msra.mxu0 0.0
    %1079 = vmatprep.subr.mxu0 0.0
    %1080 = vmatpush1.msra.mxu0 0.0
    %1081 = vmatprep.subr.mxu0 0.0
    %1082 = vmatpush1.msra.mxu0 0.0
    %1083 = vmatprep.subr.mxu0 0.0
    %1084 = vmatpush1.msra.mxu0 0.0
    %1085 = vmatprep.subr.mxu0 0.0
    %1086 = vmatpush1.msra.mxu0 0.0
    %1087 = vmatprep.subr.mxu0 0.0
    %1088 = vmatpush1.msra.mxu0 0.0
    %1089 = vmatprep.subr.mxu0 0.0
    %1090 = vmatpush1.msra.mxu0 0.0
    %1091 = vmatprep.subr.mxu0 0.0
    %1092 = vmatpush1.msra.mxu0 0.0
    %1093 = vmatprep.subr.mxu0 0.0
    %1094 = vmatpush1.msra.mxu0 0.0
    %1095 = vmatprep.subr.mxu0 0.0
    %1096 = vmatpush1.msra.mxu0 0.0
    %1097 = vmatprep.subr.mxu0 0.0
    %1098 = vmatpush1.msra.mxu0 0.0
    %1099 = vmatprep.subr.mxu0 0.0
    %1100 = vmatpush1.msra.mxu0 0.0
    %1101 = vmatprep.subr.mxu0 0.0
    %1102 = vmatpush1.msra.mxu0 0.0
    %1103 = vmatprep.subr.mxu0 0.0
    %1104 = vmatpush1.msra.mxu0 0.0
    %1105 = vmatprep.subr.mxu0 0.0
    %1106 = vmatpush1.msra.mxu0 0.0
    %1107 = vmatprep.subr.mxu0 0.0
    %1108 = vmatpush1.msra.mxu0 0.0
    %1109 = vmatprep.subr.mxu0 0.0
    %1110 = vmatpush1.msra.mxu0 0.0
    %1111 = vmatprep.subr.mxu0 0.0
    %1112 = vmatpush1.msra.mxu0 0.0
    %1113 = vmatprep.subr.mxu0 0.0
    %1114 = vmatpush1.msra.mxu0 0.0
    %1115 = vmatprep.subr.mxu0 0.0
    %1116 = vmatpush1.msra.mxu0 0.0
    %1117 = vmatprep.subr.mxu0 0.0
    %1118 = vmatpush1.msra.mxu0 0.0
    %1119 = vmatprep.subr.mxu0 0.0
    %1120 = vmatpush1.msra.mxu0 0.0
    %1121 = vmatprep.subr.mxu0 0.0
    %1122 = vmatpush1.msra.mxu0 0.0
    %1123 = vmatprep.subr.mxu0 0.0
    %1124 = vmatpush1.msra.mxu0 0.0
    %1125 = vmatprep.subr.mxu0 0.0
    %1126 = vmatpush1.msra.mxu0 0.0
    %1127 = vmatprep.subr.mxu0 0.0
    %1128 = vmatpush1.msra.mxu0 0.0
    %1129 = vmatprep.subr.mxu0 0.0
    %1130 = vmatpush1.msra.mxu0 0.0
    %1131 = vmatprep.subr.mxu0 0.0
    %1132 = vmatpush1.msra.mxu0 0.0
    %1133 = vmatprep.mubr.f32.mxu0 0.0
    %1134 = vmatmul.mubr.f32.gmra.mrb[0].mxu0 %v1067
    %v1135 = vpop.f32.mrb[0].mxu0
    %v1136 = vadd.f32 %v1063, %v1135
    %v1137 = vpop.f32.mrb[0].mxu0
    %1138 = vdwg.mxu0
    %v1139 = vlaneseq
    %v1140 = vshrl.u32 %v1139, 7
    %v1141 = vsub.s32 0, %v1140
    %v1142 = vrot.slane %v979, %v1141
    %v1143 = vadd.f32 %v1136, %v1142
    %v1144 = vsel %vm40, %v1143, 0.0
    %v1145 = vrot.slane %v1144, 4
    %v1146 = vadd.f32 %v1144, %v1145
    %v1147 = vrot.slane %v1146, 2
    %v1148 = vadd.f32 %v1146, %v1147
    %v1149 = vrot.slane %v1148, 1
    %v1150 = vadd.f32 %v1148, %v1149
    %v1151 = vmul.f32 %v1150, %v199
    %v1152 = vmul.f32 %v1151, %v979
    %v1153 = vlaneseq
    %v1154 = vshrl.u32 %v1153, 7
    %v1155 = vsub.s32 3, %v1154
    %v1156 = vrot.slane %v1152, %v1155
    %v1157 = vsub.f32 %v1143, %v1156
    %v1158 = vmul.f32 %v1157, %v1157
    %v1159 = vsel %vm40, %v1158, 0.0
    %v1160 = vrot.slane %v1159, 4
    %v1161 = vadd.f32 %v1159, %v1160
    %v1162 = vrot.slane %v1161, 2
    %v1163 = vadd.f32 %v1161, %v1162
    %v1164 = vrot.slane %v1163, 1
    %v1165 = vadd.f32 %v1163, %v1164
    %v1166 = vmul.f32 %v1165, %v199
    %v1167 = vlaneseq
    %v1168 = vshrl.u32 %v1167, 7
    %v1169 = vsub.s32 1, %v1168
    %v1170 = vrot.slane %v979, %v1169
    %v1171 = vmul.f32 %v1170, %v1157
    %v1172 = vadd.f32 %v1166, 1e-05
    %v1173 = vrsqrt.pop %v1172
    %v1174 = vmul.f32 %v1171, %v1173
    %v1175 = vlaneseq
    %v1176 = vshrl.u32 %v1175, 7
    %v1177 = vsub.s32 2, %v1176
    %v1178 = vrot.slane %v979, %v1177
    %v1179 = vadd.f32 %v1174, %v1178
    %vm1180 = vcmp.ge.f32.partialorder %v1179, 0.0
    %v1181 = vmul.f32 %v1179, 0.2
    %v1182 = vsel %vm1180, %v1179, %v1181
    %s1183 = scalar_lea.vmem %s2, 40
    %v1184 = vld [vmem:[%s1183] sm:$0xff]
    %s1185 = scalar_lea.vmem %s1, 480
    %v1186 = vld [vmem:[%s1185] sm:$0xff]
    %v1187 = vld [vmem:[%s1185 + $0x8] sm:$0xff]
    %v1188 = vld [vmem:[%s1185 + $0x10] sm:$0xff]
    %v1189 = vld [vmem:[%s1185 + $0x18] sm:$0xff]
    %v1190 = vrot.slane %v1182, 7
    %v1191 = vsub.f32 0.0, %v1190
    %v1192 = vsel %vm25, %v1191, 0.0
    %s1193 = scalar_lea.vmem %s1, 512
    %v1194 = vld [vmem:[%s1193] sm:$0xff]
    %v1195 = vld [vmem:[%s1193 + $0x8] sm:$0xff]
    %v1196 = vld [vmem:[%s1193 + $0x10] sm:$0xff]
    %v1197 = vld [vmem:[%s1193 + $0x18] sm:$0xff]
    %v1199 = vsel %vm40, %v1192, 0
    %1201 = vmatprep.subr.mxu0 0.0
    %1202 = vmatpush1.msra.mxu0 %v1194
    %1203 = vmatprep.subr.mxu0 0.0
    %1204 = vmatpush1.msra.mxu0 %v1195
    %1205 = vmatprep.subr.mxu0 0.0
    %1206 = vmatpush1.msra.mxu0 %v1196
    %1207 = vmatprep.subr.mxu0 0.0
    %1208 = vmatpush1.msra.mxu0 %v1197
    %1209 = vmatprep.subr.mxu0 0.0
    %1210 = vmatpush1.msra.mxu0 0.0
    %1211 = vmatprep.subr.mxu0 0.0
    %1212 = vmatpush1.msra.mxu0 0.0
    %1213 = vmatprep.subr.mxu0 0.0
    %1214 = vmatpush1.msra.mxu0 0.0
    %1215 = vmatprep.subr.mxu0 0.0
    %1216 = vmatpush1.msra.mxu0 0.0
    %1217 = vmatprep.subr.mxu0 0.0
    %1218 = vmatpush1.msra.mxu0 0.0
    %1219 = vmatprep.subr.mxu0 0.0
    %1220 = vmatpush1.msra.mxu0 0.0
    %1221 = vmatprep.subr.mxu0 0.0
    %1222 = vmatpush1.msra.mxu0 0.0
    %1223 = vmatprep.subr.mxu0 0.0
    %1224 = vmatpush1.msra.mxu0 0.0
    %1225 = vmatprep.subr.mxu0 0.0
    %1226 = vmatpush1.msra.mxu0 0.0
    %1227 = vmatprep.subr.mxu0 0.0
    %1228 = vmatpush1.msra.mxu0 0.0
    %1229 = vmatprep.subr.mxu0 0.0
    %1230 = vmatpush1.msra.mxu0 0.0
    %1231 = vmatprep.subr.mxu0 0.0
    %1232 = vmatpush1.msra.mxu0 0.0
    %1233 = vmatprep.subr.mxu0 0.0
    %1234 = vmatpush1.msra.mxu0 0.0
    %1235 = vmatprep.subr.mxu0 0.0
    %1236 = vmatpush1.msra.mxu0 0.0
    %1237 = vmatprep.subr.mxu0 0.0
    %1238 = vmatpush1.msra.mxu0 0.0
    %1239 = vmatprep.subr.mxu0 0.0
    %1240 = vmatpush1.msra.mxu0 0.0
    %1241 = vmatprep.subr.mxu0 0.0
    %1242 = vmatpush1.msra.mxu0 0.0
    %1243 = vmatprep.subr.mxu0 0.0
    %1244 = vmatpush1.msra.mxu0 0.0
    %1245 = vmatprep.subr.mxu0 0.0
    %1246 = vmatpush1.msra.mxu0 0.0
    %1247 = vmatprep.subr.mxu0 0.0
    %1248 = vmatpush1.msra.mxu0 0.0
    %1249 = vmatprep.subr.mxu0 0.0
    %1250 = vmatpush1.msra.mxu0 0.0
    %1251 = vmatprep.subr.mxu0 0.0
    %1252 = vmatpush1.msra.mxu0 0.0
    %1253 = vmatprep.subr.mxu0 0.0
    %1254 = vmatpush1.msra.mxu0 0.0
    %1255 = vmatprep.subr.mxu0 0.0
    %1256 = vmatpush1.msra.mxu0 0.0
    %1257 = vmatprep.subr.mxu0 0.0
    %1258 = vmatpush1.msra.mxu0 0.0
    %1259 = vmatprep.subr.mxu0 0.0
    %1260 = vmatpush1.msra.mxu0 0.0
    %1261 = vmatprep.subr.mxu0 0.0
    %1262 = vmatpush1.msra.mxu0 0.0
    %1263 = vmatprep.subr.mxu0 0.0
    %1264 = vmatpush1.msra.mxu0 0.0
    %1265 = vmatprep.mubr.f32.mxu0 0.0
    %1266 = vmatmul.mubr.f32.gmra.mrb[0].mxu0 %v1199
    %v1267 = vpop.f32.mrb[0].mxu0
    %v1268 = vadd.f32 0.0, %v1267
    %v1269 = vpop.f32.mrb[0].mxu0
    %1270 = vdwg.mxu0
    %v1272 = vsel %vm40, %v1182, 0
    %1274 = vmatprep.subr.mxu0 0.0
    %1275 = vmatpush1.msra.mxu0 %v1186
    %1276 = vmatprep.subr.mxu0 0.0
    %1277 = vmatpush1.msra.mxu0 %v1187
    %1278 = vmatprep.subr.mxu0 0.0
    %1279 = vmatpush1.msra.mxu0 %v1188
    %1280 = vmatprep.subr.mxu0 0.0
    %1281 = vmatpush1.msra.mxu0 %v1189
    %1282 = vmatprep.subr.mxu0 0.0
    %1283 = vmatpush1.msra.mxu0 0.0
    %1284 = vmatprep.subr.mxu0 0.0
    %1285 = vmatpush1.msra.mxu0 0.0
    %1286 = vmatprep.subr.mxu0 0.0
    %1287 = vmatpush1.msra.mxu0 0.0
    %1288 = vmatprep.subr.mxu0 0.0
    %1289 = vmatpush1.msra.mxu0 0.0
    %1290 = vmatprep.subr.mxu0 0.0
    %1291 = vmatpush1.msra.mxu0 0.0
    %1292 = vmatprep.subr.mxu0 0.0
    %1293 = vmatpush1.msra.mxu0 0.0
    %1294 = vmatprep.subr.mxu0 0.0
    %1295 = vmatpush1.msra.mxu0 0.0
    %1296 = vmatprep.subr.mxu0 0.0
    %1297 = vmatpush1.msra.mxu0 0.0
    %1298 = vmatprep.subr.mxu0 0.0
    %1299 = vmatpush1.msra.mxu0 0.0
    %1300 = vmatprep.subr.mxu0 0.0
    %1301 = vmatpush1.msra.mxu0 0.0
    %1302 = vmatprep.subr.mxu0 0.0
    %1303 = vmatpush1.msra.mxu0 0.0
    %1304 = vmatprep.subr.mxu0 0.0
    %1305 = vmatpush1.msra.mxu0 0.0
    %1306 = vmatprep.subr.mxu0 0.0
    %1307 = vmatpush1.msra.mxu0 0.0
    %1308 = vmatprep.subr.mxu0 0.0
    %1309 = vmatpush1.msra.mxu0 0.0
    %1310 = vmatprep.subr.mxu0 0.0
    %1311 = vmatpush1.msra.mxu0 0.0
    %1312 = vmatprep.subr.mxu0 0.0
    %1313 = vmatpush1.msra.mxu0 0.0
    %1314 = vmatprep.subr.mxu0 0.0
    %1315 = vmatpush1.msra.mxu0 0.0
    %1316 = vmatprep.subr.mxu0 0.0
    %1317 = vmatpush1.msra.mxu0 0.0
    %1318 = vmatprep.subr.mxu0 0.0
    %1319 = vmatpush1.msra.mxu0 0.0
    %1320 = vmatprep.subr.mxu0 0.0
    %1321 = vmatpush1.msra.mxu0 0.0
    %1322 = vmatprep.subr.mxu0 0.0
    %1323 = vmatpush1.msra.mxu0 0.0
    %1324 = vmatprep.subr.mxu0 0.0
    %1325 = vmatpush1.msra.mxu0 0.0
    %1326 = vmatprep.subr.mxu0 0.0
    %1327 = vmatpush1.msra.mxu0 0.0
    %1328 = vmatprep.subr.mxu0 0.0
    %1329 = vmatpush1.msra.mxu0 0.0
    %1330 = vmatprep.subr.mxu0 0.0
    %1331 = vmatpush1.msra.mxu0 0.0
    %1332 = vmatprep.subr.mxu0 0.0
    %1333 = vmatpush1.msra.mxu0 0.0
    %1334 = vmatprep.subr.mxu0 0.0
    %1335 = vmatpush1.msra.mxu0 0.0
    %1336 = vmatprep.subr.mxu0 0.0
    %1337 = vmatpush1.msra.mxu0 0.0
    %1338 = vmatprep.mubr.f32.mxu0 0.0
    %1339 = vmatmul.mubr.f32.gmra.mrb[0].mxu0 %v1272
    %v1340 = vpop.f32.mrb[0].mxu0
    %v1341 = vadd.f32 %v1268, %v1340
    %v1342 = vpop.f32.mrb[0].mxu0
    %1343 = vdwg.mxu0
    %v1344 = vrot.slane %v1192, 7
    %v1345 = vsub.f32 0.0, %v1344
    %v1346 = vsel %vm25, %v1345, 0.0
    %v1347 = vmul.f32 %v1346, 2.0
    %v1348 = vsub.f32 %v1347, %v1182
    %s1349 = scalar_lea.vmem %s1, 544
    %v1350 = vld [vmem:[%s1349] sm:$0xff]
    %v1351 = vld [vmem:[%s1349 + $0x8] sm:$0xff]
    %v1352 = vld [vmem:[%s1349 + $0x10] sm:$0xff]
    %v1353 = vld [vmem:[%s1349 + $0x18] sm:$0xff]
    %v1355 = vsel %vm40, %v1348, 0
    %1357 = vmatprep.subr.mxu0 0.0
    %1358 = vmatpush1.msra.mxu0 %v1350
    %1359 = vmatprep.subr.mxu0 0.0
    %1360 = vmatpush1.msra.mxu0 %v1351
    %1361 = vmatprep.subr.mxu0 0.0
    %1362 = vmatpush1.msra.mxu0 %v1352
    %1363 = vmatprep.subr.mxu0 0.0
    %1364 = vmatpush1.msra.mxu0 %v1353
    %1365 = vmatprep.subr.mxu0 0.0
    %1366 = vmatpush1.msra.mxu0 0.0
    %1367 = vmatprep.subr.mxu0 0.0
    %1368 = vmatpush1.msra.mxu0 0.0
    %1369 = vmatprep.subr.mxu0 0.0
    %1370 = vmatpush1.msra.mxu0 0.0
    %1371 = vmatprep.subr.mxu0 0.0
    %1372 = vmatpush1.msra.mxu0 0.0
    %1373 = vmatprep.subr.mxu0 0.0
    %1374 = vmatpush1.msra.mxu0 0.0
    %1375 = vmatprep.subr.mxu0 0.0
    %1376 = vmatpush1.msra.mxu0 0.0
    %1377 = vmatprep.subr.mxu0 0.0
    %1378 = vmatpush1.msra.mxu0 0.0
    %1379 = vmatprep.subr.mxu0 0.0
    %1380 = vmatpush1.msra.mxu0 0.0
    %1381 = vmatprep.subr.mxu0 0.0
    %1382 = vmatpush1.msra.mxu0 0.0
    %1383 = vmatprep.subr.mxu0 0.0
    %1384 = vmatpush1.msra.mxu0 0.0
    %1385 = vmatprep.subr.mxu0 0.0
    %1386 = vmatpush1.msra.mxu0 0.0
    %1387 = vmatprep.subr.mxu0 0.0
    %1388 = vmatpush1.msra.mxu0 0.0
    %1389 = vmatprep.subr.mxu0 0.0
    %1390 = vmatpush1.msra.mxu0 0.0
    %1391 = vmatprep.subr.mxu0 0.0
    %1392 = vmatpush1.msra.mxu0 0.0
    %1393 = vmatprep.subr.mxu0 0.0
    %1394 = vmatpush1.msra.mxu0 0.0
    %1395 = vmatprep.subr.mxu0 0.0
    %1396 = vmatpush1.msra.mxu0 0.0
    %1397 = vmatprep.subr.mxu0 0.0
    %1398 = vmatpush1.msra.mxu0 0.0
    %1399 = vmatprep.subr.mxu0 0.0
    %1400 = vmatpush1.msra.mxu0 0.0
    %1401 = vmatprep.subr.mxu0 0.0
    %1402 = vmatpush1.msra.mxu0 0.0
    %1403 = vmatprep.subr.mxu0 0.0
    %1404 = vmatpush1.msra.mxu0 0.0
    %1405 = vmatprep.subr.mxu0 0.0
    %1406 = vmatpush1.msra.mxu0 0.0
    %1407 = vmatprep.subr.mxu0 0.0
    %1408 = vmatpush1.msra.mxu0 0.0
    %1409 = vmatprep.subr.mxu0 0.0
    %1410 = vmatpush1.msra.mxu0 0.0
    %1411 = vmatprep.subr.mxu0 0.0
    %1412 = vmatpush1.msra.mxu0 0.0
    %1413 = vmatprep.subr.mxu0 0.0
    %1414 = vmatpush1.msra.mxu0 0.0
    %1415 = vmatprep.subr.mxu0 0.0
    %1416 = vmatpush1.msra.mxu0 0.0
    %1417 = vmatprep.subr.mxu0 0.0
    %1418 = vmatpush1.msra.mxu0 0.0
    %1419 = vmatprep.subr.mxu0 0.0
    %1420 = vmatpush1.msra.mxu0 0.0
    %1421 = vmatprep.mubr.f32.mxu0 0.0
    %1422 = vmatmul.mubr.f32.gmra.mrb[0].mxu0 %v1355
    %v1423 = vpop.f32.mrb[0].mxu0
    %v1424 = vadd.f32 0.0, %v1423
    %v1425 = vpop.f32.mrb[0].mxu0
    %1426 = vdwg.mxu0
    %v1427 = vadd.f32 %v1341, %v1424
    %v1428 = vlaneseq
    %v1429 = vshrl.u32 %v1428, 7
    %v1430 = vsub.s32 0, %v1429
    %v1431 = vrot.slane %v1184, %v1430
    %v1432 = vadd.f32 %v1427, %v1431
    %v1433 = vsel %vm40, %v1432, 0.0
    %v1434 = vrot.slane %v1433, 4
    %v1435 = vadd.f32 %v1433, %v1434
    %v1436 = vrot.slane %v1435, 2
    %v1437 = vadd.f32 %v1435, %v1436
    %v1438 = vrot.slane %v1437, 1
    %v1439 = vadd.f32 %v1437, %v1438
    %v1440 = vmul.f32 %v1439, %v199
    %v1441 = vmul.f32 %v1440, %v1184
    %v1442 = vlaneseq
    %v1443 = vshrl.u32 %v1442, 7
    %v1444 = vsub.s32 3, %v1443
    %v1445 = vrot.slane %v1441, %v1444
    %v1446 = vsub.f32 %v1432, %v1445
    %v1447 = vmul.f32 %v1446, %v1446
    %v1448 = vsel %vm40, %v1447, 0.0
    %v1449 = vrot.slane %v1448, 4
    %v1450 = vadd.f32 %v1448, %v1449
    %v1451 = vrot.slane %v1450, 2
    %v1452 = vadd.f32 %v1450, %v1451
    %v1453 = vrot.slane %v1452, 1
    %v1454 = vadd.f32 %v1452, %v1453
    %v1455 = vmul.f32 %v1454, %v199
    %v1456 = vlaneseq
    %v1457 = vshrl.u32 %v1456, 7
    %v1458 = vsub.s32 1, %v1457
    %v1459 = vrot.slane %v1184, %v1458
    %v1460 = vmul.f32 %v1459, %v1446
    %v1461 = vadd.f32 %v1455, 1e-05
    %v1462 = vrsqrt.pop %v1461
    %v1463 = vmul.f32 %v1460, %v1462
    %v1464 = vlaneseq
    %v1465 = vshrl.u32 %v1464, 7
    %v1466 = vsub.s32 2, %v1465
    %v1467 = vrot.slane %v1184, %v1466
    %v1468 = vadd.f32 %v1463, %v1467
    %vm1469 = vcmp.ge.f32.partialorder %v1468, 0.0
    %v1470 = vmul.f32 %v1468, 0.2
    %v1471 = vsel %vm1469, %v1468, %v1470
    %s1472 = scalar_lea.vmem %s2, 48
    %v1473 = vld [vmem:[%s1472] sm:$0xff]
    %s1474 = scalar_lea.vmem %s1, 576
    %v1475 = vld [vmem:[%s1474] sm:$0xff]
    %v1476 = vld [vmem:[%s1474 + $0x8] sm:$0xff]
    %v1477 = vld [vmem:[%s1474 + $0x10] sm:$0xff]
    %v1478 = vld [vmem:[%s1474 + $0x18] sm:$0xff]
    %v1479 = vrot.slane %v1471, 7
    %v1480 = vsub.f32 0.0, %v1479
    %v1481 = vsel %vm25, %v1480, 0.0
    %s1482 = scalar_lea.vmem %s1, 608
    %v1483 = vld [vmem:[%s1482] sm:$0xff]
    %v1484 = vld [vmem:[%s1482 + $0x8] sm:$0xff]
    %v1485 = vld [vmem:[%s1482 + $0x10] sm:$0xff]
    %v1486 = vld [vmem:[%s1482 + $0x18] sm:$0xff]
    %v1488 = vsel %vm40, %v1481, 0
    %1490 = vmatprep.subr.mxu0 0.0
    %1491 = vmatpush1.msra.mxu0 %v1483
    %1492 = vmatprep.subr.mxu0 0.0
    %1493 = vmatpush1.msra.mxu0 %v1484
    %1494 = vmatprep.subr.mxu0 0.0
    %1495 = vmatpush1.msra.mxu0 %v1485
    %1496 = vmatprep.subr.mxu0 0.0
    %1497 = vmatpush1.msra.mxu0 %v1486
    %1498 = vmatprep.subr.mxu0 0.0
    %1499 = vmatpush1.msra.mxu0 0.0
    %1500 = vmatprep.subr.mxu0 0.0
    %1501 = vmatpush1.msra.mxu0 0.0
    %1502 = vmatprep.subr.mxu0 0.0
    %1503 = vmatpush1.msra.mxu0 0.0
    %1504 = vmatprep.subr.mxu0 0.0
    %1505 = vmatpush1.msra.mxu0 0.0
    %1506 = vmatprep.subr.mxu0 0.0
    %1507 = vmatpush1.msra.mxu0 0.0
    %1508 = vmatprep.subr.mxu0 0.0
    %1509 = vmatpush1.msra.mxu0 0.0
    %1510 = vmatprep.subr.mxu0 0.0
    %1511 = vmatpush1.msra.mxu0 0.0
    %1512 = vmatprep.subr.mxu0 0.0
    %1513 = vmatpush1.msra.mxu0 0.0
    %1514 = vmatprep.subr.mxu0 0.0
    %1515 = vmatpush1.msra.mxu0 0.0
    %1516 = vmatprep.subr.mxu0 0.0
    %1517 = vmatpush1.msra.mxu0 0.0
    %1518 = vmatprep.subr.mxu0 0.0
    %1519 = vmatpush1.msra.mxu0 0.0
    %1520 = vmatprep.subr.mxu0 0.0
    %1521 = vmatpush1.msra.mxu0 0.0
    %1522 = vmatprep.subr.mxu0 0.0
    %1523 = vmatpush1.msra.mxu0 0.0
    %1524 = vmatprep.subr.mxu0 0.0
    %1525 = vmatpush1.msra.mxu0 0.0
    %1526 = vmatprep.subr.mxu0 0.0
    %1527 = vmatpush1.msra.mxu0 0.0
    %1528 = vmatprep.subr.mxu0 0.0
    %1529 = vmatpush1.msra.mxu0 0.0
    %1530 = vmatprep.subr.mxu0 0.0
    %1531 = vmatpush1.msra.mxu0 0.0
    %1532 = vmatprep.subr.mxu0 0.0
    %1533 = vmatpush1.msra.mxu0 0.0
    %1534 = vmatprep.subr.mxu0 0.0
    %1535 = vmatpush1.msra.mxu0 0.0
    %1536 = vmatprep.subr.mxu0 0.0
    %1537 = vmatpush1.msra.mxu0 0.0
    %1538 = vmatprep.subr.mxu0 0.0
    %1539 = vmatpush1.msra.mxu0 0.0
    %1540 = vmatprep.subr.mxu0 0.0
    %1541 = vmatpush1.msra.mxu0 0.0
    %1542 = vmatprep.subr.mxu0 0.0
    %1543 = vmatpush1.msra.mxu0 0.0
    %1544 = vmatprep.subr.mxu0 0.0
    %1545 = vmatpush1.msra.mxu0 0.0
    %1546 = vmatprep.subr.mxu0 0.0
    %1547 = vmatpush1.msra.mxu0 0.0
    %1548 = vmatprep.subr.mxu0 0.0
    %1549 = vmatpush1.msra.mxu0 0.0
    %1550 = vmatprep.subr.mxu0 0.0
    %1551 = vmatpush1.msra.mxu0 0.0
    %1552 = vmatprep.subr.mxu0 0.0
    %1553 = vmatpush1.msra.mxu0 0.0
    %1554 = vmatprep.mubr.f32.mxu0 0.0
    %1555 = vmatmul.mubr.f32.gmra.mrb[0].mxu0 %v1488
    %v1556 = vpop.f32.mrb[0].mxu0
    %v1557 = vadd.f32 0.0, %v1556
    %v1558 = vpop.f32.mrb[0].mxu0
    %1559 = vdwg.mxu0
    %v1561 = vsel %vm40, %v1471, 0
    %1563 = vmatprep.subr.mxu0 0.0
    %1564 = vmatpush1.msra.mxu0 %v1475
    %1565 = vmatprep.subr.mxu0 0.0
    %1566 = vmatpush1.msra.mxu0 %v1476
    %1567 = vmatprep.subr.mxu0 0.0
    %1568 = vmatpush1.msra.mxu0 %v1477
    %1569 = vmatprep.subr.mxu0 0.0
    %1570 = vmatpush1.msra.mxu0 %v1478
    %1571 = vmatprep.subr.mxu0 0.0
    %1572 = vmatpush1.msra.mxu0 0.0
    %1573 = vmatprep.subr.mxu0 0.0
    %1574 = vmatpush1.msra.mxu0 0.0
    %1575 = vmatprep.subr.mxu0 0.0
    %1576 = vmatpush1.msra.mxu0 0.0
    %1577 = vmatprep.subr.mxu0 0.0
    %1578 = vmatpush1.msra.mxu0 0.0
    %1579 = vmatprep.subr.mxu0 0.0
    %1580 = vmatpush1.msra.mxu0 0.0
    %1581 = vmatprep.subr.mxu0 0.0
    %1582 = vmatpush1.msra.mxu0 0.0
    %1583 = vmatprep.subr.mxu0 0.0
    %1584 = vmatpush1.msra.mxu0 0.0
    %1585 = vmatprep.subr.mxu0 0.0
    %1586 = vmatpush1.msra.mxu0 0.0
    %1587 = vmatprep.subr.mxu0 0.0
    %1588 = vmatpush1.msra.mxu0 0.0
    %1589 = vmatprep.subr.mxu0 0.0
    %1590 = vmatpush1.msra.mxu0 0.0
    %1591 = vmatprep.subr.mxu0 0.0
    %1592 = vmatpush1.msra.mxu0 0.0
    %1593 = vmatprep.subr.mxu0 0.0
    %1594 = vmatpush1.msra.mxu0 0.0
    %1595 = vmatprep.subr.mxu0 0.0
    %1596 = vmatpush1.msra.mxu0 0.0
    %1597 = vmatprep.subr.mxu0 0.0
    %1598 = vmatpush1.msra.mxu0 0.0
    %1599 = vmatprep.subr.mxu0 0.0
    %1600 = vmatpush1.msra.mxu0 0.0
    %1601 = vmatprep.subr.mxu0 0.0
    %1602 = vmatpush1.msra.mxu0 0.0
    %1603 = vmatprep.subr.mxu0 0.0
    %1604 = vmatpush1.msra.mxu0 0.0
    %1605 = vmatprep.subr.mxu0 0.0
    %1606 = vmatpush1.msra.mxu0 0.0
    %1607 = vmatprep.subr.mxu0 0.0
    %1608 = vmatpush1.msra.mxu0 0.0
    %1609 = vmatprep.subr.mxu0 0.0
    %1610 = vmatpush1.msra.mxu0 0.0
    %1611 = vmatprep.subr.mxu0 0.0
    %1612 = vmatpush1.msra.mxu0 0.0
    %1613 = vmatprep.subr.mxu0 0.0
    %1614 = vmatpush1.msra.mxu0 0.0
    %1615 = vmatprep.subr.mxu0 0.0
    %1616 = vmatpush1.msra.mxu0 0.0
    %1617 = vmatprep.subr.mxu0 0.0
    %1618 = vmatpush1.msra.mxu0 0.0
    %1619 = vmatprep.subr.mxu0 0.0
    %1620 = vmatpush1.msra.mxu0 0.0
    %1621 = vmatprep.subr.mxu0 0.0
    %1622 = vmatpush1.msra.mxu0 0.0
    %1623 = vmatprep.subr.mxu0 0.0
    %1624 = vmatpush1.msra.mxu0 0.0
    %1625 = vmatprep.subr.mxu0 0.0
    %1626 = vmatpush1.msra.mxu0 0.0
    %1627 = vmatprep.mubr.f32.mxu0 0.0
    %1628 = vmatmul.mubr.f32.gmra.mrb[0].mxu0 %v1561
    %v1629 = vpop.f32.mrb[0].mxu0
    %v1630 = vadd.f32 %v1557, %v1629
    %v1631 = vpop.f32.mrb[0].mxu0
    %1632 = vdwg.mxu0
    %v1633 = vrot.slane %v1481, 7
    %v1634 = vsub.f32 0.0, %v1633
    %v1635 = vsel %vm25, %v1634, 0.0
    %v1636 = vmul.f32 %v1635, 2.0
    %v1637 = vsub.f32 %v1636, %v1471
    %s1638 = scalar_lea.vmem %s1, 640
    %v1639 = vld [vmem:[%s1638] sm:$0xff]
    %v1640 = vld [vmem:[%s1638 + $0x8] sm:$0xff]
    %v1641 = vld [vmem:[%s1638 + $0x10] sm:$0xff]
    %v1642 = vld [vmem:[%s1638 + $0x18] sm:$0xff]
    %v1644 = vsel %vm40, %v1637, 0
    %1646 = vmatprep.subr.mxu0 0.0
    %1647 = vmatpush1.msra.mxu0 %v1639
    %1648 = vmatprep.subr.mxu0 0.0
    %1649 = vmatpush1.msra.mxu0 %v1640
    %1650 = vmatprep.subr.mxu0 0.0
    %1651 = vmatpush1.msra.mxu0 %v1641
    %1652 = vmatprep.subr.mxu0 0.0
    %1653 = vmatpush1.msra.mxu0 %v1642
    %1654 = vmatprep.subr.mxu0 0.0
    %1655 = vmatpush1.msra.mxu0 0.0
    %1656 = vmatprep.subr.mxu0 0.0
    %1657 = vmatpush1.msra.mxu0 0.0
    %1658 = vmatprep.subr.mxu0 0.0
    %1659 = vmatpush1.msra.mxu0 0.0
    %1660 = vmatprep.subr.mxu0 0.0
    %1661 = vmatpush1.msra.mxu0 0.0
    %1662 = vmatprep.subr.mxu0 0.0
    %1663 = vmatpush1.msra.mxu0 0.0
    %1664 = vmatprep.subr.mxu0 0.0
    %1665 = vmatpush1.msra.mxu0 0.0
    %1666 = vmatprep.subr.mxu0 0.0
    %1667 = vmatpush1.msra.mxu0 0.0
    %1668 = vmatprep.subr.mxu0 0.0
    %1669 = vmatpush1.msra.mxu0 0.0
    %1670 = vmatprep.subr.mxu0 0.0
    %1671 = vmatpush1.msra.mxu0 0.0
    %1672 = vmatprep.subr.mxu0 0.0
    %1673 = vmatpush1.msra.mxu0 0.0
    %1674 = vmatprep.subr.mxu0 0.0
    %1675 = vmatpush1.msra.mxu0 0.0
    %1676 = vmatprep.subr.mxu0 0.0
    %1677 = vmatpush1.msra.mxu0 0.0
    %1678 = vmatprep.subr.mxu0 0.0
    %1679 = vmatpush1.msra.mxu0 0.0
    %1680 = vmatprep.subr.mxu0 0.0
    %1681 = vmatpush1.msra.mxu0 0.0
    %1682 = vmatprep.subr.mxu0 0.0
    %1683 = vmatpush1.msra.mxu0 0.0
    %1684 = vmatprep.subr.mxu0 0.0
    %1685 = vmatpush1.msra.mxu0 0.0
    %1686 = vmatprep.subr.mxu0 0.0
    %1687 = vmatpush1.msra.mxu0 0.0
    %1688 = vmatprep.subr.mxu0 0.0
    %1689 = vmatpush1.msra.mxu0 0.0
    %1690 = vmatprep.subr.mxu0 0.0
    %1691 = vmatpush1.msra.mxu0 0.0
    %1692 = vmatprep.subr.mxu0 0.0
    %1693 = vmatpush1.msra.mxu0 0.0
    %1694 = vmatprep.subr.mxu0 0.0
    %1695 = vmatpush1.msra.mxu0 0.0
    %1696 = vmatprep.subr.mxu0 0.0
    %1697 = vmatpush1.msra.mxu0 0.0
    %1698 = vmatprep.subr.mxu0 0.0
    %1699 = vmatpush1.msra.mxu0 0.0
    %1700 = vmatprep.subr.mxu0 0.0
    %1701 = vmatpush1.msra.mxu0 0.0
    %1702 = vmatprep.subr.mxu0 0.0
    %1703 = vmatpush1.msra.mxu0 0.0
    %1704 = vmatprep.subr.mxu0 0.0
    %1705 = vmatpush1.msra.mxu0 0.0
    %1706 = vmatprep.subr.mxu0 0.0
    %1707 = vmatpush1.msra.mxu0 0.0
    %1708 = vmatprep.subr.mxu0 0.0
    %1709 = vmatpush1.msra.mxu0 0.0
    %1710 = vmatprep.mubr.f32.mxu0 0.0
    %1711 = vmatmul.mubr.f32.gmra.mrb[0].mxu0 %v1644
    %v1712 = vpop.f32.mrb[0].mxu0
    %v1713 = vadd.f32 0.0, %v1712
    %v1714 = vpop.f32.mrb[0].mxu0
    %1715 = vdwg.mxu0
    %v1716 = vadd.f32 %v1630, %v1713
    %v1717 = vlaneseq
    %v1718 = vshrl.u32 %v1717, 7
    %v1719 = vsub.s32 0, %v1718
    %v1720 = vrot.slane %v1473, %v1719
    %v1721 = vadd.f32 %v1716, %v1720
    %v1722 = vsel %vm40, %v1721, 0.0
    %v1723 = vrot.slane %v1722, 4
    %v1724 = vadd.f32 %v1722, %v1723
    %v1725 = vrot.slane %v1724, 2
    %v1726 = vadd.f32 %v1724, %v1725
    %v1727 = vrot.slane %v1726, 1
    %v1728 = vadd.f32 %v1726, %v1727
    %v1729 = vmul.f32 %v1728, %v199
    %v1730 = vmul.f32 %v1729, %v1473
    %v1731 = vlaneseq
    %v1732 = vshrl.u32 %v1731, 7
    %v1733 = vsub.s32 3, %v1732
    %v1734 = vrot.slane %v1730, %v1733
    %v1735 = vsub.f32 %v1721, %v1734
    %v1736 = vmul.f32 %v1735, %v1735
    %v1737 = vsel %vm40, %v1736, 0.0
    %v1738 = vrot.slane %v1737, 4
    %v1739 = vadd.f32 %v1737, %v1738
    %v1740 = vrot.slane %v1739, 2
    %v1741 = vadd.f32 %v1739, %v1740
    %v1742 = vrot.slane %v1741, 1
    %v1743 = vadd.f32 %v1741, %v1742
    %v1744 = vmul.f32 %v1743, %v199
    %v1745 = vlaneseq
    %v1746 = vshrl.u32 %v1745, 7
    %v1747 = vsub.s32 1, %v1746
    %v1748 = vrot.slane %v1473, %v1747
    %v1749 = vmul.f32 %v1748, %v1735
    %v1750 = vadd.f32 %v1744, 1e-05
    %v1751 = vrsqrt.pop %v1750
    %v1752 = vmul.f32 %v1749, %v1751
    %v1753 = vlaneseq
    %v1754 = vshrl.u32 %v1753, 7
    %v1755 = vsub.s32 2, %v1754
    %v1756 = vrot.slane %v1473, %v1755
    %v1757 = vadd.f32 %v1752, %v1756
    %vm1758 = vcmp.ge.f32.partialorder %v1757, 0.0
    %v1759 = vmul.f32 %v1757, 0.2
    %v1760 = vsel %vm1758, %v1757, %v1759
    %s1761 = scalar_lea.vmem %s2, 56
    %v1762 = vld [vmem:[%s1761] sm:$0xff]
    %s1763 = scalar_lea.vmem %s1, 672
    %v1764 = vld [vmem:[%s1763] sm:$0xff]
    %v1765 = vld [vmem:[%s1763 + $0x8] sm:$0xff]
    %v1766 = vld [vmem:[%s1763 + $0x10] sm:$0xff]
    %v1767 = vld [vmem:[%s1763 + $0x18] sm:$0xff]
    %v1768 = vrot.slane %v1760, 7
    %v1769 = vsub.f32 0.0, %v1768
    %v1770 = vsel %vm25, %v1769, 0.0
    %s1771 = scalar_lea.vmem %s1, 704
    %v1772 = vld [vmem:[%s1771] sm:$0xff]
    %v1773 = vld [vmem:[%s1771 + $0x8] sm:$0xff]
    %v1774 = vld [vmem:[%s1771 + $0x10] sm:$0xff]
    %v1775 = vld [vmem:[%s1771 + $0x18] sm:$0xff]
    %v1777 = vsel %vm40, %v1770, 0
    %1779 = vmatprep.subr.mxu0 0.0
    %1780 = vmatpush1.msra.mxu0 %v1772
    %1781 = vmatprep.subr.mxu0 0.0
    %1782 = vmatpush1.msra.mxu0 %v1773
    %1783 = vmatprep.subr.mxu0 0.0
    %1784 = vmatpush1.msra.mxu0 %v1774
    %1785 = vmatprep.subr.mxu0 0.0
    %1786 = vmatpush1.msra.mxu0 %v1775
    %1787 = vmatprep.subr.mxu0 0.0
    %1788 = vmatpush1.msra.mxu0 0.0
    %1789 = vmatprep.subr.mxu0 0.0
    %1790 = vmatpush1.msra.mxu0 0.0
    %1791 = vmatprep.subr.mxu0 0.0
    %1792 = vmatpush1.msra.mxu0 0.0
    %1793 = vmatprep.subr.mxu0 0.0
    %1794 = vmatpush1.msra.mxu0 0.0
    %1795 = vmatprep.subr.mxu0 0.0
    %1796 = vmatpush1.msra.mxu0 0.0
    %1797 = vmatprep.subr.mxu0 0.0
    %1798 = vmatpush1.msra.mxu0 0.0
    %1799 = vmatprep.subr.mxu0 0.0
    %1800 = vmatpush1.msra.mxu0 0.0
    %1801 = vmatprep.subr.mxu0 0.0
    %1802 = vmatpush1.msra.mxu0 0.0
    %1803 = vmatprep.subr.mxu0 0.0
    %1804 = vmatpush1.msra.mxu0 0.0
    %1805 = vmatprep.subr.mxu0 0.0
    %1806 = vmatpush1.msra.mxu0 0.0
    %1807 = vmatprep.subr.mxu0 0.0
    %1808 = vmatpush1.msra.mxu0 0.0
    %1809 = vmatprep.subr.mxu0 0.0
    %1810 = vmatpush1.msra.mxu0 0.0
    %1811 = vmatprep.subr.mxu0 0.0
    %1812 = vmatpush1.msra.mxu0 0.0
    %1813 = vmatprep.subr.mxu0 0.0
    %1814 = vmatpush1.msra.mxu0 0.0
    %1815 = vmatprep.subr.mxu0 0.0
    %1816 = vmatpush1.msra.mxu0 0.0
    %1817 = vmatprep.subr.mxu0 0.0
    %1818 = vmatpush1.msra.mxu0 0.0
    %1819 = vmatprep.subr.mxu0 0.0
    %1820 = vmatpush1.msra.mxu0 0.0
    %1821 = vmatprep.subr.mxu0 0.0
    %1822 = vmatpush1.msra.mxu0 0.0
    %1823 = vmatprep.subr.mxu0 0.0
    %1824 = vmatpush1.msra.mxu0 0.0
    %1825 = vmatprep.subr.mxu0 0.0
    %1826 = vmatpush1.msra.mxu0 0.0
    %1827 = vmatprep.subr.mxu0 0.0
    %1828 = vmatpush1.msra.mxu0 0.0
    %1829 = vmatprep.subr.mxu0 0.0
    %1830 = vmatpush1.msra.mxu0 0.0
    %1831 = vmatprep.subr.mxu0 0.0
    %1832 = vmatpush1.msra.mxu0 0.0
    %1833 = vmatprep.subr.mxu0 0.0
    %1834 = vmatpush1.msra.mxu0 0.0
    %1835 = vmatprep.subr.mxu0 0.0
    %1836 = vmatpush1.msra.mxu0 0.0
    %1837 = vmatprep.subr.mxu0 0.0
    %1838 = vmatpush1.msra.mxu0 0.0
    %1839 = vmatprep.subr.mxu0 0.0
    %1840 = vmatpush1.msra.mxu0 0.0
    %1841 = vmatprep.subr.mxu0 0.0
    %1842 = vmatpush1.msra.mxu0 0.0
    %1843 = vmatprep.mubr.f32.mxu0 0.0
    %1844 = vmatmul.mubr.f32.gmra.mrb[0].mxu0 %v1777
    %v1845 = vpop.f32.mrb[0].mxu0
    %v1846 = vadd.f32 0.0, %v1845
    %v1847 = vpop.f32.mrb[0].mxu0
    %1848 = vdwg.mxu0
    %v1850 = vsel %vm40, %v1760, 0
    %1852 = vmatprep.subr.mxu0 0.0
    %1853 = vmatpush1.msra.mxu0 %v1764
    %1854 = vmatprep.subr.mxu0 0.0
    %1855 = vmatpush1.msra.mxu0 %v1765
    %1856 = vmatprep.subr.mxu0 0.0
    %1857 = vmatpush1.msra.mxu0 %v1766
    %1858 = vmatprep.subr.mxu0 0.0
    %1859 = vmatpush1.msra.mxu0 %v1767
    %1860 = vmatprep.subr.mxu0 0.0
    %1861 = vmatpush1.msra.mxu0 0.0
    %1862 = vmatprep.subr.mxu0 0.0
    %1863 = vmatpush1.msra.mxu0 0.0
    %1864 = vmatprep.subr.mxu0 0.0
    %1865 = vmatpush1.msra.mxu0 0.0
    %1866 = vmatprep.subr.mxu0 0.0
    %1867 = vmatpush1.msra.mxu0 0.0
    %1868 = vmatprep.subr.mxu0 0.0
    %1869 = vmatpush1.msra.mxu0 0.0
    %1870 = vmatprep.subr.mxu0 0.0
    %1871 = vmatpush1.msra.mxu0 0.0
    %1872 = vmatprep.subr.mxu0 0.0
    %1873 = vmatpush1.msra.mxu0 0.0
    %1874 = vmatprep.subr.mxu0 0.0
    %1875 = vmatpush1.msra.mxu0 0.0
    %1876 = vmatprep.subr.mxu0 0.0
    %1877 = vmatpush1.msra.mxu0 0.0
    %1878 = vmatprep.subr.mxu0 0.0
    %1879 = vmatpush1.msra.mxu0 0.0
    %1880 = vmatprep.subr.mxu0 0.0
    %1881 = vmatpush1.msra.mxu0 0.0
    %1882 = vmatprep.subr.mxu0 0.0
    %1883 = vmatpush1.msra.mxu0 0.0
    %1884 = vmatprep.subr.mxu0 0.0
    %1885 = vmatpush1.msra.mxu0 0.0
    %1886 = vmatprep.subr.mxu0 0.0
    %1887 = vmatpush1.msra.mxu0 0.0
    %1888 = vmatprep.subr.mxu0 0.0
    %1889 = vmatpush1.msra.mxu0 0.0
    %1890 = vmatprep.subr.mxu0 0.0
    %1891 = vmatpush1.msra.mxu0 0.0
    %1892 = vmatprep.subr.mxu0 0.0
    %1893 = vmatpush1.msra.mxu0 0.0
    %1894 = vmatprep.subr.mxu0 0.0
    %1895 = vmatpush1.msra.mxu0 0.0
    %1896 = vmatprep.subr.mxu0 0.0
    %1897 = vmatpush1.msra.mxu0 0.0
    %1898 = vmatprep.subr.mxu0 0.0
    %1899 = vmatpush1.msra.mxu0 0.0
    %1900 = vmatprep.subr.mxu0 0.0
    %1901 = vmatpush1.msra.mxu0 0.0
    %1902 = vmatprep.subr.mxu0 0.0
    %1903 = vmatpush1.msra.mxu0 0.0
    %1904 = vmatprep.subr.mxu0 0.0
    %1905 = vmatpush1.msra.mxu0 0.0
    %1906 = vmatprep.subr.mxu0 0.0
    %1907 = vmatpush1.msra.mxu0 0.0
    %1908 = vmatprep.subr.mxu0 0.0
    %1909 = vmatpush1.msra.mxu0 0.0
    %1910 = vmatprep.subr.mxu0 0.0
    %1911 = vmatpush1.msra.mxu0 0.0
    %1912 = vmatprep.subr.mxu0 0.0
    %1913 = vmatpush1.msra.mxu0 0.0
    %1914 = vmatprep.subr.mxu0 0.0
    %1915 = vmatpush1.msra.mxu0 0.0
    %1916 = vmatprep.mubr.f32.mxu0 0.0
    %1917 = vmatmul.mubr.f32.gmra.mrb[0].mxu0 %v1850
    %v1918 = vpop.f32.mrb[0].mxu0
    %v1919 = vadd.f32 %v1846, %v1918
    %v1920 = vpop.f32.mrb[0].mxu0
    %1921 = vdwg.mxu0
    %v1922 = vlaneseq
    %v1923 = vshrl.u32 %v1922, 7
    %v1924 = vsub.s32 0, %v1923
    %v1925 = vrot.slane %v1762, %v1924
    %v1926 = vadd.f32 %v1919, %v1925
    %v1927 = vadd.f32 %v1926, %v26
    %v1928 = vmax.f32 %v1927, 0.0
    %s1929 = scalar_lea.vmem %s2, 64
    %v1930 = vld [vmem:[%s1929] sm:$0xff]
    %s1931 = scalar_lea.vmem %s1, 768
    %v1932 = vld [vmem:[%s1931] sm:$0xff]
    %v1933 = vld [vmem:[%s1931 + $0x8] sm:$0xff]
    %v1934 = vld [vmem:[%s1931 + $0x10] sm:$0xff]
    %v1935 = vld [vmem:[%s1931 + $0x18] sm:$0xff]
    %v1936 = vrot.slane %v1928, 7
    %v1937 = vsub.f32 0.0, %v1936
    %v1938 = vsel %vm25, %v1937, 0.0
    %s1939 = scalar_lea.vmem %s1, 800
    %v1940 = vld [vmem:[%s1939] sm:$0xff]
    %v1941 = vld [vmem:[%s1939 + $0x8] sm:$0xff]
    %v1942 = vld [vmem:[%s1939 + $0x10] sm:$0xff]
    %v1943 = vld [vmem:[%s1939 + $0x18] sm:$0xff]
    %v1945 = vsel %vm40, %v1938, 0
    %1947 = vmatprep.subr.mxu0 0.0
    %1948 = vmatpush1.msra.mxu0 %v1940
    %1949 = vmatprep.subr.mxu0 0.0
    %1950 = vmatpush1.msra.mxu0 %v1941
    %1951 = vmatprep.subr.mxu0 0.0
    %1952 = vmatpush1.msra.mxu0 %v1942
    %1953 = vmatprep.subr.mxu0 0.0
    %1954 = vmatpush1.msra.mxu0 %v1943
    %1955 = vmatprep.subr.mxu0 0.0
    %1956 = vmatpush1.msra.mxu0 0.0
    %1957 = vmatprep.subr.mxu0 0.0
    %1958 = vmatpush1.msra.mxu0 0.0
    %1959 = vmatprep.subr.mxu0 0.0
    %1960 = vmatpush1.msra.mxu0 0.0
    %1961 = vmatprep.subr.mxu0 0.0
    %1962 = vmatpush1.msra.mxu0 0.0
    %1963 = vmatprep.subr.mxu0 0.0
    %1964 = vmatpush1.msra.mxu0 0.0
    %1965 = vmatprep.subr.mxu0 0.0
    %1966 = vmatpush1.msra.mxu0 0.0
    %1967 = vmatprep.subr.mxu0 0.0
    %1968 = vmatpush1.msra.mxu0 0.0
    %1969 = vmatprep.subr.mxu0 0.0
    %1970 = vmatpush1.msra.mxu0 0.0
    %1971 = vmatprep.subr.mxu0 0.0
    %1972 = vmatpush1.msra.mxu0 0.0
    %1973 = vmatprep.subr.mxu0 0.0
    %1974 = vmatpush1.msra.mxu0 0.0
    %1975 = vmatprep.subr.mxu0 0.0
    %1976 = vmatpush1.msra.mxu0 0.0
    %1977 = vmatprep.subr.mxu0 0.0
    %1978 = vmatpush1.msra.mxu0 0.0
    %1979 = vmatprep.subr.mxu0 0.0
    %1980 = vmatpush1.msra.mxu0 0.0
    %1981 = vmatprep.subr.mxu0 0.0
    %1982 = vmatpush1.msra.mxu0 0.0
    %1983 = vmatprep.subr.mxu0 0.0
    %1984 = vmatpush1.msra.mxu0 0.0
    %1985 = vmatprep.subr.mxu0 0.0
    %1986 = vmatpush1.msra.mxu0 0.0
    %1987 = vmatprep.subr.mxu0 0.0
    %1988 = vmatpush1.msra.mxu0 0.0
    %1989 = vmatprep.subr.mxu0 0.0
    %1990 = vmatpush1.msra.mxu0 0.0
    %1991 = vmatprep.subr.mxu0 0.0
    %1992 = vmatpush1.msra.mxu0 0.0
    %1993 = vmatprep.subr.mxu0 0.0
    %1994 = vmatpush1.msra.mxu0 0.0
    %1995 = vmatprep.subr.mxu0 0.0
    %1996 = vmatpush1.msra.mxu0 0.0
    %1997 = vmatprep.subr.mxu0 0.0
    %1998 = vmatpush1.msra.mxu0 0.0
    %1999 = vmatprep.subr.mxu0 0.0
    %2000 = vmatpush1.msra.mxu0 0.0
    %2001 = vmatprep.subr.mxu0 0.0
    %2002 = vmatpush1.msra.mxu0 0.0
    %2003 = vmatprep.subr.mxu0 0.0
    %2004 = vmatpush1.msra.mxu0 0.0
    %2005 = vmatprep.subr.mxu0 0.0
    %2006 = vmatpush1.msra.mxu0 0.0
    %2007 = vmatprep.subr.mxu0 0.0
    %2008 = vmatpush1.msra.mxu0 0.0
    %2009 = vmatprep.subr.mxu0 0.0
    %2010 = vmatpush1.msra.mxu0 0.0
    %2011 = vmatprep.mubr.f32.mxu0 0.0
    %2012 = vmatmul.mubr.f32.gmra.mrb[0].mxu0 %v1945
    %v2013 = vpop.f32.mrb[0].mxu0
    %v2014 = vadd.f32 0.0, %v2013
    %v2015 = vpop.f32.mrb[0].mxu0
    %2016 = vdwg.mxu0
    %v2018 = vsel %vm40, %v1928, 0
    %2020 = vmatprep.subr.mxu0 0.0
    %2021 = vmatpush1.msra.mxu0 %v1932
    %2022 = vmatprep.subr.mxu0 0.0
    %2023 = vmatpush1.msra.mxu0 %v1933
    %2024 = vmatprep.subr.mxu0 0.0
    %2025 = vmatpush1.msra.mxu0 %v1934
    %2026 = vmatprep.subr.mxu0 0.0
    %2027 = vmatpush1.msra.mxu0 %v1935
    %2028 = vmatprep.subr.mxu0 0.0
    %2029 = vmatpush1.msra.mxu0 0.0
    %2030 = vmatprep.subr.mxu0 0.0
    %2031 = vmatpush1.msra.mxu0 0.0
    %2032 = vmatprep.subr.mxu0 0.0
    %2033 = vmatpush1.msra.mxu0 0.0
    %2034 = vmatprep.subr.mxu0 0.0
    %2035 = vmatpush1.msra.mxu0 0.0
    %2036 = vmatprep.subr.mxu0 0.0
    %2037 = vmatpush1.msra.mxu0 0.0
    %2038 = vmatprep.subr.mxu0 0.0
    %2039 = vmatpush1.msra.mxu0 0.0
    %2040 = vmatprep.subr.mxu0 0.0
    %2041 = vmatpush1.msra.mxu0 0.0
    %2042 = vmatprep.subr.mxu0 0.0
    %2043 = vmatpush1.msra.mxu0 0.0
    %2044 = vmatprep.subr.mxu0 0.0
    %2045 = vmatpush1.msra.mxu0 0.0
    %2046 = vmatprep.subr.mxu0 0.0
    %2047 = vmatpush1.msra.mxu0 0.0
    %2048 = vmatprep.subr.mxu0 0.0
    %2049 = vmatpush1.msra.mxu0 0.0
    %2050 = vmatprep.subr.mxu0 0.0
    %2051 = vmatpush1.msra.mxu0 0.0
    %2052 = vmatprep.subr.mxu0 0.0
    %2053 = vmatpush1.msra.mxu0 0.0
    %2054 = vmatprep.subr.mxu0 0.0
    %2055 = vmatpush1.msra.mxu0 0.0
    %2056 = vmatprep.subr.mxu0 0.0
    %2057 = vmatpush1.msra.mxu0 0.0
    %2058 = vmatprep.subr.mxu0 0.0
    %2059 = vmatpush1.msra.mxu0 0.0
    %2060 = vmatprep.subr.mxu0 0.0
    %2061 = vmatpush1.msra.mxu0 0.0
    %2062 = vmatprep.subr.mxu0 0.0
    %2063 = vmatpush1.msra.mxu0 0.0
    %2064 = vmatprep.subr.mxu0 0.0
    %2065 = vmatpush1.msra.mxu0 0.0
    %2066 = vmatprep.subr.mxu0 0.0
    %2067 = vmatpush1.msra.mxu0 0.0
    %2068 = vmatprep.subr.mxu0 0.0
    %2069 = vmatpush1.msra.mxu0 0.0
    %2070 = vmatprep.subr.mxu0 0.0
    %2071 = vmatpush1.msra.mxu0 0.0
    %2072 = vmatprep.subr.mxu0 0.0
    %2073 = vmatpush1.msra.mxu0 0.0
    %2074 = vmatprep.subr.mxu0 0.0
    %2075 = vmatpush1.msra.mxu0 0.0
    %2076 = vmatprep.subr.mxu0 0.0
    %2077 = vmatpush1.msra.mxu0 0.0
    %2078 = vmatprep.subr.mxu0 0.0
    %2079 = vmatpush1.msra.mxu0 0.0
    %2080 = vmatprep.subr.mxu0 0.0
    %2081 = vmatpush1.msra.mxu0 0.0
    %2082 = vmatprep.subr.mxu0 0.0
    %2083 = vmatpush1.msra.mxu0 0.0
    %2084 = vmatprep.mubr.f32.mxu0 0.0
    %2085 = vmatmul.mubr.f32.gmra.mrb[0].mxu0 %v2018
    %v2086 = vpop.f32.mrb[0].mxu0
    %v2087 = vadd.f32 %v2014, %v2086
    %v2088 = vpop.f32.mrb[0].mxu0
    %2089 = vdwg.mxu0
    %v2090 = vlaneseq
    %v2091 = vshrl.u32 %v2090, 7
    %v2092 = vsub.s32 0, %v2091
    %v2093 = vrot.slane %v1930, %v2092
    %v2094 = vadd.f32 %v2087, %v2093
    %v2095 = vsel %vm40, %v2094, 0.0
    %v2096 = vrot.slane %v2095, 4
    %v2097 = vadd.f32 %v2095, %v2096
    %v2098 = vrot.slane %v2097, 2
    %v2099 = vadd.f32 %v2097, %v2098
    %v2100 = vrot.slane %v2099, 1
    %v2101 = vadd.f32 %v2099, %v2100
    %v2102 = vmul.f32 %v2101, %v199
    %v2103 = vmul.f32 %v2102, %v1930
    %v2104 = vlaneseq
    %v2105 = vshrl.u32 %v2104, 7
    %v2106 = vsub.s32 3, %v2105
    %v2107 = vrot.slane %v2103, %v2106
    %v2108 = vsub.f32 %v2094, %v2107
    %v2109 = vmul.f32 %v2108, %v2108
    %v2110 = vsel %vm40, %v2109, 0.0
    %v2111 = vrot.slane %v2110, 4
    %v2112 = vadd.f32 %v2110, %v2111
    %v2113 = vrot.slane %v2112, 2
    %v2114 = vadd.f32 %v2112, %v2113
    %v2115 = vrot.slane %v2114, 1
    %v2116 = vadd.f32 %v2114, %v2115
    %v2117 = vmul.f32 %v2116, %v199
    %v2118 = vlaneseq
    %v2119 = vshrl.u32 %v2118, 7
    %v2120 = vsub.s32 1, %v2119
    %v2121 = vrot.slane %v1930, %v2120
    %v2122 = vmul.f32 %v2121, %v2108
    %v2123 = vadd.f32 %v2117, 1e-05
    %v2124 = vrsqrt.pop %v2123
    %v2125 = vmul.f32 %v2122, %v2124
    %v2126 = vlaneseq
    %v2127 = vshrl.u32 %v2126, 7
    %v2128 = vsub.s32 2, %v2127
    %v2129 = vrot.slane %v1930, %v2128
    %v2130 = vadd.f32 %v2125, %v2129
    %vm2131 = vcmp.ge.f32.partialorder %v2130, 0.0
    %v2132 = vmul.f32 %v2130, 0.2
    %v2133 = vsel %vm2131, %v2130, %v2132
    %s2134 = scalar_lea.vmem %s2, 72
    %v2135 = vld [vmem:[%s2134] sm:$0xff]
    %s2136 = scalar_lea.vmem %s1, 864
    %v2137 = vld [vmem:[%s2136] sm:$0xff]
    %v2138 = vld [vmem:[%s2136 + $0x8] sm:$0xff]
    %v2139 = vld [vmem:[%s2136 + $0x10] sm:$0xff]
    %v2140 = vld [vmem:[%s2136 + $0x18] sm:$0xff]
    %v2141 = vrot.slane %v2133, 7
    %v2142 = vsub.f32 0.0, %v2141
    %v2143 = vsel %vm25, %v2142, 0.0
    %s2144 = scalar_lea.vmem %s1, 896
    %v2145 = vld [vmem:[%s2144] sm:$0xff]
    %v2146 = vld [vmem:[%s2144 + $0x8] sm:$0xff]
    %v2147 = vld [vmem:[%s2144 + $0x10] sm:$0xff]
    %v2148 = vld [vmem:[%s2144 + $0x18] sm:$0xff]
    %v2150 = vsel %vm40, %v2143, 0
    %2152 = vmatprep.subr.mxu0 0.0
    %2153 = vmatpush1.msra.mxu0 %v2145
    %2154 = vmatprep.subr.mxu0 0.0
    %2155 = vmatpush1.msra.mxu0 %v2146
    %2156 = vmatprep.subr.mxu0 0.0
    %2157 = vmatpush1.msra.mxu0 %v2147
    %2158 = vmatprep.subr.mxu0 0.0
    %2159 = vmatpush1.msra.mxu0 %v2148
    %2160 = vmatprep.subr.mxu0 0.0
    %2161 = vmatpush1.msra.mxu0 0.0
    %2162 = vmatprep.subr.mxu0 0.0
    %2163 = vmatpush1.msra.mxu0 0.0
    %2164 = vmatprep.subr.mxu0 0.0
    %2165 = vmatpush1.msra.mxu0 0.0
    %2166 = vmatprep.subr.mxu0 0.0
    %2167 = vmatpush1.msra.mxu0 0.0
    %2168 = vmatprep.subr.mxu0 0.0
    %2169 = vmatpush1.msra.mxu0 0.0
    %2170 = vmatprep.subr.mxu0 0.0
    %2171 = vmatpush1.msra.mxu0 0.0
    %2172 = vmatprep.subr.mxu0 0.0
    %2173 = vmatpush1.msra.mxu0 0.0
    %2174 = vmatprep.subr.mxu0 0.0
    %2175 = vmatpush1.msra.mxu0 0.0
    %2176 = vmatprep.subr.mxu0 0.0
    %2177 = vmatpush1.msra.mxu0 0.0
    %2178 = vmatprep.subr.mxu0 0.0
    %2179 = vmatpush1.msra.mxu0 0.0
    %2180 = vmatprep.subr.mxu0 0.0
    %2181 = vmatpush1.msra.mxu0 0.0
    %2182 = vmatprep.subr.mxu0 0.0
    %2183 = vmatpush1.msra.mxu0 0.0
    %2184 = vmatprep.subr.mxu0 0.0
    %2185 = vmatpush1.msra.mxu0 0.0
    %2186 = vmatprep.subr.mxu0 0.0
    %2187 = vmatpush1.msra.mxu0 0.0
    %2188 = vmatprep.subr.mxu0 0.0
    %2189 = vmatpush1.msra.mxu0 0.0
    %2190 = vmatprep.subr.mxu0 0.0
    %2191 = vmatpush1.msra.mxu0 0.0
    %2192 = vmatprep.subr.mxu0 0.0
    %2193 = vmatpush1.msra.mxu0 0.0
    %2194 = vmatprep.subr.mxu0 0.0
    %2195 = vmatpush1.msra.mxu0 0.0
    %2196 = vmatprep.subr.mxu0 0.0
    %2197 = vmatpush1.msra.mxu0 0.0
    %2198 = vmatprep.subr.mxu0 0.0
    %2199 = vmatpush1.msra.mxu0 0.0
    %2200 = vmatprep.subr.mxu0 0.0
    %2201 = vmatpush1.msra.mxu0 0.0
    %2202 = vmatprep.subr.mxu0 0.0
    %2203 = vmatpush1.msra.mxu0 0.0
    %2204 = vmatprep.subr.mxu0 0.0
    %2205 = vmatpush1.msra.mxu0 0.0
    %2206 = vmatprep.subr.mxu0 0.0
    %2207 = vmatpush1.msra.mxu0 0.0
    %2208 = vmatprep.subr.mxu0 0.0
    %2209 = vmatpush1.msra.mxu0 0.0
    %2210 = vmatprep.subr.mxu0 0.0
    %2211 = vmatpush1.msra.mxu0 0.0
    %2212 = vmatprep.subr.mxu0 0.0
    %2213 = vmatpush1.msra.mxu0 0.0
    %2214 = vmatprep.subr.mxu0 0.0
    %2215 = vmatpush1.msra.mxu0 0.0
    %2216 = vmatprep.mubr.f32.mxu0 0.0
    %2217 = vmatmul.mubr.f32.gmra.mrb[0].mxu0 %v2150
    %v2218 = vpop.f32.mrb[0].mxu0
    %v2219 = vadd.f32 0.0, %v2218
    %v2220 = vpop.f32.mrb[0].mxu0
    %2221 = vdwg.mxu0
    %v2223 = vsel %vm40, %v2133, 0
    %2225 = vmatprep.subr.mxu0 0.0
    %2226 = vmatpush1.msra.mxu0 %v2137
    %2227 = vmatprep.subr.mxu0 0.0
    %2228 = vmatpush1.msra.mxu0 %v2138
    %2229 = vmatprep.subr.mxu0 0.0
    %2230 = vmatpush1.msra.mxu0 %v2139
    %2231 = vmatprep.subr.mxu0 0.0
    %2232 = vmatpush1.msra.mxu0 %v2140
    %2233 = vmatprep.subr.mxu0 0.0
    %2234 = vmatpush1.msra.mxu0 0.0
    %2235 = vmatprep.subr.mxu0 0.0
    %2236 = vmatpush1.msra.mxu0 0.0
    %2237 = vmatprep.subr.mxu0 0.0
    %2238 = vmatpush1.msra.mxu0 0.0
    %2239 = vmatprep.subr.mxu0 0.0
    %2240 = vmatpush1.msra.mxu0 0.0
    %2241 = vmatprep.subr.mxu0 0.0
    %2242 = vmatpush1.msra.mxu0 0.0
    %2243 = vmatprep.subr.mxu0 0.0
    %2244 = vmatpush1.msra.mxu0 0.0
    %2245 = vmatprep.subr.mxu0 0.0
    %2246 = vmatpush1.msra.mxu0 0.0
    %2247 = vmatprep.subr.mxu0 0.0
    %2248 = vmatpush1.msra.mxu0 0.0
    %2249 = vmatprep.subr.mxu0 0.0
    %2250 = vmatpush1.msra.mxu0 0.0
    %2251 = vmatprep.subr.mxu0 0.0
    %2252 = vmatpush1.msra.mxu0 0.0
    %2253 = vmatprep.subr.mxu0 0.0
    %2254 = vmatpush1.msra.mxu0 0.0
    %2255 = vmatprep.subr.mxu0 0.0
    %2256 = vmatpush1.msra.mxu0 0.0
    %2257 = vmatprep.subr.mxu0 0.0
    %2258 = vmatpush1.msra.mxu0 0.0
    %2259 = vmatprep.subr.mxu0 0.0
    %2260 = vmatpush1.msra.mxu0 0.0
    %2261 = vmatprep.subr.mxu0 0.0
    %2262 = vmatpush1.msra.mxu0 0.0
    %2263 = vmatprep.subr.mxu0 0.0
    %2264 = vmatpush1.msra.mxu0 0.0
    %2265 = vmatprep.subr.mxu0 0.0
    %2266 = vmatpush1.msra.mxu0 0.0
    %2267 = vmatprep.subr.mxu0 0.0
    %2268 = vmatpush1.msra.mxu0 0.0
    %2269 = vmatprep.subr.mxu0 0.0
    %2270 = vmatpush1.msra.mxu0 0.0
    %2271 = vmatprep.subr.mxu0 0.0
    %2272 = vmatpush1.msra.mxu0 0.0
    %2273 = vmatprep.subr.mxu0 0.0
    %2274 = vmatpush1.msra.mxu0 0.0
    %2275 = vmatprep.subr.mxu0 0.0
    %2276 = vmatpush1.msra.mxu0 0.0
    %2277 = vmatprep.subr.mxu0 0.0
    %2278 = vmatpush1.msra.mxu0 0.0
    %2279 = vmatprep.subr.mxu0 0.0
    %2280 = vmatpush1.msra.mxu0 0.0
    %2281 = vmatprep.subr.mxu0 0.0
    %2282 = vmatpush1.msra.mxu0 0.0
    %2283 = vmatprep.subr.mxu0 0.0
    %2284 = vmatpush1.msra.mxu0 0.0
    %2285 = vmatprep.subr.mxu0 0.0
    %2286 = vmatpush1.msra.mxu0 0.0
    %2287 = vmatprep.subr.mxu0 0.0
    %2288 = vmatpush1.msra.mxu0 0.0
    %2289 = vmatprep.mubr.f32.mxu0 0.0
    %2290 = vmatmul.mubr.f32.gmra.mrb[0].mxu0 %v2223
    %v2291 = vpop.f32.mrb[0].mxu0
    %v2292 = vadd.f32 %v2219, %v2291
    %v2293 = vpop.f32.mrb[0].mxu0
    %2294 = vdwg.mxu0
    %v2295 = vrot.slane %v2143, 7
    %v2296 = vsub.f32 0.0, %v2295
    %v2297 = vsel %vm25, %v2296, 0.0
    %v2298 = vmul.f32 %v2297, 2.0
    %v2299 = vsub.f32 %v2298, %v2133
    %s2300 = scalar_lea.vmem %s1, 928
    %v2301 = vld [vmem:[%s2300] sm:$0xff]
    %v2302 = vld [vmem:[%s2300 + $0x8] sm:$0xff]
    %v2303 = vld [vmem:[%s2300 + $0x10] sm:$0xff]
    %v2304 = vld [vmem:[%s2300 + $0x18] sm:$0xff]
    %v2306 = vsel %vm40, %v2299, 0
    %2308 = vmatprep.subr.mxu0 0.0
    %2309 = vmatpush1.msra.mxu0 %v2301
    %2310 = vmatprep.subr.mxu0 0.0
    %2311 = vmatpush1.msra.mxu0 %v2302
    %2312 = vmatprep.subr.mxu0 0.0
    %2313 = vmatpush1.msra.mxu0 %v2303
    %2314 = vmatprep.subr.mxu0 0.0
    %2315 = vmatpush1.msra.mxu0 %v2304
    %2316 = vmatprep.subr.mxu0 0.0
    %2317 = vmatpush1.msra.mxu0 0.0
    %2318 = vmatprep.subr.mxu0 0.0
    %2319 = vmatpush1.msra.mxu0 0.0
    %2320 = vmatprep.subr.mxu0 0.0
    %2321 = vmatpush1.msra.mxu0 0.0
    %2322 = vmatprep.subr.mxu0 0.0
    %2323 = vmatpush1.msra.mxu0 0.0
    %2324 = vmatprep.subr.mxu0 0.0
    %2325 = vmatpush1.msra.mxu0 0.0
    %2326 = vmatprep.subr.mxu0 0.0
    %2327 = vmatpush1.msra.mxu0 0.0
    %2328 = vmatprep.subr.mxu0 0.0
    %2329 = vmatpush1.msra.mxu0 0.0
    %2330 = vmatprep.subr.mxu0 0.0
    %2331 = vmatpush1.msra.mxu0 0.0
    %2332 = vmatprep.subr.mxu0 0.0
    %2333 = vmatpush1.msra.mxu0 0.0
    %2334 = vmatprep.subr.mxu0 0.0
    %2335 = vmatpush1.msra.mxu0 0.0
    %2336 = vmatprep.subr.mxu0 0.0
    %2337 = vmatpush1.msra.mxu0 0.0
    %2338 = vmatprep.subr.mxu0 0.0
    %2339 = vmatpush1.msra.mxu0 0.0
    %2340 = vmatprep.subr.mxu0 0.0
    %2341 = vmatpush1.msra.mxu0 0.0
    %2342 = vmatprep.subr.mxu0 0.0
    %2343 = vmatpush1.msra.mxu0 0.0
    %2344 = vmatprep.subr.mxu0 0.0
    %2345 = vmatpush1.msra.mxu0 0.0
    %2346 = vmatprep.subr.mxu0 0.0
    %2347 = vmatpush1.msra.mxu0 0.0
    %2348 = vmatprep.subr.mxu0 0.0
    %2349 = vmatpush1.msra.mxu0 0.0
    %2350 = vmatprep.subr.mxu0 0.0
    %2351 = vmatpush1.msra.mxu0 0.0
    %2352 = vmatprep.subr.mxu0 0.0
    %2353 = vmatpush1.msra.mxu0 0.0
    %2354 = vmatprep.subr.mxu0 0.0
    %2355 = vmatpush1.msra.mxu0 0.0
    %2356 = vmatprep.subr.mxu0 0.0
    %2357 = vmatpush1.msra.mxu0 0.0
    %2358 = vmatprep.subr.mxu0 0.0
    %2359 = vmatpush1.msra.mxu0 0.0
    %2360 = vmatprep.subr.mxu0 0.0
    %2361 = vmatpush1.msra.mxu0 0.0
    %2362 = vmatprep.subr.mxu0 0.0
    %2363 = vmatpush1.msra.mxu0 0.0
    %2364 = vmatprep.subr.mxu0 0.0
    %2365 = vmatpush1.msra.mxu0 0.0
    %2366 = vmatprep.subr.mxu0 0.0
    %2367 = vmatpush1.msra.mxu0 0.0
    %2368 = vmatprep.subr.mxu0 0.0
    %2369 = vmatpush1.msra.mxu0 0.0
    %2370 = vmatprep.subr.mxu0 0.0
    %2371 = vmatpush1.msra.mxu0 0.0
    %2372 = vmatprep.mubr.f32.mxu0 0.0
    %2373 = vmatmul.mubr.f32.gmra.mrb[0].mxu0 %v2306
    %v2374 = vpop.f32.mrb[0].mxu0
    %v2375 = vadd.f32 0.0, %v2374
    %v2376 = vpop.f32.mrb[0].mxu0
    %2377 = vdwg.mxu0
    %v2378 = vadd.f32 %v2292, %v2375
    %v2379 = vlaneseq
    %v2380 = vshrl.u32 %v2379, 7
    %v2381 = vsub.s32 0, %v2380
    %v2382 = vrot.slane %v2135, %v2381
    %v2383 = vadd.f32 %v2378, %v2382
    %v2384 = vsel %vm40, %v2383, 0.0
    %v2385 = vrot.slane %v2384, 4
    %v2386 = vadd.f32 %v2384, %v2385
    %v2387 = vrot.slane %v2386, 2
    %v2388 = vadd.f32 %v2386, %v2387
    %v2389 = vrot.slane %v2388, 1
    %v2390 = vadd.f32 %v2388, %v2389
    %v2391 = vmul.f32 %v2390, %v199
    %v2392 = vmul.f32 %v2391, %v2135
    %v2393 = vlaneseq
    %v2394 = vshrl.u32 %v2393, 7
    %v2395 = vsub.s32 3, %v2394
    %v2396 = vrot.slane %v2392, %v2395
    %v2397 = vsub.f32 %v2383, %v2396
    %v2398 = vmul.f32 %v2397, %v2397
    %v2399 = vsel %vm40, %v2398, 0.0
    %v2400 = vrot.slane %v2399, 4
    %v2401 = vadd.f32 %v2399, %v2400
    %v2402 = vrot.slane %v2401, 2
    %v2403 = vadd.f32 %v2401, %v2402
    %v2404 = vrot.slane %v2403, 1
    %v2405 = vadd.f32 %v2403, %v2404
    %v2406 = vmul.f32 %v2405, %v199
    %v2407 = vlaneseq
    %v2408 = vshrl.u32 %v2407, 7
    %v2409 = vsub.s32 1, %v2408
    %v2410 = vrot.slane %v2135, %v2409
    %v2411 = vmul.f32 %v2410, %v2397
    %v2412 = vadd.f32 %v2406, 1e-05
    %v2413 = vrsqrt.pop %v2412
    %v2414 = vmul.f32 %v2411, %v2413
    %v2415 = vlaneseq
    %v2416 = vshrl.u32 %v2415, 7
    %v2417 = vsub.s32 2, %v2416
    %v2418 = vrot.slane %v2135, %v2417
    %v2419 = vadd.f32 %v2414, %v2418
    %vm2420 = vcmp.ge.f32.partialorder %v2419, 0.0
    %v2421 = vmul.f32 %v2419, 0.2
    %v2422 = vsel %vm2420, %v2419, %v2421
    %s2423 = scalar_lea.vmem %s2, 80
    %v2424 = vld [vmem:[%s2423] sm:$0xff]
    %s2425 = scalar_lea.vmem %s1, 960
    %v2426 = vld [vmem:[%s2425] sm:$0xff]
    %v2427 = vld [vmem:[%s2425 + $0x8] sm:$0xff]
    %v2428 = vld [vmem:[%s2425 + $0x10] sm:$0xff]
    %v2429 = vld [vmem:[%s2425 + $0x18] sm:$0xff]
    %v2430 = vrot.slane %v2422, 7
    %v2431 = vsub.f32 0.0, %v2430
    %v2432 = vsel %vm25, %v2431, 0.0
    %s2433 = scalar_lea.vmem %s1, 992
    %v2434 = vld [vmem:[%s2433] sm:$0xff]
    %v2435 = vld [vmem:[%s2433 + $0x8] sm:$0xff]
    %v2436 = vld [vmem:[%s2433 + $0x10] sm:$0xff]
    %v2437 = vld [vmem:[%s2433 + $0x18] sm:$0xff]
    %v2439 = vsel %vm40, %v2432, 0
    %2441 = vmatprep.subr.mxu0 0.0
    %2442 = vmatpush1.msra.mxu0 %v2434
    %2443 = vmatprep.subr.mxu0 0.0
    %2444 = vmatpush1.msra.mxu0 %v2435
    %2445 = vmatprep.subr.mxu0 0.0
    %2446 = vmatpush1.msra.mxu0 %v2436
    %2447 = vmatprep.subr.mxu0 0.0
    %2448 = vmatpush1.msra.mxu0 %v2437
    %2449 = vmatprep.subr.mxu0 0.0
    %2450 = vmatpush1.msra.mxu0 0.0
    %2451 = vmatprep.subr.mxu0 0.0
    %2452 = vmatpush1.msra.mxu0 0.0
    %2453 = vmatprep.subr.mxu0 0.0
    %2454 = vmatpush1.msra.mxu0 0.0
    %2455 = vmatprep.subr.mxu0 0.0
    %2456 = vmatpush1.msra.mxu0 0.0
    %2457 = vmatprep.subr.mxu0 0.0
    %2458 = vmatpush1.msra.mxu0 0.0
    %2459 = vmatprep.subr.mxu0 0.0
    %2460 = vmatpush1.msra.mxu0 0.0
    %2461 = vmatprep.subr.mxu0 0.0
    %2462 = vmatpush1.msra.mxu0 0.0
    %2463 = vmatprep.subr.mxu0 0.0
    %2464 = vmatpush1.msra.mxu0 0.0
    %2465 = vmatprep.subr.mxu0 0.0
    %2466 = vmatpush1.msra.mxu0 0.0
    %2467 = vmatprep.subr.mxu0 0.0
    %2468 = vmatpush1.msra.mxu0 0.0
    %2469 = vmatprep.subr.mxu0 0.0
    %2470 = vmatpush1.msra.mxu0 0.0
    %2471 = vmatprep.subr.mxu0 0.0
    %2472 = vmatpush1.msra.mxu0 0.0
    %2473 = vmatprep.subr.mxu0 0.0
    %2474 = vmatpush1.msra.mxu0 0.0
    %2475 = vmatprep.subr.mxu0 0.0
    %2476 = vmatpush1.msra.mxu0 0.0
    %2477 = vmatprep.subr.mxu0 0.0
    %2478 = vmatpush1.msra.mxu0 0.0
    %2479 = vmatprep.subr.mxu0 0.0
    %2480 = vmatpush1.msra.mxu0 0.0
    %2481 = vmatprep.subr.mxu0 0.0
    %2482 = vmatpush1.msra.mxu0 0.0
    %2483 = vmatprep.subr.mxu0 0.0
    %2484 = vmatpush1.msra.mxu0 0.0
    %2485 = vmatprep.subr.mxu0 0.0
    %2486 = vmatpush1.msra.mxu0 0.0
    %2487 = vmatprep.subr.mxu0 0.0
    %2488 = vmatpush1.msra.mxu0 0.0
    %2489 = vmatprep.subr.mxu0 0.0
    %2490 = vmatpush1.msra.mxu0 0.0
    %2491 = vmatprep.subr.mxu0 0.0
    %2492 = vmatpush1.msra.mxu0 0.0
    %2493 = vmatprep.subr.mxu0 0.0
    %2494 = vmatpush1.msra.mxu0 0.0
    %2495 = vmatprep.subr.mxu0 0.0
    %2496 = vmatpush1.msra.mxu0 0.0
    %2497 = vmatprep.subr.mxu0 0.0
    %2498 = vmatpush1.msra.mxu0 0.0
    %2499 = vmatprep.subr.mxu0 0.0
    %2500 = vmatpush1.msra.mxu0 0.0
    %2501 = vmatprep.subr.mxu0 0.0
    %2502 = vmatpush1.msra.mxu0 0.0
    %2503 = vmatprep.subr.mxu0 0.0
    %2504 = vmatpush1.msra.mxu0 0.0
    %2505 = vmatprep.mubr.f32.mxu0 0.0
    %2506 = vmatmul.mubr.f32.gmra.mrb[0].mxu0 %v2439
    %v2507 = vpop.f32.mrb[0].mxu0
    %v2508 = vadd.f32 0.0, %v2507
    %v2509 = vpop.f32.mrb[0].mxu0
    %2510 = vdwg.mxu0
    %v2512 = vsel %vm40, %v2422, 0
    %2514 = vmatprep.subr.mxu0 0.0
    %2515 = vmatpush1.msra.mxu0 %v2426
    %2516 = vmatprep.subr.mxu0 0.0
    %2517 = vmatpush1.msra.mxu0 %v2427
    %2518 = vmatprep.subr.mxu0 0.0
    %2519 = vmatpush1.msra.mxu0 %v2428
    %2520 = vmatprep.subr.mxu0 0.0
    %2521 = vmatpush1.msra.mxu0 %v2429
    %2522 = vmatprep.subr.mxu0 0.0
    %2523 = vmatpush1.msra.mxu0 0.0
    %2524 = vmatprep.subr.mxu0 0.0
    %2525 = vmatpush1.msra.mxu0 0.0
    %2526 = vmatprep.subr.mxu0 0.0
    %2527 = vmatpush1.msra.mxu0 0.0
    %2528 = vmatprep.subr.mxu0 0.0
    %2529 = vmatpush1.msra.mxu0 0.0
    %2530 = vmatprep.subr.mxu0 0.0
    %2531 = vmatpush1.msra.mxu0 0.0
    %2532 = vmatprep.subr.mxu0 0.0
    %2533 = vmatpush1.msra.mxu0 0.0
    %2534 = vmatprep.subr.mxu0 0.0
    %2535 = vmatpush1.msra.mxu0 0.0
    %2536 = vmatprep.subr.mxu0 0.0
    %2537 = vmatpush1.msra.mxu0 0.0
    %2538 = vmatprep.subr.mxu0 0.0
    %2539 = vmatpush1.msra.mxu0 0.0
    %2540 = vmatprep.subr.mxu0 0.0
    %2541 = vmatpush1.msra.mxu0 0.0
    %2542 = vmatprep.subr.mxu0 0.0
    %2543 = vmatpush1.msra.mxu0 0.0
    %2544 = vmatprep.subr.mxu0 0.0
    %2545 = vmatpush1.msra.mxu0 0.0
    %2546 = vmatprep.subr.mxu0 0.0
    %2547 = vmatpush1.msra.mxu0 0.0
    %2548 = vmatprep.subr.mxu0 0.0
    %2549 = vmatpush1.msra.mxu0 0.0
    %2550 = vmatprep.subr.mxu0 0.0
    %2551 = vmatpush1.msra.mxu0 0.0
    %2552 = vmatprep.subr.mxu0 0.0
    %2553 = vmatpush1.msra.mxu0 0.0
    %2554 = vmatprep.subr.mxu0 0.0
    %2555 = vmatpush1.msra.mxu0 0.0
    %2556 = vmatprep.subr.mxu0 0.0
    %2557 = vmatpush1.msra.mxu0 0.0
    %2558 = vmatprep.subr.mxu0 0.0
    %2559 = vmatpush1.msra.mxu0 0.0
    %2560 = vmatprep.subr.mxu0 0.0
    %2561 = vmatpush1.msra.mxu0 0.0
    %2562 = vmatprep.subr.mxu0 0.0
    %2563 = vmatpush1.msra.mxu0 0.0
    %2564 = vmatprep.subr.mxu0 0.0
    %2565 = vmatpush1.msra.mxu0 0.0
    %2566 = vmatprep.subr.mxu0 0.0
    %2567 = vmatpush1.msra.mxu0 0.0
    %2568 = vmatprep.subr.mxu0 0.0
    %2569 = vmatpush1.msra.mxu0 0.0
    %2570 = vmatprep.subr.mxu0 0.0
    %2571 = vmatpush1.msra.mxu0 0.0
    %2572 = vmatprep.subr.mxu0 0.0
    %2573 = vmatpush1.msra.mxu0 0.0
    %2574 = vmatprep.subr.mxu0 0.0
    %2575 = vmatpush1.msra.mxu0 0.0
    %2576 = vmatprep.subr.mxu0 0.0
    %2577 = vmatpush1.msra.mxu0 0.0
    %2578 = vmatprep.mubr.f32.mxu0 0.0
    %2579 = vmatmul.mubr.f32.gmra.mrb[0].mxu0 %v2512
    %v2580 = vpop.f32.mrb[0].mxu0
    %v2581 = vadd.f32 %v2508, %v2580
    %v2582 = vpop.f32.mrb[0].mxu0
    %2583 = vdwg.mxu0
    %v2584 = vrot.slane %v2432, 7
    %v2585 = vsub.f32 0.0, %v2584
    %v2586 = vsel %vm25, %v2585, 0.0
    %v2587 = vmul.f32 %v2586, 2.0
    %v2588 = vsub.f32 %v2587, %v2422
    %s2589 = scalar_lea.vmem %s1, 1024
    %v2590 = vld [vmem:[%s2589] sm:$0xff]
    %v2591 = vld [vmem:[%s2589 + $0x8] sm:$0xff]
    %v2592 = vld [vmem:[%s2589 + $0x10] sm:$0xff]
    %v2593 = vld [vmem:[%s2589 + $0x18] sm:$0xff]
    %v2595 = vsel %vm40, %v2588, 0
    %2597 = vmatprep.subr.mxu0 0.0
    %2598 = vmatpush1.msra.mxu0 %v2590
    %2599 = vmatprep.subr.mxu0 0.0
    %2600 = vmatpush1.msra.mxu0 %v2591
    %2601 = vmatprep.subr.mxu0 0.0
    %2602 = vmatpush1.msra.mxu0 %v2592
    %2603 = vmatprep.subr.mxu0 0.0
    %2604 = vmatpush1.msra.mxu0 %v2593
    %2605 = vmatprep.subr.mxu0 0.0
    %2606 = vmatpush1.msra.mxu0 0.0
    %2607 = vmatprep.subr.mxu0 0.0
    %2608 = vmatpush1.msra.mxu0 0.0
    %2609 = vmatprep.subr.mxu0 0.0
    %2610 = vmatpush1.msra.mxu0 0.0
    %2611 = vmatprep.subr.mxu0 0.0
    %2612 = vmatpush1.msra.mxu0 0.0
    %2613 = vmatprep.subr.mxu0 0.0
    %2614 = vmatpush1.msra.mxu0 0.0
    %2615 = vmatprep.subr.mxu0 0.0
    %2616 = vmatpush1.msra.mxu0 0.0
    %2617 = vmatprep.subr.mxu0 0.0
    %2618 = vmatpush1.msra.mxu0 0.0
    %2619 = vmatprep.subr.mxu0 0.0
    %2620 = vmatpush1.msra.mxu0 0.0
    %2621 = vmatprep.subr.mxu0 0.0
    %2622 = vmatpush1.msra.mxu0 0.0
    %2623 = vmatprep.subr.mxu0 0.0
    %2624 = vmatpush1.msra.mxu0 0.0
    %2625 = vmatprep.subr.mxu0 0.0
    %2626 = vmatpush1.msra.mxu0 0.0
    %2627 = vmatprep.subr.mxu0 0.0
    %2628 = vmatpush1.msra.mxu0 0.0
    %2629 = vmatprep.subr.mxu0 0.0
    %2630 = vmatpush1.msra.mxu0 0.0
    %2631 = vmatprep.subr.mxu0 0.0
    %2632 = vmatpush1.msra.mxu0 0.0
    %2633 = vmatprep.subr.mxu0 0.0
    %2634 = vmatpush1.msra.mxu0 0.0
    %2635 = vmatprep.subr.mxu0 0.0
    %2636 = vmatpush1.msra.mxu0 0.0
    %2637 = vmatprep.subr.mxu0 0.0
    %2638 = vmatpush1.msra.mxu0 0.0
    %2639 = vmatprep.subr.mxu0 0.0
    %2640 = vmatpush1.msra.mxu0 0.0
    %2641 = vmatprep.subr.mxu0 0.0
    %2642 = vmatpush1.msra.mxu0 0.0
    %2643 = vmatprep.subr.mxu0 0.0
    %2644 = vmatpush1.msra.mxu0 0.0
    %2645 = vmatprep.subr.mxu0 0.0
    %2646 = vmatpush1.msra.mxu0 0.0
    %2647 = vmatprep.subr.mxu0 0.0
    %2648 = vmatpush1.msra.mxu0 0.0
    %2649 = vmatprep.subr.mxu0 0.0
    %2650 = vmatpush1.msra.mxu0 0.0
    %2651 = vmatprep.subr.mxu0 0.0
    %2652 = vmatpush1.msra.mxu0 0.0
    %2653 = vmatprep.subr.mxu0 0.0
    %2654 = vmatpush1.msra.mxu0 0.0
    %2655 = vmatprep.subr.mxu0 0.0
    %2656 = vmatpush1.msra.mxu0 0.0
    %2657 = vmatprep.subr.mxu0 0.0
    %2658 = vmatpush1.msra.mxu0 0.0
    %2659 = vmatprep.subr.mxu0 0.0
    %2660 = vmatpush1.msra.mxu0 0.0
    %2661 = vmatprep.mubr.f32.mxu0 0.0
    %2662 = vmatmul.mubr.f32.gmra.mrb[0].mxu0 %v2595
    %v2663 = vpop.f32.mrb[0].mxu0
    %v2664 = vadd.f32 0.0, %v2663
    %v2665 = vpop.f32.mrb[0].mxu0
    %2666 = vdwg.mxu0
    %v2667 = vadd.f32 %v2581, %v2664
    %v2668 = vlaneseq
    %v2669 = vshrl.u32 %v2668, 7
    %v2670 = vsub.s32 0, %v2669
    %v2671 = vrot.slane %v2424, %v2670
    %v2672 = vadd.f32 %v2667, %v2671
    %v2673 = vsel %vm40, %v2672, 0.0
    %v2674 = vrot.slane %v2673, 4
    %v2675 = vadd.f32 %v2673, %v2674
    %v2676 = vrot.slane %v2675, 2
    %v2677 = vadd.f32 %v2675, %v2676
    %v2678 = vrot.slane %v2677, 1
    %v2679 = vadd.f32 %v2677, %v2678
    %v2680 = vmul.f32 %v2679, %v199
    %v2681 = vmul.f32 %v2680, %v2424
    %v2682 = vlaneseq
    %v2683 = vshrl.u32 %v2682, 7
    %v2684 = vsub.s32 3, %v2683
    %v2685 = vrot.slane %v2681, %v2684
    %v2686 = vsub.f32 %v2672, %v2685
    %v2687 = vmul.f32 %v2686, %v2686
    %v2688 = vsel %vm40, %v2687, 0.0
    %v2689 = vrot.slane %v2688, 4
    %v2690 = vadd.f32 %v2688, %v2689
    %v2691 = vrot.slane %v2690, 2
    %v2692 = vadd.f32 %v2690, %v2691
    %v2693 = vrot.slane %v2692, 1
    %v2694 = vadd.f32 %v2692, %v2693
    %v2695 = vmul.f32 %v2694, %v199
    %v2696 = vlaneseq
    %v2697 = vshrl.u32 %v2696, 7
    %v2698 = vsub.s32 1, %v2697
    %v2699 = vrot.slane %v2424, %v2698
    %v2700 = vmul.f32 %v2699, %v2686
    %v2701 = vadd.f32 %v2695, 1e-05
    %v2702 = vrsqrt.pop %v2701
    %v2703 = vmul.f32 %v2700, %v2702
    %v2704 = vlaneseq
    %v2705 = vshrl.u32 %v2704, 7
    %v2706 = vsub.s32 2, %v2705
    %v2707 = vrot.slane %v2424, %v2706
    %v2708 = vadd.f32 %v2703, %v2707
    %vm2709 = vcmp.ge.f32.partialorder %v2708, 0.0
    %v2710 = vmul.f32 %v2708, 0.2
    %v2711 = vsel %vm2709, %v2708, %v2710
    %s2712 = scalar_lea.vmem %s2, 88
    %v2713 = vld [vmem:[%s2712] sm:$0xff]
    %s2714 = scalar_lea.vmem %s1, 1056
    %v2715 = vld [vmem:[%s2714] sm:$0xff]
    %v2716 = vld [vmem:[%s2714 + $0x8] sm:$0xff]
    %v2717 = vld [vmem:[%s2714 + $0x10] sm:$0xff]
    %v2718 = vld [vmem:[%s2714 + $0x18] sm:$0xff]
    %v2719 = vrot.slane %v2711, 7
    %v2720 = vsub.f32 0.0, %v2719
    %v2721 = vsel %vm25, %v2720, 0.0
    %s2722 = scalar_lea.vmem %s1, 1088
    %v2723 = vld [vmem:[%s2722] sm:$0xff]
    %v2724 = vld [vmem:[%s2722 + $0x8] sm:$0xff]
    %v2725 = vld [vmem:[%s2722 + $0x10] sm:$0xff]
    %v2726 = vld [vmem:[%s2722 + $0x18] sm:$0xff]
    %v2728 = vsel %vm40, %v2721, 0
    %2730 = vmatprep.subr.mxu0 0.0
    %2731 = vmatpush1.msra.mxu0 %v2723
    %2732 = vmatprep.subr.mxu0 0.0
    %2733 = vmatpush1.msra.mxu0 %v2724
    %2734 = vmatprep.subr.mxu0 0.0
    %2735 = vmatpush1.msra.mxu0 %v2725
    %2736 = vmatprep.subr.mxu0 0.0
    %2737 = vmatpush1.msra.mxu0 %v2726
    %2738 = vmatprep.subr.mxu0 0.0
    %2739 = vmatpush1.msra.mxu0 0.0
    %2740 = vmatprep.subr.mxu0 0.0
    %2741 = vmatpush1.msra.mxu0 0.0
    %2742 = vmatprep.subr.mxu0 0.0
    %2743 = vmatpush1.msra.mxu0 0.0
    %2744 = vmatprep.subr.mxu0 0.0
    %2745 = vmatpush1.msra.mxu0 0.0
    %2746 = vmatprep.subr.mxu0 0.0
    %2747 = vmatpush1.msra.mxu0 0.0
    %2748 = vmatprep.subr.mxu0 0.0
    %2749 = vmatpush1.msra.mxu0 0.0
    %2750 = vmatprep.subr.mxu0 0.0
    %2751 = vmatpush1.msra.mxu0 0.0
    %2752 = vmatprep.subr.mxu0 0.0
    %2753 = vmatpush1.msra.mxu0 0.0
    %2754 = vmatprep.subr.mxu0 0.0
    %2755 = vmatpush1.msra.mxu0 0.0
    %2756 = vmatprep.subr.mxu0 0.0
    %2757 = vmatpush1.msra.mxu0 0.0
    %2758 = vmatprep.subr.mxu0 0.0
    %2759 = vmatpush1.msra.mxu0 0.0
    %2760 = vmatprep.subr.mxu0 0.0
    %2761 = vmatpush1.msra.mxu0 0.0
    %2762 = vmatprep.subr.mxu0 0.0
    %2763 = vmatpush1.msra.mxu0 0.0
    %2764 = vmatprep.subr.mxu0 0.0
    %2765 = vmatpush1.msra.mxu0 0.0
    %2766 = vmatprep.subr.mxu0 0.0
    %2767 = vmatpush1.msra.mxu0 0.0
    %2768 = vmatprep.subr.mxu0 0.0
    %2769 = vmatpush1.msra.mxu0 0.0
    %2770 = vmatprep.subr.mxu0 0.0
    %2771 = vmatpush1.msra.mxu0 0.0
    %2772 = vmatprep.subr.mxu0 0.0
    %2773 = vmatpush1.msra.mxu0 0.0
    %2774 = vmatprep.subr.mxu0 0.0
    %2775 = vmatpush1.msra.mxu0 0.0
    %2776 = vmatprep.subr.mxu0 0.0
    %2777 = vmatpush1.msra.mxu0 0.0
    %2778 = vmatprep.subr.mxu0 0.0
    %2779 = vmatpush1.msra.mxu0 0.0
    %2780 = vmatprep.subr.mxu0 0.0
    %2781 = vmatpush1.msra.mxu0 0.0
    %2782 = vmatprep.subr.mxu0 0.0
    %2783 = vmatpush1.msra.mxu0 0.0
    %2784 = vmatprep.subr.mxu0 0.0
    %2785 = vmatpush1.msra.mxu0 0.0
    %2786 = vmatprep.subr.mxu0 0.0
    %2787 = vmatpush1.msra.mxu0 0.0
    %2788 = vmatprep.subr.mxu0 0.0
    %2789 = vmatpush1.msra.mxu0 0.0
    %2790 = vmatprep.subr.mxu0 0.0
    %2791 = vmatpush1.msra.mxu0 0.0
    %2792 = vmatprep.subr.mxu0 0.0
    %2793 = vmatpush1.msra.mxu0 0.0
    %2794 = vmatprep.mubr.f32.mxu0 0.0
    %2795 = vmatmul.mubr.f32.gmra.mrb[0].mxu0 %v2728
    %v2796 = vpop.f32.mrb[0].mxu0
    %v2797 = vadd.f32 0.0, %v2796
    %v2798 = vpop.f32.mrb[0].mxu0
    %2799 = vdwg.mxu0
    %v2801 = vsel %vm40, %v2711, 0
    %2803 = vmatprep.subr.mxu0 0.0
    %2804 = vmatpush1.msra.mxu0 %v2715
    %2805 = vmatprep.subr.mxu0 0.0
    %2806 = vmatpush1.msra.mxu0 %v2716
    %2807 = vmatprep.subr.mxu0 0.0
    %2808 = vmatpush1.msra.mxu0 %v2717
    %2809 = vmatprep.subr.mxu0 0.0
    %2810 = vmatpush1.msra.mxu0 %v2718
    %2811 = vmatprep.subr.mxu0 0.0
    %2812 = vmatpush1.msra.mxu0 0.0
    %2813 = vmatprep.subr.mxu0 0.0
    %2814 = vmatpush1.msra.mxu0 0.0
    %2815 = vmatprep.subr.mxu0 0.0
    %2816 = vmatpush1.msra.mxu0 0.0
    %2817 = vmatprep.subr.mxu0 0.0
    %2818 = vmatpush1.msra.mxu0 0.0
    %2819 = vmatprep.subr.mxu0 0.0
    %2820 = vmatpush1.msra.mxu0 0.0
    %2821 = vmatprep.subr.mxu0 0.0
    %2822 = vmatpush1.msra.mxu0 0.0
    %2823 = vmatprep.subr.mxu0 0.0
    %2824 = vmatpush1.msra.mxu0 0.0
    %2825 = vmatprep.subr.mxu0 0.0
    %2826 = vmatpush1.msra.mxu0 0.0
    %2827 = vmatprep.subr.mxu0 0.0
    %2828 = vmatpush1.msra.mxu0 0.0
    %2829 = vmatprep.subr.mxu0 0.0
    %2830 = vmatpush1.msra.mxu0 0.0
    %2831 = vmatprep.subr.mxu0 0.0
    %2832 = vmatpush1.msra.mxu0 0.0
    %2833 = vmatprep.subr.mxu0 0.0
    %2834 = vmatpush1.msra.mxu0 0.0
    %2835 = vmatprep.subr.mxu0 0.0
    %2836 = vmatpush1.msra.mxu0 0.0
    %2837 = vmatprep.subr.mxu0 0.0
    %2838 = vmatpush1.msra.mxu0 0.0
    %2839 = vmatprep.subr.mxu0 0.0
    %2840 = vmatpush1.msra.mxu0 0.0
    %2841 = vmatprep.subr.mxu0 0.0
    %2842 = vmatpush1.msra.mxu0 0.0
    %2843 = vmatprep.subr.mxu0 0.0
    %2844 = vmatpush1.msra.mxu0 0.0
    %2845 = vmatprep.subr.mxu0 0.0
    %2846 = vmatpush1.msra.mxu0 0.0
    %2847 = vmatprep.subr.mxu0 0.0
    %2848 = vmatpush1.msra.mxu0 0.0
    %2849 = vmatprep.subr.mxu0 0.0
    %2850 = vmatpush1.msra.mxu0 0.0
    %2851 = vmatprep.subr.mxu0 0.0
    %2852 = vmatpush1.msra.mxu0 0.0
    %2853 = vmatprep.subr.mxu0 0.0
    %2854 = vmatpush1.msra.mxu0 0.0
    %2855 = vmatprep.subr.mxu0 0.0
    %2856 = vmatpush1.msra.mxu0 0.0
    %2857 = vmatprep.subr.mxu0 0.0
    %2858 = vmatpush1.msra.mxu0 0.0
    %2859 = vmatprep.subr.mxu0 0.0
    %2860 = vmatpush1.msra.mxu0 0.0
    %2861 = vmatprep.subr.mxu0 0.0
    %2862 = vmatpush1.msra.mxu0 0.0
    %2863 = vmatprep.subr.mxu0 0.0
    %2864 = vmatpush1.msra.mxu0 0.0
    %2865 = vmatprep.subr.mxu0 0.0
    %2866 = vmatpush1.msra.mxu0 0.0
    %2867 = vmatprep.mubr.f32.mxu0 0.0
    %2868 = vmatmul.mubr.f32.gmra.mrb[0].mxu0 %v2801
    %v2869 = vpop.f32.mrb[0].mxu0
    %v2870 = vadd.f32 %v2797, %v2869
    %v2871 = vpop.f32.mrb[0].mxu0
    %2872 = vdwg.mxu0
    %v2873 = vlaneseq
    %v2874 = vshrl.u32 %v2873, 7
    %v2875 = vsub.s32 0, %v2874
    %v2876 = vrot.slane %v2713, %v2875
    %v2877 = vadd.f32 %v2870, %v2876
    %v2878 = vadd.f32 %v2877, %v26
    %v2879 = vmax.f32 %v2878, 0.0
    %s2880 = scalar_lea.vmem %s2, 96
    %v2881 = vld [vmem:[%s2880] sm:$0xff]
    %s2882 = scalar_lea.vmem %s1, 1152
    %v2883 = vld [vmem:[%s2882] sm:$0xff]
    %v2884 = vld [vmem:[%s2882 + $0x8] sm:$0xff]
    %v2885 = vld [vmem:[%s2882 + $0x10] sm:$0xff]
    %v2886 = vld [vmem:[%s2882 + $0x18] sm:$0xff]
    %v2887 = vrot.slane %v2879, 7
    %v2888 = vsub.f32 0.0, %v2887
    %v2889 = vsel %vm25, %v2888, 0.0
    %s2890 = scalar_lea.vmem %s1, 1184
    %v2891 = vld [vmem:[%s2890] sm:$0xff]
    %v2892 = vld [vmem:[%s2890 + $0x8] sm:$0xff]
    %v2893 = vld [vmem:[%s2890 + $0x10] sm:$0xff]
    %v2894 = vld [vmem:[%s2890 + $0x18] sm:$0xff]
    %v2896 = vsel %vm40, %v2889, 0
    %2898 = vmatprep.subr.mxu0 0.0
    %2899 = vmatpush1.msra.mxu0 %v2891
    %2900 = vmatprep.subr.mxu0 0.0
    %2901 = vmatpush1.msra.mxu0 %v2892
    %2902 = vmatprep.subr.mxu0 0.0
    %2903 = vmatpush1.msra.mxu0 %v2893
    %2904 = vmatprep.subr.mxu0 0.0
    %2905 = vmatpush1.msra.mxu0 %v2894
    %2906 = vmatprep.subr.mxu0 0.0
    %2907 = vmatpush1.msra.mxu0 0.0
    %2908 = vmatprep.subr.mxu0 0.0
    %2909 = vmatpush1.msra.mxu0 0.0
    %2910 = vmatprep.subr.mxu0 0.0
    %2911 = vmatpush1.msra.mxu0 0.0
    %2912 = vmatprep.subr.mxu0 0.0
    %2913 = vmatpush1.msra.mxu0 0.0
    %2914 = vmatprep.subr.mxu0 0.0
    %2915 = vmatpush1.msra.mxu0 0.0
    %2916 = vmatprep.subr.mxu0 0.0
    %2917 = vmatpush1.msra.mxu0 0.0
    %2918 = vmatprep.subr.mxu0 0.0
    %2919 = vmatpush1.msra.mxu0 0.0
    %2920 = vmatprep.subr.mxu0 0.0
    %2921 = vmatpush1.msra.mxu0 0.0
    %2922 = vmatprep.subr.mxu0 0.0
    %2923 = vmatpush1.msra.mxu0 0.0
    %2924 = vmatprep.subr.mxu0 0.0
    %2925 = vmatpush1.msra.mxu0 0.0
    %2926 = vmatprep.subr.mxu0 0.0
    %2927 = vmatpush1.msra.mxu0 0.0
    %2928 = vmatprep.subr.mxu0 0.0
    %2929 = vmatpush1.msra.mxu0 0.0
    %2930 = vmatprep.subr.mxu0 0.0
    %2931 = vmatpush1.msra.mxu0 0.0
    %2932 = vmatprep.subr.mxu0 0.0
    %2933 = vmatpush1.msra.mxu0 0.0
    %2934 = vmatprep.subr.mxu0 0.0
    %2935 = vmatpush1.msra.mxu0 0.0
    %2936 = vmatprep.subr.mxu0 0.0
    %2937 = vmatpush1.msra.mxu0 0.0
    %2938 = vmatprep.subr.mxu0 0.0
    %2939 = vmatpush1.msra.mxu0 0.0
    %2940 = vmatprep.subr.mxu0 0.0
    %2941 = vmatpush1.msra.mxu0 0.0
    %2942 = vmatprep.subr.mxu0 0.0
    %2943 = vmatpush1.msra.mxu0 0.0
    %2944 = vmatprep.subr.mxu0 0.0
    %2945 = vmatpush1.msra.mxu0 0.0
    %2946 = vmatprep.subr.mxu0 0.0
    %2947 = vmatpush1.msra.mxu0 0.0
    %2948 = vmatprep.subr.mxu0 0.0
    %2949 = vmatpush1.msra.mxu0 0.0
    %2950 = vmatprep.subr.mxu0 0.0
    %2951 = vmatpush1.msra.mxu0 0.0
    %2952 = vmatprep.subr.mxu0 0.0
    %2953 = vmatpush1.msra.mxu0 0.0
    %2954 = vmatprep.subr.mxu0 0.0
    %2955 = vmatpush1.msra.mxu0 0.0
    %2956 = vmatprep.subr.mxu0 0.0
    %2957 = vmatpush1.msra.mxu0 0.0
    %2958 = vmatprep.subr.mxu0 0.0
    %2959 = vmatpush1.msra.mxu0 0.0
    %2960 = vmatprep.subr.mxu0 0.0
    %2961 = vmatpush1.msra.mxu0 0.0
    %2962 = vmatprep.mubr.f32.mxu0 0.0
    %2963 = vmatmul.mubr.f32.gmra.mrb[0].mxu0 %v2896
    %v2964 = vpop.f32.mrb[0].mxu0
    %v2965 = vadd.f32 0.0, %v2964
    %v2966 = vpop.f32.mrb[0].mxu0
    %2967 = vdwg.mxu0
    %v2969 = vsel %vm40, %v2879, 0
    %2971 = vmatprep.subr.mxu0 0.0
    %2972 = vmatpush1.msra.mxu0 %v2883
    %2973 = vmatprep.subr.mxu0 0.0
    %2974 = vmatpush1.msra.mxu0 %v2884
    %2975 = vmatprep.subr.mxu0 0.0
    %2976 = vmatpush1.msra.mxu0 %v2885
    %2977 = vmatprep.subr.mxu0 0.0
    %2978 = vmatpush1.msra.mxu0 %v2886
    %2979 = vmatprep.subr.mxu0 0.0
    %2980 = vmatpush1.msra.mxu0 0.0
    %2981 = vmatprep.subr.mxu0 0.0
    %2982 = vmatpush1.msra.mxu0 0.0
    %2983 = vmatprep.subr.mxu0 0.0
    %2984 = vmatpush1.msra.mxu0 0.0
    %2985 = vmatprep.subr.mxu0 0.0
    %2986 = vmatpush1.msra.mxu0 0.0
    %2987 = vmatprep.subr.mxu0 0.0
    %2988 = vmatpush1.msra.mxu0 0.0
    %2989 = vmatprep.subr.mxu0 0.0
    %2990 = vmatpush1.msra.mxu0 0.0
    %2991 = vmatprep.subr.mxu0 0.0
    %2992 = vmatpush1.msra.mxu0 0.0
    %2993 = vmatprep.subr.mxu0 0.0
    %2994 = vmatpush1.msra.mxu0 0.0
    %2995 = vmatprep.subr.mxu0 0.0
    %2996 = vmatpush1.msra.mxu0 0.0
    %2997 = vmatprep.subr.mxu0 0.0
    %2998 = vmatpush1.msra.mxu0 0.0
    %2999 = vmatprep.subr.mxu0 0.0
    %3000 = vmatpush1.msra.mxu0 0.0
    %3001 = vmatprep.subr.mxu0 0.0
    %3002 = vmatpush1.msra.mxu0 0.0
    %3003 = vmatprep.subr.mxu0 0.0
    %3004 = vmatpush1.msra.mxu0 0.0
    %3005 = vmatprep.subr.mxu0 0.0
    %3006 = vmatpush1.msra.mxu0 0.0
    %3007 = vmatprep.subr.mxu0 0.0
    %3008 = vmatpush1.msra.mxu0 0.0
    %3009 = vmatprep.subr.mxu0 0.0
    %3010 = vmatpush1.msra.mxu0 0.0
    %3011 = vmatprep.subr.mxu0 0.0
    %3012 = vmatpush1.msra.mxu0 0.0
    %3013 = vmatprep.subr.mxu0 0.0
    %3014 = vmatpush1.msra.mxu0 0.0
    %3015 = vmatprep.subr.mxu0 0.0
    %3016 = vmatpush1.msra.mxu0 0.0
    %3017 = vmatprep.subr.mxu0 0.0
    %3018 = vmatpush1.msra.mxu0 0.0
    %3019 = vmatprep.subr.mxu0 0.0
    %3020 = vmatpush1.msra.mxu0 0.0
    %3021 = vmatprep.subr.mxu0 0.0
    %3022 = vmatpush1.msra.mxu0 0.0
    %3023 = vmatprep.subr.mxu0 0.0
    %3024 = vmatpush1.msra.mxu0 0.0
    %3025 = vmatprep.subr.mxu0 0.0
    %3026 = vmatpush1.msra.mxu0 0.0
    %3027 = vmatprep.subr.mxu0 0.0
    %3028 = vmatpush1.msra.mxu0 0.0
    %3029 = vmatprep.subr.mxu0 0.0
    %3030 = vmatpush1.msra.mxu0 0.0
    %3031 = vmatprep.subr.mxu0 0.0
    %3032 = vmatpush1.msra.mxu0 0.0
    %3033 = vmatprep.subr.mxu0 0.0
    %3034 = vmatpush1.msra.mxu0 0.0
    %3035 = vmatprep.mubr.f32.mxu0 0.0
    %3036 = vmatmul.mubr.f32.gmra.mrb[0].mxu0 %v2969
    %v3037 = vpop.f32.mrb[0].mxu0
    %v3038 = vadd.f32 %v2965, %v3037
    %v3039 = vpop.f32.mrb[0].mxu0
    %3040 = vdwg.mxu0
    %v3041 = vlaneseq
    %v3042 = vshrl.u32 %v3041, 7
    %v3043 = vsub.s32 0, %v3042
    %v3044 = vrot.slane %v2881, %v3043
    %v3045 = vadd.f32 %v3038, %v3044
    %v3046 = vsel %vm40, %v3045, 0.0
    %v3047 = vrot.slane %v3046, 4
    %v3048 = vadd.f32 %v3046, %v3047
    %v3049 = vrot.slane %v3048, 2
    %v3050 = vadd.f32 %v3048, %v3049
    %v3051 = vrot.slane %v3050, 1
    %v3052 = vadd.f32 %v3050, %v3051
    %v3053 = vmul.f32 %v3052, %v199
    %v3054 = vmul.f32 %v3053, %v2881
    %v3055 = vlaneseq
    %v3056 = vshrl.u32 %v3055, 7
    %v3057 = vsub.s32 3, %v3056
    %v3058 = vrot.slane %v3054, %v3057
    %v3059 = vsub.f32 %v3045, %v3058
    %v3060 = vmul.f32 %v3059, %v3059
    %v3061 = vsel %vm40, %v3060, 0.0
    %v3062 = vrot.slane %v3061, 4
    %v3063 = vadd.f32 %v3061, %v3062
    %v3064 = vrot.slane %v3063, 2
    %v3065 = vadd.f32 %v3063, %v3064
    %v3066 = vrot.slane %v3065, 1
    %v3067 = vadd.f32 %v3065, %v3066
    %v3068 = vmul.f32 %v3067, %v199
    %v3069 = vlaneseq
    %v3070 = vshrl.u32 %v3069, 7
    %v3071 = vsub.s32 1, %v3070
    %v3072 = vrot.slane %v2881, %v3071
    %v3073 = vmul.f32 %v3072, %v3059
    %v3074 = vadd.f32 %v3068, 1e-05
    %v3075 = vrsqrt.pop %v3074
    %v3076 = vmul.f32 %v3073, %v3075
    %v3077 = vlaneseq
    %v3078 = vshrl.u32 %v3077, 7
    %v3079 = vsub.s32 2, %v3078
    %v3080 = vrot.slane %v2881, %v3079
    %v3081 = vadd.f32 %v3076, %v3080
    %vm3082 = vcmp.ge.f32.partialorder %v3081, 0.0
    %v3083 = vmul.f32 %v3081, 0.2
    %v3084 = vsel %vm3082, %v3081, %v3083
    %s3085 = scalar_lea.vmem %s2, 104
    %v3086 = vld [vmem:[%s3085] sm:$0xff]
    %s3087 = scalar_lea.vmem %s1, 1248
    %v3088 = vld [vmem:[%s3087] sm:$0xff]
    %v3089 = vld [vmem:[%s3087 + $0x8] sm:$0xff]
    %v3090 = vld [vmem:[%s3087 + $0x10] sm:$0xff]
    %v3091 = vld [vmem:[%s3087 + $0x18] sm:$0xff]
    %v3092 = vrot.slane %v3084, 7
    %v3093 = vsub.f32 0.0, %v3092
    %v3094 = vsel %vm25, %v3093, 0.0
    %s3095 = scalar_lea.vmem %s1, 1280
    %v3096 = vld [vmem:[%s3095] sm:$0xff]
    %v3097 = vld [vmem:[%s3095 + $0x8] sm:$0xff]
    %v3098 = vld [vmem:[%s3095 + $0x10] sm:$0xff]
    %v3099 = vld [vmem:[%s3095 + $0x18] sm:$0xff]
    %v3101 = vsel %vm40, %v3094, 0
    %3103 = vmatprep.subr.mxu0 0.0
    %3104 = vmatpush1.msra.mxu0 %v3096
    %3105 = vmatprep.subr.mxu0 0.0
    %3106 = vmatpush1.msra.mxu0 %v3097
    %3107 = vmatprep.subr.mxu0 0.0
    %3108 = vmatpush1.msra.mxu0 %v3098
    %3109 = vmatprep.subr.mxu0 0.0
    %3110 = vmatpush1.msra.mxu0 %v3099
    %3111 = vmatprep.subr.mxu0 0.0
    %3112 = vmatpush1.msra.mxu0 0.0
    %3113 = vmatprep.subr.mxu0 0.0
    %3114 = vmatpush1.msra.mxu0 0.0
    %3115 = vmatprep.subr.mxu0 0.0
    %3116 = vmatpush1.msra.mxu0 0.0
    %3117 = vmatprep.subr.mxu0 0.0
    %3118 = vmatpush1.msra.mxu0 0.0
    %3119 = vmatprep.subr.mxu0 0.0
    %3120 = vmatpush1.msra.mxu0 0.0
    %3121 = vmatprep.subr.mxu0 0.0
    %3122 = vmatpush1.msra.mxu0 0.0
    %3123 = vmatprep.subr.mxu0 0.0
    %3124 = vmatpush1.msra.mxu0 0.0
    %3125 = vmatprep.subr.mxu0 0.0
    %3126 = vmatpush1.msra.mxu0 0.0
    %3127 = vmatprep.subr.mxu0 0.0
    %3128 = vmatpush1.msra.mxu0 0.0
    %3129 = vmatprep.subr.mxu0 0.0
    %3130 = vmatpush1.msra.mxu0 0.0
    %3131 = vmatprep.subr.mxu0 0.0
    %3132 = vmatpush1.msra.mxu0 0.0
    %3133 = vmatprep.subr.mxu0 0.0
    %3134 = vmatpush1.msra.mxu0 0.0
    %3135 = vmatprep.subr.mxu0 0.0
    %3136 = vmatpush1.msra.mxu0 0.0
    %3137 = vmatprep.subr.mxu0 0.0
    %3138 = vmatpush1.msra.mxu0 0.0
    %3139 = vmatprep.subr.mxu0 0.0
    %3140 = vmatpush1.msra.mxu0 0.0
    %3141 = vmatprep.subr.mxu0 0.0
    %3142 = vmatpush1.msra.mxu0 0.0
    %3143 = vmatprep.subr.mxu0 0.0
    %3144 = vmatpush1.msra.mxu0 0.0
    %3145 = vmatprep.subr.mxu0 0.0
    %3146 = vmatpush1.msra.mxu0 0.0
    %3147 = vmatprep.subr.mxu0 0.0
    %3148 = vmatpush1.msra.mxu0 0.0
    %3149 = vmatprep.subr.mxu0 0.0
    %3150 = vmatpush1.msra.mxu0 0.0
    %3151 = vmatprep.subr.mxu0 0.0
    %3152 = vmatpush1.msra.mxu0 0.0
    %3153 = vmatprep.subr.mxu0 0.0
    %3154 = vmatpush1.msra.mxu0 0.0
    %3155 = vmatprep.subr.mxu0 0.0
    %3156 = vmatpush1.msra.mxu0 0.0
    %3157 = vmatprep.subr.mxu0 0.0
    %3158 = vmatpush1.msra.mxu0 0.0
    %3159 = vmatprep.subr.mxu0 0.0
    %3160 = vmatpush1.msra.mxu0 0.0
    %3161 = vmatprep.subr.mxu0 0.0
    %3162 = vmatpush1.msra.mxu0 0.0
    %3163 = vmatprep.subr.mxu0 0.0
    %3164 = vmatpush1.msra.mxu0 0.0
    %3165 = vmatprep.subr.mxu0 0.0
    %3166 = vmatpush1.msra.mxu0 0.0
    %3167 = vmatprep.mubr.f32.mxu0 0.0
    %3168 = vmatmul.mubr.f32.gmra.mrb[0].mxu0 %v3101
    %v3169 = vpop.f32.mrb[0].mxu0
    %v3170 = vadd.f32 0.0, %v3169
    %v3171 = vpop.f32.mrb[0].mxu0
    %3172 = vdwg.mxu0
    %v3174 = vsel %vm40, %v3084, 0
    %3176 = vmatprep.subr.mxu0 0.0
    %3177 = vmatpush1.msra.mxu0 %v3088
    %3178 = vmatprep.subr.mxu0 0.0
    %3179 = vmatpush1.msra.mxu0 %v3089
    %3180 = vmatprep.subr.mxu0 0.0
    %3181 = vmatpush1.msra.mxu0 %v3090
    %3182 = vmatprep.subr.mxu0 0.0
    %3183 = vmatpush1.msra.mxu0 %v3091
    %3184 = vmatprep.subr.mxu0 0.0
    %3185 = vmatpush1.msra.mxu0 0.0
    %3186 = vmatprep.subr.mxu0 0.0
    %3187 = vmatpush1.msra.mxu0 0.0
    %3188 = vmatprep.subr.mxu0 0.0
    %3189 = vmatpush1.msra.mxu0 0.0
    %3190 = vmatprep.subr.mxu0 0.0
    %3191 = vmatpush1.msra.mxu0 0.0
    %3192 = vmatprep.subr.mxu0 0.0
    %3193 = vmatpush1.msra.mxu0 0.0
    %3194 = vmatprep.subr.mxu0 0.0
    %3195 = vmatpush1.msra.mxu0 0.0
    %3196 = vmatprep.subr.mxu0 0.0
    %3197 = vmatpush1.msra.mxu0 0.0
    %3198 = vmatprep.subr.mxu0 0.0
    %3199 = vmatpush1.msra.mxu0 0.0
    %3200 = vmatprep.subr.mxu0 0.0
    %3201 = vmatpush1.msra.mxu0 0.0
    %3202 = vmatprep.subr.mxu0 0.0
    %3203 = vmatpush1.msra.mxu0 0.0
    %3204 = vmatprep.subr.mxu0 0.0
    %3205 = vmatpush1.msra.mxu0 0.0
    %3206 = vmatprep.subr.mxu0 0.0
    %3207 = vmatpush1.msra.mxu0 0.0
    %3208 = vmatprep.subr.mxu0 0.0
    %3209 = vmatpush1.msra.mxu0 0.0
    %3210 = vmatprep.subr.mxu0 0.0
    %3211 = vmatpush1.msra.mxu0 0.0
    %3212 = vmatprep.subr.mxu0 0.0
    %3213 = vmatpush1.msra.mxu0 0.0
    %3214 = vmatprep.subr.mxu0 0.0
    %3215 = vmatpush1.msra.mxu0 0.0
    %3216 = vmatprep.subr.mxu0 0.0
    %3217 = vmatpush1.msra.mxu0 0.0
    %3218 = vmatprep.subr.mxu0 0.0
    %3219 = vmatpush1.msra.mxu0 0.0
    %3220 = vmatprep.subr.mxu0 0.0
    %3221 = vmatpush1.msra.mxu0 0.0
    %3222 = vmatprep.subr.mxu0 0.0
    %3223 = vmatpush1.msra.mxu0 0.0
    %3224 = vmatprep.subr.mxu0 0.0
    %3225 = vmatpush1.msra.mxu0 0.0
    %3226 = vmatprep.subr.mxu0 0.0
    %3227 = vmatpush1.msra.mxu0 0.0
    %3228 = vmatprep.subr.mxu0 0.0
    %3229 = vmatpush1.msra.mxu0 0.0
    %3230 = vmatprep.subr.mxu0 0.0
    %3231 = vmatpush1.msra.mxu0 0.0
    %3232 = vmatprep.subr.mxu0 0.0
    %3233 = vmatpush1.msra.mxu0 0.0
    %3234 = vmatprep.subr.mxu0 0.0
    %3235 = vmatpush1.msra.mxu0 0.0
    %3236 = vmatprep.subr.mxu0 0.0
    %3237 = vmatpush1.msra.mxu0 0.0
    %3238 = vmatprep.subr.mxu0 0.0
    %3239 = vmatpush1.msra.mxu0 0.0
    %3240 = vmatprep.mubr.f32.mxu0 0.0
    %3241 = vmatmul.mubr.f32.gmra.mrb[0].mxu0 %v3174
    %v3242 = vpop.f32.mrb[0].mxu0
    %v3243 = vadd.f32 %v3170, %v3242
    %v3244 = vpop.f32.mrb[0].mxu0
    %3245 = vdwg.mxu0
    %v3246 = vrot.slane %v3094, 7
    %v3247 = vsub.f32 0.0, %v3246
    %v3248 = vsel %vm25, %v3247, 0.0
    %v3249 = vmul.f32 %v3248, 2.0
    %v3250 = vsub.f32 %v3249, %v3084
    %s3251 = scalar_lea.vmem %s1, 1312
    %v3252 = vld [vmem:[%s3251] sm:$0xff]
    %v3253 = vld [vmem:[%s3251 + $0x8] sm:$0xff]
    %v3254 = vld [vmem:[%s3251 + $0x10] sm:$0xff]
    %v3255 = vld [vmem:[%s3251 + $0x18] sm:$0xff]
    %v3257 = vsel %vm40, %v3250, 0
    %3259 = vmatprep.subr.mxu0 0.0
    %3260 = vmatpush1.msra.mxu0 %v3252
    %3261 = vmatprep.subr.mxu0 0.0
    %3262 = vmatpush1.msra.mxu0 %v3253
    %3263 = vmatprep.subr.mxu0 0.0
    %3264 = vmatpush1.msra.mxu0 %v3254
    %3265 = vmatprep.subr.mxu0 0.0
    %3266 = vmatpush1.msra.mxu0 %v3255
    %3267 = vmatprep.subr.mxu0 0.0
    %3268 = vmatpush1.msra.mxu0 0.0
    %3269 = vmatprep.subr.mxu0 0.0
    %3270 = vmatpush1.msra.mxu0 0.0
    %3271 = vmatprep.subr.mxu0 0.0
    %3272 = vmatpush1.msra.mxu0 0.0
    %3273 = vmatprep.subr.mxu0 0.0
    %3274 = vmatpush1.msra.mxu0 0.0
    %3275 = vmatprep.subr.mxu0 0.0
    %3276 = vmatpush1.msra.mxu0 0.0
    %3277 = vmatprep.subr.mxu0 0.0
    %3278 = vmatpush1.msra.mxu0 0.0
    %3279 = vmatprep.subr.mxu0 0.0
    %3280 = vmatpush1.msra.mxu0 0.0
    %3281 = vmatprep.subr.mxu0 0.0
    %3282 = vmatpush1.msra.mxu0 0.0
    %3283 = vmatprep.subr.mxu0 0.0
    %3284 = vmatpush1.msra.mxu0 0.0
    %3285 = vmatprep.subr.mxu0 0.0
    %3286 = vmatpush1.msra.mxu0 0.0
    %3287 = vmatprep.subr.mxu0 0.0
    %3288 = vmatpush1.msra.mxu0 0.0
    %3289 = vmatprep.subr.mxu0 0.0
    %3290 = vmatpush1.msra.mxu0 0.0
    %3291 = vmatprep.subr.mxu0 0.0
    %3292 = vmatpush1.msra.mxu0 0.0
    %3293 = vmatprep.subr.mxu0 0.0
    %3294 = vmatpush1.msra.mxu0 0.0
    %3295 = vmatprep.subr.mxu0 0.0
    %3296 = vmatpush1.msra.mxu0 0.0
    %3297 = vmatprep.subr.mxu0 0.0
    %3298 = vmatpush1.msra.mxu0 0.0
    %3299 = vmatprep.subr.mxu0 0.0
    %3300 = vmatpush1.msra.mxu0 0.0
    %3301 = vmatprep.subr.mxu0 0.0
    %3302 = vmatpush1.msra.mxu0 0.0
    %3303 = vmatprep.subr.mxu0 0.0
    %3304 = vmatpush1.msra.mxu0 0.0
    %3305 = vmatprep.subr.mxu0 0.0
    %3306 = vmatpush1.msra.mxu0 0.0
    %3307 = vmatprep.subr.mxu0 0.0
    %3308 = vmatpush1.msra.mxu0 0.0
    %3309 = vmatprep.subr.mxu0 0.0
    %3310 = vmatpush1.msra.mxu0 0.0
    %3311 = vmatprep.subr.mxu0 0.0
    %3312 = vmatpush1.msra.mxu0 0.0
    %3313 = vmatprep.subr.mxu0 0.0
    %3314 = vmatpush1.msra.mxu0 0.0
    %3315 = vmatprep.subr.mxu0 0.0
    %3316 = vmatpush1.msra.mxu0 0.0
    %3317 = vmatprep.subr.mxu0 0.0
    %3318 = vmatpush1.msra.mxu0 0.0
    %3319 = vmatprep.subr.mxu0 0.0
    %3320 = vmatpush1.msra.mxu0 0.0
    %3321 = vmatprep.subr.mxu0 0.0
    %3322 = vmatpush1.msra.mxu0 0.0
    %3323 = vmatprep.mubr.f32.mxu0 0.0
    %3324 = vmatmul.mubr.f32.gmra.mrb[0].mxu0 %v3257
    %v3325 = vpop.f32.mrb[0].mxu0
    %v3326 = vadd.f32 0.0, %v3325
    %v3327 = vpop.f32.mrb[0].mxu0
    %3328 = vdwg.mxu0
    %v3329 = vadd.f32 %v3243, %v3326
    %v3330 = vlaneseq
    %v3331 = vshrl.u32 %v3330, 7
    %v3332 = vsub.s32 0, %v3331
    %v3333 = vrot.slane %v3086, %v3332
    %v3334 = vadd.f32 %v3329, %v3333
    %v3335 = vsel %vm40, %v3334, 0.0
    %v3336 = vrot.slane %v3335, 4
    %v3337 = vadd.f32 %v3335, %v3336
    %v3338 = vrot.slane %v3337, 2
    %v3339 = vadd.f32 %v3337, %v3338
    %v3340 = vrot.slane %v3339, 1
    %v3341 = vadd.f32 %v3339, %v3340
    %v3342 = vmul.f32 %v3341, %v199
    %v3343 = vmul.f32 %v3342, %v3086
    %v3344 = vlaneseq
    %v3345 = vshrl.u32 %v3344, 7
    %v3346 = vsub.s32 3, %v3345
    %v3347 = vrot.slane %v3343, %v3346
    %v3348 = vsub.f32 %v3334, %v3347
    %v3349 = vmul.f32 %v3348, %v3348
    %v3350 = vsel %vm40, %v3349, 0.0
    %v3351 = vrot.slane %v3350, 4
    %v3352 = vadd.f32 %v3350, %v3351
    %v3353 = vrot.slane %v3352, 2
    %v3354 = vadd.f32 %v3352, %v3353
    %v3355 = vrot.slane %v3354, 1
    %v3356 = vadd.f32 %v3354, %v3355
    %v3357 = vmul.f32 %v3356, %v199
    %v3358 = vlaneseq
    %v3359 = vshrl.u32 %v3358, 7
    %v3360 = vsub.s32 1, %v3359
    %v3361 = vrot.slane %v3086, %v3360
    %v3362 = vmul.f32 %v3361, %v3348
    %v3363 = vadd.f32 %v3357, 1e-05
    %v3364 = vrsqrt.pop %v3363
    %v3365 = vmul.f32 %v3362, %v3364
    %v3366 = vlaneseq
    %v3367 = vshrl.u32 %v3366, 7
    %v3368 = vsub.s32 2, %v3367
    %v3369 = vrot.slane %v3086, %v3368
    %v3370 = vadd.f32 %v3365, %v3369
    %vm3371 = vcmp.ge.f32.partialorder %v3370, 0.0
    %v3372 = vmul.f32 %v3370, 0.2
    %v3373 = vsel %vm3371, %v3370, %v3372
    %s3374 = scalar_lea.vmem %s2, 112
    %v3375 = vld [vmem:[%s3374] sm:$0xff]
    %s3376 = scalar_lea.vmem %s1, 1344
    %v3377 = vld [vmem:[%s3376] sm:$0xff]
    %v3378 = vld [vmem:[%s3376 + $0x8] sm:$0xff]
    %v3379 = vld [vmem:[%s3376 + $0x10] sm:$0xff]
    %v3380 = vld [vmem:[%s3376 + $0x18] sm:$0xff]
    %v3381 = vrot.slane %v3373, 7
    %v3382 = vsub.f32 0.0, %v3381
    %v3383 = vsel %vm25, %v3382, 0.0
    %s3384 = scalar_lea.vmem %s1, 1376
    %v3385 = vld [vmem:[%s3384] sm:$0xff]
    %v3386 = vld [vmem:[%s3384 + $0x8] sm:$0xff]
    %v3387 = vld [vmem:[%s3384 + $0x10] sm:$0xff]
    %v3388 = vld [vmem:[%s3384 + $0x18] sm:$0xff]
    %v3390 = vsel %vm40, %v3383, 0
    %3392 = vmatprep.subr.mxu0 0.0
    %3393 = vmatpush1.msra.mxu0 %v3385
    %3394 = vmatprep.subr.mxu0 0.0
    %3395 = vmatpush1.msra.mxu0 %v3386
    %3396 = vmatprep.subr.mxu0 0.0
    %3397 = vmatpush1.msra.mxu0 %v3387
    %3398 = vmatprep.subr.mxu0 0.0
    %3399 = vmatpush1.msra.mxu0 %v3388
    %3400 = vmatprep.subr.mxu0 0.0
    %3401 = vmatpush1.msra.mxu0 0.0
    %3402 = vmatprep.subr.mxu0 0.0
    %3403 = vmatpush1.msra.mxu0 0.0
    %3404 = vmatprep.subr.mxu0 0.0
    %3405 = vmatpush1.msra.mxu0 0.0
    %3406 = vmatprep.subr.mxu0 0.0
    %3407 = vmatpush1.msra.mxu0 0.0
    %3408 = vmatprep.subr.mxu0 0.0
    %3409 = vmatpush1.msra.mxu0 0.0
    %3410 = vmatprep.subr.mxu0 0.0
    %3411 = vmatpush1.msra.mxu0 0.0
    %3412 = vmatprep.subr.mxu0 0.0
    %3413 = vmatpush1.msra.mxu0 0.0
    %3414 = vmatprep.subr.mxu0 0.0
    %3415 = vmatpush1.msra.mxu0 0.0
    %3416 = vmatprep.subr.mxu0 0.0
    %3417 = vmatpush1.msra.mxu0 0.0
    %3418 = vmatprep.subr.mxu0 0.0
    %3419 = vmatpush1.msra.mxu0 0.0
    %3420 = vmatprep.subr.mxu0 0.0
    %3421 = vmatpush1.msra.mxu0 0.0
    %3422 = vmatprep.subr.mxu0 0.0
    %3423 = vmatpush1.msra.mxu0 0.0
    %3424 = vmatprep.subr.mxu0 0.0
    %3425 = vmatpush1.msra.mxu0 0.0
    %3426 = vmatprep.subr.mxu0 0.0
    %3427 = vmatpush1.msra.mxu0 0.0
    %3428 = vmatprep.subr.mxu0 0.0
    %3429 = vmatpush1.msra.mxu0 0.0
    %3430 = vmatprep.subr.mxu0 0.0
    %3431 = vmatpush1.msra.mxu0 0.0
    %3432 = vmatprep.subr.mxu0 0.0
    %3433 = vmatpush1.msra.mxu0 0.0
    %3434 = vmatprep.subr.mxu0 0.0
    %3435 = vmatpush1.msra.mxu0 0.0
    %3436 = vmatprep.subr.mxu0 0.0
    %3437 = vmatpush1.msra.mxu0 0.0
    %3438 = vmatprep.subr.mxu0 0.0
    %3439 = vmatpush1.msra.mxu0 0.0
    %3440 = vmatprep.subr.mxu0 0.0
    %3441 = vmatpush1.msra.mxu0 0.0
    %3442 = vmatprep.subr.mxu0 0.0
    %3443 = vmatpush1.msra.mxu0 0.0
    %3444 = vmatprep.subr.mxu0 0.0
    %3445 = vmatpush1.msra.mxu0 0.0
    %3446 = vmatprep.subr.mxu0 0.0
    %3447 = vmatpush1.msra.mxu0 0.0
    %3448 = vmatprep.subr.mxu0 0.0
    %3449 = vmatpush1.msra.mxu0 0.0
    %3450 = vmatprep.subr.mxu0 0.0
    %3451 = vmatpush1.msra.mxu0 0.0
    %3452 = vmatprep.subr.mxu0 0.0
    %3453 = vmatpush1.msra.mxu0 0.0
    %3454 = vmatprep.subr.mxu0 0.0
    %3455 = vmatpush1.msra.mxu0 0.0
    %3456 = vmatprep.mubr.f32.mxu0 0.0
    %3457 = vmatmul.mubr.f32.gmra.mrb[0].mxu0 %v3390
    %v3458 = vpop.f32.mrb[0].mxu0
    %v3459 = vadd.f32 0.0, %v3458
    %v3460 = vpop.f32.mrb[0].mxu0
    %3461 = vdwg.mxu0
    %v3463 = vsel %vm40, %v3373, 0
    %3465 = vmatprep.subr.mxu0 0.0
    %3466 = vmatpush1.msra.mxu0 %v3377
    %3467 = vmatprep.subr.mxu0 0.0
    %3468 = vmatpush1.msra.mxu0 %v3378
    %3469 = vmatprep.subr.mxu0 0.0
    %3470 = vmatpush1.msra.mxu0 %v3379
    %3471 = vmatprep.subr.mxu0 0.0
    %3472 = vmatpush1.msra.mxu0 %v3380
    %3473 = vmatprep.subr.mxu0 0.0
    %3474 = vmatpush1.msra.mxu0 0.0
    %3475 = vmatprep.subr.mxu0 0.0
    %3476 = vmatpush1.msra.mxu0 0.0
    %3477 = vmatprep.subr.mxu0 0.0
    %3478 = vmatpush1.msra.mxu0 0.0
    %3479 = vmatprep.subr.mxu0 0.0
    %3480 = vmatpush1.msra.mxu0 0.0
    %3481 = vmatprep.subr.mxu0 0.0
    %3482 = vmatpush1.msra.mxu0 0.0
    %3483 = vmatprep.subr.mxu0 0.0
    %3484 = vmatpush1.msra.mxu0 0.0
    %3485 = vmatprep.subr.mxu0 0.0
    %3486 = vmatpush1.msra.mxu0 0.0
    %3487 = vmatprep.subr.mxu0 0.0
    %3488 = vmatpush1.msra.mxu0 0.0
    %3489 = vmatprep.subr.mxu0 0.0
    %3490 = vmatpush1.msra.mxu0 0.0
    %3491 = vmatprep.subr.mxu0 0.0
    %3492 = vmatpush1.msra.mxu0 0.0
    %3493 = vmatprep.subr.mxu0 0.0
    %3494 = vmatpush1.msra.mxu0 0.0
    %3495 = vmatprep.subr.mxu0 0.0
    %3496 = vmatpush1.msra.mxu0 0.0
    %3497 = vmatprep.subr.mxu0 0.0
    %3498 = vmatpush1.msra.mxu0 0.0
    %3499 = vmatprep.subr.mxu0 0.0
    %3500 = vmatpush1.msra.mxu0 0.0
    %3501 = vmatprep.subr.mxu0 0.0
    %3502 = vmatpush1.msra.mxu0 0.0
    %3503 = vmatprep.subr.mxu0 0.0
    %3504 = vmatpush1.msra.mxu0 0.0
    %3505 = vmatprep.subr.mxu0 0.0
    %3506 = vmatpush1.msra.mxu0 0.0
    %3507 = vmatprep.subr.mxu0 0.0
    %3508 = vmatpush1.msra.mxu0 0.0
    %3509 = vmatprep.subr.mxu0 0.0
    %3510 = vmatpush1.msra.mxu0 0.0
    %3511 = vmatprep.subr.mxu0 0.0
    %3512 = vmatpush1.msra.mxu0 0.0
    %3513 = vmatprep.subr.mxu0 0.0
    %3514 = vmatpush1.msra.mxu0 0.0
    %3515 = vmatprep.subr.mxu0 0.0
    %3516 = vmatpush1.msra.mxu0 0.0
    %3517 = vmatprep.subr.mxu0 0.0
    %3518 = vmatpush1.msra.mxu0 0.0
    %3519 = vmatprep.subr.mxu0 0.0
    %3520 = vmatpush1.msra.mxu0 0.0
    %3521 = vmatprep.subr.mxu0 0.0
    %3522 = vmatpush1.msra.mxu0 0.0
    %3523 = vmatprep.subr.mxu0 0.0
    %3524 = vmatpush1.msra.mxu0 0.0
    %3525 = vmatprep.subr.mxu0 0.0
    %3526 = vmatpush1.msra.mxu0 0.0
    %3527 = vmatprep.subr.mxu0 0.0
    %3528 = vmatpush1.msra.mxu0 0.0
    %3529 = vmatprep.mubr.f32.mxu0 0.0
    %3530 = vmatmul.mubr.f32.gmra.mrb[0].mxu0 %v3463
    %v3531 = vpop.f32.mrb[0].mxu0
    %v3532 = vadd.f32 %v3459, %v3531
    %v3533 = vpop.f32.mrb[0].mxu0
    %3534 = vdwg.mxu0
    %v3535 = vrot.slane %v3383, 7
    %v3536 = vsub.f32 0.0, %v3535
    %v3537 = vsel %vm25, %v3536, 0.0
    %v3538 = vmul.f32 %v3537, 2.0
    %v3539 = vsub.f32 %v3538, %v3373
    %s3540 = scalar_lea.vmem %s1, 1408
    %v3541 = vld [vmem:[%s3540] sm:$0xff]
    %v3542 = vld [vmem:[%s3540 + $0x8] sm:$0xff]
    %v3543 = vld [vmem:[%s3540 + $0x10] sm:$0xff]
    %v3544 = vld [vmem:[%s3540 + $0x18] sm:$0xff]
    %v3546 = vsel %vm40, %v3539, 0
    %3548 = vmatprep.subr.mxu0 0.0
    %3549 = vmatpush1.msra.mxu0 %v3541
    %3550 = vmatprep.subr.mxu0 0.0
    %3551 = vmatpush1.msra.mxu0 %v3542
    %3552 = vmatprep.subr.mxu0 0.0
    %3553 = vmatpush1.msra.mxu0 %v3543
    %3554 = vmatprep.subr.mxu0 0.0
    %3555 = vmatpush1.msra.mxu0 %v3544
    %3556 = vmatprep.subr.mxu0 0.0
    %3557 = vmatpush1.msra.mxu0 0.0
    %3558 = vmatprep.subr.mxu0 0.0
    %3559 = vmatpush1.msra.mxu0 0.0
    %3560 = vmatprep.subr.mxu0 0.0
    %3561 = vmatpush1.msra.mxu0 0.0
    %3562 = vmatprep.subr.mxu0 0.0
    %3563 = vmatpush1.msra.mxu0 0.0
    %3564 = vmatprep.subr.mxu0 0.0
    %3565 = vmatpush1.msra.mxu0 0.0
    %3566 = vmatprep.subr.mxu0 0.0
    %3567 = vmatpush1.msra.mxu0 0.0
    %3568 = vmatprep.subr.mxu0 0.0
    %3569 = vmatpush1.msra.mxu0 0.0
    %3570 = vmatprep.subr.mxu0 0.0
    %3571 = vmatpush1.msra.mxu0 0.0
    %3572 = vmatprep.subr.mxu0 0.0
    %3573 = vmatpush1.msra.mxu0 0.0
    %3574 = vmatprep.subr.mxu0 0.0
    %3575 = vmatpush1.msra.mxu0 0.0
    %3576 = vmatprep.subr.mxu0 0.0
    %3577 = vmatpush1.msra.mxu0 0.0
    %3578 = vmatprep.subr.mxu0 0.0
    %3579 = vmatpush1.msra.mxu0 0.0
    %3580 = vmatprep.subr.mxu0 0.0
    %3581 = vmatpush1.msra.mxu0 0.0
    %3582 = vmatprep.subr.mxu0 0.0
    %3583 = vmatpush1.msra.mxu0 0.0
    %3584 = vmatprep.subr.mxu0 0.0
    %3585 = vmatpush1.msra.mxu0 0.0
    %3586 = vmatprep.subr.mxu0 0.0
    %3587 = vmatpush1.msra.mxu0 0.0
    %3588 = vmatprep.subr.mxu0 0.0
    %3589 = vmatpush1.msra.mxu0 0.0
    %3590 = vmatprep.subr.mxu0 0.0
    %3591 = vmatpush1.msra.mxu0 0.0
    %3592 = vmatprep.subr.mxu0 0.0
    %3593 = vmatpush1.msra.mxu0 0.0
    %3594 = vmatprep.subr.mxu0 0.0
    %3595 = vmatpush1.msra.mxu0 0.0
    %3596 = vmatprep.subr.mxu0 0.0
    %3597 = vmatpush1.msra.mxu0 0.0
    %3598 = vmatprep.subr.mxu0 0.0
    %3599 = vmatpush1.msra.mxu0 0.0
    %3600 = vmatprep.subr.mxu0 0.0
    %3601 = vmatpush1.msra.mxu0 0.0
    %3602 = vmatprep.subr.mxu0 0.0
    %3603 = vmatpush1.msra.mxu0 0.0
    %3604 = vmatprep.subr.mxu0 0.0
    %3605 = vmatpush1.msra.mxu0 0.0
    %3606 = vmatprep.subr.mxu0 0.0
    %3607 = vmatpush1.msra.mxu0 0.0
    %3608 = vmatprep.subr.mxu0 0.0
    %3609 = vmatpush1.msra.mxu0 0.0
    %3610 = vmatprep.subr.mxu0 0.0
    %3611 = vmatpush1.msra.mxu0 0.0
    %3612 = vmatprep.mubr.f32.mxu0 0.0
    %3613 = vmatmul.mubr.f32.gmra.mrb[0].mxu0 %v3546
    %v3614 = vpop.f32.mrb[0].mxu0
    %v3615 = vadd.f32 0.0, %v3614
    %v3616 = vpop.f32.mrb[0].mxu0
    %3617 = vdwg.mxu0
    %v3618 = vadd.f32 %v3532, %v3615
    %v3619 = vlaneseq
    %v3620 = vshrl.u32 %v3619, 7
    %v3621 = vsub.s32 0, %v3620
    %v3622 = vrot.slane %v3375, %v3621
    %v3623 = vadd.f32 %v3618, %v3622
    %v3624 = vsel %vm40, %v3623, 0.0
    %v3625 = vrot.slane %v3624, 4
    %v3626 = vadd.f32 %v3624, %v3625
    %v3627 = vrot.slane %v3626, 2
    %v3628 = vadd.f32 %v3626, %v3627
    %v3629 = vrot.slane %v3628, 1
    %v3630 = vadd.f32 %v3628, %v3629
    %v3631 = vmul.f32 %v3630, %v199
    %v3632 = vmul.f32 %v3631, %v3375
    %v3633 = vlaneseq
    %v3634 = vshrl.u32 %v3633, 7
    %v3635 = vsub.s32 3, %v3634
    %v3636 = vrot.slane %v3632, %v3635
    %v3637 = vsub.f32 %v3623, %v3636
    %v3638 = vmul.f32 %v3637, %v3637
    %v3639 = vsel %vm40, %v3638, 0.0
    %v3640 = vrot.slane %v3639, 4
    %v3641 = vadd.f32 %v3639, %v3640
    %v3642 = vrot.slane %v3641, 2
    %v3643 = vadd.f32 %v3641, %v3642
    %v3644 = vrot.slane %v3643, 1
    %v3645 = vadd.f32 %v3643, %v3644
    %v3646 = vmul.f32 %v3645, %v199
    %v3647 = vlaneseq
    %v3648 = vshrl.u32 %v3647, 7
    %v3649 = vsub.s32 1, %v3648
    %v3650 = vrot.slane %v3375, %v3649
    %v3651 = vmul.f32 %v3650, %v3637
    %v3652 = vadd.f32 %v3646, 1e-05
    %v3653 = vrsqrt.pop %v3652
    %v3654 = vmul.f32 %v3651, %v3653
    %v3655 = vlaneseq
    %v3656 = vshrl.u32 %v3655, 7
    %v3657 = vsub.s32 2, %v3656
    %v3658 = vrot.slane %v3375, %v3657
    %v3659 = vadd.f32 %v3654, %v3658
    %vm3660 = vcmp.ge.f32.partialorder %v3659, 0.0
    %v3661 = vmul.f32 %v3659, 0.2
    %v3662 = vsel %vm3660, %v3659, %v3661
    %s3663 = scalar_lea.vmem %s2, 120
    %v3664 = vld [vmem:[%s3663] sm:$0xff]
    %s3665 = scalar_lea.vmem %s1, 1440
    %v3666 = vld [vmem:[%s3665] sm:$0xff]
    %v3667 = vld [vmem:[%s3665 + $0x8] sm:$0xff]
    %v3668 = vld [vmem:[%s3665 + $0x10] sm:$0xff]
    %v3669 = vld [vmem:[%s3665 + $0x18] sm:$0xff]
    %v3670 = vrot.slane %v3662, 7
    %v3671 = vsub.f32 0.0, %v3670
    %v3672 = vsel %vm25, %v3671, 0.0
    %s3673 = scalar_lea.vmem %s1, 1472
    %v3674 = vld [vmem:[%s3673] sm:$0xff]
    %v3675 = vld [vmem:[%s3673 + $0x8] sm:$0xff]
    %v3676 = vld [vmem:[%s3673 + $0x10] sm:$0xff]
    %v3677 = vld [vmem:[%s3673 + $0x18] sm:$0xff]
    %v3679 = vsel %vm40, %v3672, 0
    %3681 = vmatprep.subr.mxu0 0.0
    %3682 = vmatpush1.msra.mxu0 %v3674
    %3683 = vmatprep.subr.mxu0 0.0
    %3684 = vmatpush1.msra.mxu0 %v3675
    %3685 = vmatprep.subr.mxu0 0.0
    %3686 = vmatpush1.msra.mxu0 %v3676
    %3687 = vmatprep.subr.mxu0 0.0
    %3688 = vmatpush1.msra.mxu0 %v3677
    %3689 = vmatprep.subr.mxu0 0.0
    %3690 = vmatpush1.msra.mxu0 0.0
    %3691 = vmatprep.subr.mxu0 0.0
    %3692 = vmatpush1.msra.mxu0 0.0
    %3693 = vmatprep.subr.mxu0 0.0
    %3694 = vmatpush1.msra.mxu0 0.0
    %3695 = vmatprep.subr.mxu0 0.0
    %3696 = vmatpush1.msra.mxu0 0.0
    %3697 = vmatprep.subr.mxu0 0.0
    %3698 = vmatpush1.msra.mxu0 0.0
    %3699 = vmatprep.subr.mxu0 0.0
    %3700 = vmatpush1.msra.mxu0 0.0
    %3701 = vmatprep.subr.mxu0 0.0
    %3702 = vmatpush1.msra.mxu0 0.0
    %3703 = vmatprep.subr.mxu0 0.0
    %3704 = vmatpush1.msra.mxu0 0.0
    %3705 = vmatprep.subr.mxu0 0.0
    %3706 = vmatpush1.msra.mxu0 0.0
    %3707 = vmatprep.subr.mxu0 0.0
    %3708 = vmatpush1.msra.mxu0 0.0
    %3709 = vmatprep.subr.mxu0 0.0
    %3710 = vmatpush1.msra.mxu0 0.0
    %3711 = vmatprep.subr.mxu0 0.0
    %3712 = vmatpush1.msra.mxu0 0.0
    %3713 = vmatprep.subr.mxu0 0.0
    %3714 = vmatpush1.msra.mxu0 0.0
    %3715 = vmatprep.subr.mxu0 0.0
    %3716 = vmatpush1.msra.mxu0 0.0
    %3717 = vmatprep.subr.mxu0 0.0
    %3718 = vmatpush1.msra.mxu0 0.0
    %3719 = vmatprep.subr.mxu0 0.0
    %3720 = vmatpush1.msra.mxu0 0.0
    %3721 = vmatprep.subr.mxu0 0.0
    %3722 = vmatpush1.msra.mxu0 0.0
    %3723 = vmatprep.subr.mxu0 0.0
    %3724 = vmatpush1.msra.mxu0 0.0
    %3725 = vmatprep.subr.mxu0 0.0
    %3726 = vmatpush1.msra.mxu0 0.0
    %3727 = vmatprep.subr.mxu0 0.0
    %3728 = vmatpush1.msra.mxu0 0.0
    %3729 = vmatprep.subr.mxu0 0.0
    %3730 = vmatpush1.msra.mxu0 0.0
    %3731 = vmatprep.subr.mxu0 0.0
    %3732 = vmatpush1.msra.mxu0 0.0
    %3733 = vmatprep.subr.mxu0 0.0
    %3734 = vmatpush1.msra.mxu0 0.0
    %3735 = vmatprep.subr.mxu0 0.0
    %3736 = vmatpush1.msra.mxu0 0.0
    %3737 = vmatprep.subr.mxu0 0.0
    %3738 = vmatpush1.msra.mxu0 0.0
    %3739 = vmatprep.subr.mxu0 0.0
    %3740 = vmatpush1.msra.mxu0 0.0
    %3741 = vmatprep.subr.mxu0 0.0
    %3742 = vmatpush1.msra.mxu0 0.0
    %3743 = vmatprep.subr.mxu0 0.0
    %3744 = vmatpush1.msra.mxu0 0.0
    %3745 = vmatprep.mubr.f32.mxu0 0.0
    %3746 = vmatmul.mubr.f32.gmra.mrb[0].mxu0 %v3679
    %v3747 = vpop.f32.mrb[0].mxu0
    %v3748 = vadd.f32 0.0, %v3747
    %v3749 = vpop.f32.mrb[0].mxu0
    %3750 = vdwg.mxu0
    %v3752 = vsel %vm40, %v3662, 0
    %3754 = vmatprep.subr.mxu0 0.0
    %3755 = vmatpush1.msra.mxu0 %v3666
    %3756 = vmatprep.subr.mxu0 0.0
    %3757 = vmatpush1.msra.mxu0 %v3667
    %3758 = vmatprep.subr.mxu0 0.0
    %3759 = vmatpush1.msra.mxu0 %v3668
    %3760 = vmatprep.subr.mxu0 0.0
    %3761 = vmatpush1.msra.mxu0 %v3669
    %3762 = vmatprep.subr.mxu0 0.0
    %3763 = vmatpush1.msra.mxu0 0.0
    %3764 = vmatprep.subr.mxu0 0.0
    %3765 = vmatpush1.msra.mxu0 0.0
    %3766 = vmatprep.subr.mxu0 0.0
    %3767 = vmatpush1.msra.mxu0 0.0
    %3768 = vmatprep.subr.mxu0 0.0
    %3769 = vmatpush1.msra.mxu0 0.0
    %3770 = vmatprep.subr.mxu0 0.0
    %3771 = vmatpush1.msra.mxu0 0.0
    %3772 = vmatprep.subr.mxu0 0.0
    %3773 = vmatpush1.msra.mxu0 0.0
    %3774 = vmatprep.subr.mxu0 0.0
    %3775 = vmatpush1.msra.mxu0 0.0
    %3776 = vmatprep.subr.mxu0 0.0
    %3777 = vmatpush1.msra.mxu0 0.0
    %3778 = vmatprep.subr.mxu0 0.0
    %3779 = vmatpush1.msra.mxu0 0.0
    %3780 = vmatprep.subr.mxu0 0.0
    %3781 = vmatpush1.msra.mxu0 0.0
    %3782 = vmatprep.subr.mxu0 0.0
    %3783 = vmatpush1.msra.mxu0 0.0
    %3784 = vmatprep.subr.mxu0 0.0
    %3785 = vmatpush1.msra.mxu0 0.0
    %3786 = vmatprep.subr.mxu0 0.0
    %3787 = vmatpush1.msra.mxu0 0.0
    %3788 = vmatprep.subr.mxu0 0.0
    %3789 = vmatpush1.msra.mxu0 0.0
    %3790 = vmatprep.subr.mxu0 0.0
    %3791 = vmatpush1.msra.mxu0 0.0
    %3792 = vmatprep.subr.mxu0 0.0
    %3793 = vmatpush1.msra.mxu0 0.0
    %3794 = vmatprep.subr.mxu0 0.0
    %3795 = vmatpush1.msra.mxu0 0.0
    %3796 = vmatprep.subr.mxu0 0.0
    %3797 = vmatpush1.msra.mxu0 0.0
    %3798 = vmatprep.subr.mxu0 0.0
    %3799 = vmatpush1.msra.mxu0 0.0
    %3800 = vmatprep.subr.mxu0 0.0
    %3801 = vmatpush1.msra.mxu0 0.0
    %3802 = vmatprep.subr.mxu0 0.0
    %3803 = vmatpush1.msra.mxu0 0.0
    %3804 = vmatprep.subr.mxu0 0.0
    %3805 = vmatpush1.msra.mxu0 0.0
    %3806 = vmatprep.subr.mxu0 0.0
    %3807 = vmatpush1.msra.mxu0 0.0
    %3808 = vmatprep.subr.mxu0 0.0
    %3809 = vmatpush1.msra.mxu0 0.0
    %3810 = vmatprep.subr.mxu0 0.0
    %3811 = vmatpush1.msra.mxu0 0.0
    %3812 = vmatprep.subr.mxu0 0.0
    %3813 = vmatpush1.msra.mxu0 0.0
    %3814 = vmatprep.subr.mxu0 0.0
    %3815 = vmatpush1.msra.mxu0 0.0
    %3816 = vmatprep.subr.mxu0 0.0
    %3817 = vmatpush1.msra.mxu0 0.0
    %3818 = vmatprep.mubr.f32.mxu0 0.0
    %3819 = vmatmul.mubr.f32.gmra.mrb[0].mxu0 %v3752
    %v3820 = vpop.f32.mrb[0].mxu0
    %v3821 = vadd.f32 %v3748, %v3820
    %v3822 = vpop.f32.mrb[0].mxu0
    %3823 = vdwg.mxu0
    %v3824 = vlaneseq
    %v3825 = vshrl.u32 %v3824, 7
    %v3826 = vsub.s32 0, %v3825
    %v3827 = vrot.slane %v3664, %v3826
    %v3828 = vadd.f32 %v3821, %v3827
    %v3829 = vadd.f32 %v3828, %v26
    %v3830 = vmax.f32 %v3829, 0.0
    %v3831 = vsel %vm40, %v3830, 0.0
    %v3832 = vrot.slane %v3831, 4
    %v3833 = vadd.f32 %v3831, %v3832
    %v3834 = vrot.slane %v3833, 2
    %v3835 = vadd.f32 %v3833, %v3834
    %v3836 = vrot.slane %v3835, 1
    %v3837 = vadd.f32 %v3835, %v3836
    %v3838 = vmul.f32 %v3837, %v199
    %v3839 = vld [vmem:[%s3] sm:$0xff]
    %v3840 = vld [vmem:[%s3 + $0x8] sm:$0xff]
    %v3841 = vld [vmem:[%s3 + $0x10] sm:$0xff]
    %v3842 = vld [vmem:[%s3 + $0x18] sm:$0xff]
    %v3843 = vld [vmem:[%s4] sm:$0x1]
    %v3845 = vsel %vm40, %v3838, 0
    %3847 = vmatprep.subr.mxu0 0.0
    %3848 = vmatpush1.msra.mxu0 %v3839
    %3849 = vmatprep.subr.mxu0 0.0
    %3850 = vmatpush1.msra.mxu0 %v3840
    %3851 = vmatprep.subr.mxu0 0.0
    %3852 = vmatpush1.msra.mxu0 %v3841
    %3853 = vmatprep.subr.mxu0 0.0
    %3854 = vmatpush1.msra.mxu0 %v3842
    %3855 = vmatprep.subr.mxu0 0.0
    %3856 = vmatpush1.msra.mxu0 0.0
    %3857 = vmatprep.subr.mxu0 0.0
    %3858 = vmatpush1.msra.mxu0 0.0
    %3859 = vmatprep.subr.mxu0 0.0
    %3860 = vmatpush1.msra.mxu0 0.0
    %3861 = vmatprep.subr.mxu0 0.0
    %3862 = vmatpush1.msra.mxu0 0.0
    %3863 = vmatprep.subr.mxu0 0.0
    %3864 = vmatpush1.msra.mxu0 0.0
    %3865 = vmatprep.subr.mxu0 0.0
    %3866 = vmatpush1.msra.mxu0 0.0
    %3867 = vmatprep.subr.mxu0 0.0
    %3868 = vmatpush1.msra.mxu0 0.0
    %3869 = vmatprep.subr.mxu0 0.0
    %3870 = vmatpush1.msra.mxu0 0.0
    %3871 = vmatprep.subr.mxu0 0.0
    %3872 = vmatpush1.msra.mxu0 0.0
    %3873 = vmatprep.subr.mxu0 0.0
    %3874 = vmatpush1.msra.mxu0 0.0
    %3875 = vmatprep.subr.mxu0 0.0
    %3876 = vmatpush1.msra.mxu0 0.0
    %3877 = vmatprep.subr.mxu0 0.0
    %3878 = vmatpush1.msra.mxu0 0.0
    %3879 = vmatprep.subr.mxu0 0.0
    %3880 = vmatpush1.msra.mxu0 0.0
    %3881 = vmatprep.subr.mxu0 0.0
    %3882 = vmatpush1.msra.mxu0 0.0
    %3883 = vmatprep.subr.mxu0 0.0
    %3884 = vmatpush1.msra.mxu0 0.0
    %3885 = vmatprep.subr.mxu0 0.0
    %3886 = vmatpush1.msra.mxu0 0.0
    %3887 = vmatprep.subr.mxu0 0.0
    %3888 = vmatpush1.msra.mxu0 0.0
    %3889 = vmatprep.subr.mxu0 0.0
    %3890 = vmatpush1.msra.mxu0 0.0
    %3891 = vmatprep.subr.mxu0 0.0
    %3892 = vmatpush1.msra.mxu0 0.0
    %3893 = vmatprep.subr.mxu0 0.0
    %3894 = vmatpush1.msra.mxu0 0.0
    %3895 = vmatprep.subr.mxu0 0.0
    %3896 = vmatpush1.msra.mxu0 0.0
    %3897 = vmatprep.subr.mxu0 0.0
    %3898 = vmatpush1.msra.mxu0 0.0
    %3899 = vmatprep.subr.mxu0 0.0
    %3900 = vmatpush1.msra.mxu0 0.0
    %3901 = vmatprep.subr.mxu0 0.0
    %3902 = vmatpush1.msra.mxu0 0.0
    %3903 = vmatprep.subr.mxu0 0.0
    %3904 = vmatpush1.msra.mxu0 0.0
    %3905 = vmatprep.subr.mxu0 0.0
    %3906 = vmatpush1.msra.mxu0 0.0
    %3907 = vmatprep.subr.mxu0 0.0
    %3908 = vmatpush1.msra.mxu0 0.0
    %3909 = vmatprep.subr.mxu0 0.0
    %3910 = vmatpush1.msra.mxu0 0.0
    %3911 = vmatprep.mubr.f32.mxu0 0.0
    %3912 = vmatmul.mubr.f32.gmra.mrb[0].mxu0 %v3845
    %v3913 = vpop.f32.mrb[0].mxu0
    %v3914 = vadd.f32 %v3843, %v3913
    %v3915 = vpop.f32.mrb[0].mxu0
    %3916 = vdwg.mxu0
    %v3917 = vtanh.pop %v3914
    %3918 = vst [vmem:[#allocation2] sm:$0x1] %v3917
    // Predicated region
    $region22: #{forward.1} parent=1 // pred_check
      _
    $region23: #{forward.1} parent=1 // pred_check_branch
      %3920 = sbr.rel (0) target = $region25
    $region24: #{forward.1} parent=1 // pred_region
      %s3922 = ssub.s32 16, 16
      %3923 = vsyncadd [#allocation3], %s3922
      %s3925 = sshll.u32 [#allocation2], 4
      %s3926 = int_to_ptr.vmem [resolvable:$true] %s3925
      %3928 = dma.vmem_to_hbm [thread:$0]  %s3926, 16, %s5, [#allocation3]
    $region25: #{forward.1} parent=1 // pred_fallthru
      _
    // Predicated region
    $region26: #{forward.1} parent=1 // pred_check
      _
    $region27: #{forward.1} parent=1 // pred_check_branch
      %3930 = sbr.rel (0) target = $region29
    $region28: #{forward.1} parent=1 // pred_region
      %3931 = dma.done [#allocation3], 16
    $region29: #{forward.1} parent=1 // pred_fallthru
      _
    %3932 = vsyncpa [#allocation3], 1

</llo_original>
